<compile_context>
chip_gen: v5e
topology: v5e:2x2
jax: 0.10.0
libtpu: 0.0.40
codegen_flags: <defaults>
</compile_context>

<pallas_src>
import functools

import jax
import jax.numpy as jnp
from jax.experimental import pallas as pl
from jax.experimental.pallas import tpu as pltpu

_LANE = 128


def _round_up(x, m):
    return ((x + m - 1) // m) * m


def _sublane_align(dtype):
    """Native sublane tile for a dtype: 8 (f32), 16 (bf16/f16), 32 (int8/fp8)."""
    itemsize = jnp.dtype(dtype).itemsize
    return max(8, 32 // max(itemsize, 1))


def _vmem_limit_bytes():
    """Generation-aware scoped-VMEM budget.

    ~Half of physical VMEM (64 MiB on v5e/v6e's 128 MiB, 32 MiB on v7x's
    64 MiB); falls back to a 32 MiB budget that is safe on every generation.
    """
    default = 32 * 1024 * 1024
    try:
        cap = getattr(pltpu.get_tpu_info(), "vmem_capacity_bytes", None)
        if cap:
            return int(min(max(cap // 2, default), 64 * 1024 * 1024))
    except Exception:
        pass
    return default


def _pick_tile(dim, max_tile, align):
    """Largest multiple of `align` that divides `dim` and is <= max_tile.

    Callers pad `dim` to a multiple of `align` first, so for dim > max_tile an
    aligned divisor always exists and the full-extent fallback (always legal)
    only triggers for dims that already fit in one block.
    """
    if dim <= max_tile:
        return dim
    t = (max_tile // align) * align
    while t >= align:
        if dim % t == 0:
            return t
        t -= align
    return dim


def _pick_lane_tile(dim, max_tile):
    """Lane-dim tile: prefer multiples of 256 (fills the 256-wide MXU on
    v6e/v7x), falling back to multiples of 128."""
    if dim <= max_tile:
        return dim
    for align in (2 * _LANE, _LANE):
        t = (max_tile // align) * align
        while t >= align:
            if dim % t == 0:
                return t
            t -= align
    return dim


# ---------------------------------------------------------------------------
# Generic tiled Dense: y = x @ W_io + b, optional ReLU.
# ---------------------------------------------------------------------------
def _dense_tiled_kernel(x_ref, w_ref, b_ref, o_ref, acc_ref, *,
                        apply_relu, compute_dtype):
    kk = pl.program_id(2)

    @pl.when(kk == 0)
    def _():
        # Seed the f32 accumulator with the bias once per output tile.
        acc_ref[...] = jnp.broadcast_to(
            b_ref[...].astype(jnp.float32), acc_ref.shape)

    acc_ref[...] += jnp.dot(
        x_ref[...].astype(compute_dtype),
        w_ref[...].astype(compute_dtype),
        preferred_element_type=jnp.float32)

    @pl.when(kk == pl.num_programs(2) - 1)
    def _():
        y = acc_ref[...]
        if apply_relu:
            y = jnp.maximum(y, 0.0)
        o_ref[...] = y.astype(o_ref.dtype)


def dense_forward(x, w_io, bias, activation=None, *,
                  compute_dtype=jnp.bfloat16):
    """Pallas equivalent of Dense.forward.

    x:    (B, in_features)
    w_io: (in_features, out_features)  -- pre-transposed ONCE at init time
          (PyTorch nn.Linear stores (out, in); do not transpose per call).
    bias: (out_features,)
    activation: None or "relu"
    compute_dtype: MXU input dtype (bf16 default, f32 accumulation).
    """
    M, K = x.shape
    K2, N = w_io.shape
    assert K == K2, (K, K2)

    sub = _sublane_align(x.dtype)
    m_pad = _round_up(M, sub)
    k_pad = _round_up(K, _LANE)
    n_pad = _round_up(N, _LANE)

    if (m_pad, k_pad) != (M, K):
        x = jnp.pad(x, ((0, m_pad - M), (0, k_pad - K)))
    if (k_pad, n_pad) != (K, N):
        w_io = jnp.pad(w_io, ((0, k_pad - K), (0, n_pad - N)))
    b2 = jnp.zeros((1, n_pad), jnp.float32).at[0, :N].set(
        bias.astype(jnp.float32))

    tm = _pick_tile(m_pad, 512, sub)
    tn = _pick_lane_tile(n_pad, 512)
    tk = _pick_tile(k_pad, 1024, _LANE)

    kernel = functools.partial(
        _dense_tiled_kernel,
        apply_relu=(activation == "relu"),
        compute_dtype=compute_dtype)

    y = pl.pallas_call(
        kernel,
        out_shape=jax.ShapeDtypeStruct((m_pad, n_pad), x.dtype),
        grid_spec=pltpu.PrefetchScalarGridSpec(
            num_scalar_prefetch=0,
            grid=(m_pad // tm, n_pad // tn, k_pad // tk),
            in_specs=[
                pl.BlockSpec((tm, tk), lambda i, j, kk: (i, kk)),
                pl.BlockSpec((tk, tn), lambda i, j, kk: (kk, j)),
                pl.BlockSpec((1, tn), lambda i, j, kk: (0, j)),
            ],
            out_specs=pl.BlockSpec((tm, tn), lambda i, j, kk: (i, j)),
            scratch_shapes=[pltpu.VMEM((tm, tn), jnp.float32)],
        ),
        compiler_params=pltpu.CompilerParams(
            dimension_semantics=("parallel", "parallel", "arbitrary"),
            vmem_limit_bytes=_vmem_limit_bytes(),
        ),
    )(x, w_io, b2)

    return y[:M, :N]


# ---------------------------------------------------------------------------
# Fused decode_pose: Fc1(6272->256) -> Fc2(256->128) -> Fc3(128->6k, padded
# to 128 lanes).  One pallas_call; hidden activations stay in VMEM; Fc1 is
# consumed in a single K step (no per-step grid overhead).
# ---------------------------------------------------------------------------
def _decode_pose_kernel(x_ref, w1_ref, b1_ref, w2_ref, b2_ref, w3_ref, b3_ref,
                        o_ref, acc_ref, *, compute_dtype):
    kk = pl.program_id(1)

    @pl.when(kk == 0)
    def _():
        acc_ref[...] = jnp.broadcast_to(
            b1_ref[...].astype(jnp.float32), acc_ref.shape)

    # Layer 1 (Fc1): bf16 MXU inputs, f32 accumulation.
    acc_ref[...] += jnp.dot(
        x_ref[...].astype(compute_dtype),
        w1_ref[...].astype(compute_dtype),
        preferred_element_type=jnp.float32)

    @pl.when(kk == pl.num_programs(1) - 1)
    def _():
        # Fc1/Fc2/Fc3 use activation=None in the original module (no ReLU).
        h1 = acc_ref[...]                                   # (tb, 256) f32
        h2 = jnp.dot(h1.astype(compute_dtype),
                     w2_ref[...].astype(compute_dtype),
                     preferred_element_type=jnp.float32) + b2_ref[...]
        y = jnp.dot(h2.astype(compute_dtype),
                    w3_ref[...].astype(compute_dtype),
                    preferred_element_type=jnp.float32) + b3_ref[...]
        o_ref[...] = y.astype(o_ref.dtype)                  # lane-dense store


def prepare_decode_pose_params(fc1, fc2, fc3, *, param_dtype=jnp.bfloat16):
    """One-time conversion of PyTorch-layout Linear parameters.

    fc* = (weight (out_features, in_features), bias (out_features,)).
    Weights are transposed ONCE to (in, out) and stored bf16 by default
    (the kernel cost is streaming Fc1's weight from HBM; bf16 halves it).
    The last layer is zero-padded to a multiple of 128 output lanes so the
    kernel's output store is lane-dense.  Biases stay f32 (they seed the
    f32 accumulator).
    """
    (w1, b1), (w2, b2), (w3, b3) = fc1, fc2, fc3
    out3 = w3.shape[0]
    out3_pad = _round_up(out3, _LANE)

    w3_io = jnp.zeros((w3.shape[1], out3_pad), jnp.float32).at[:, :out3].set(w3.T)
    b3_p = jnp.zeros((out3_pad,), jnp.float32).at[:out3].set(b3)

    return dict(
        w1=w1.T.astype(param_dtype),
        b1=b1.astype(jnp.float32),
        w2=w2.T.astype(param_dtype),
        b2=b2.astype(jnp.float32),
        w3=w3_io.astype(param_dtype),
        b3=b3_p.astype(jnp.float32),
        out_features=out3,
    )


def decode_pose_forward(z, params, *, compute_dtype=None):
    """Pallas equivalent of PoseAndMaskEncoder.decode_pose.

    z: (B, 128, 7, 7) (or already flattened (B, 128*7*7)).
    Returns poses of shape (B, 6*k).
    """
    w1, b1 = params["w1"], params["b1"]
    w2, b2 = params["w2"], params["b2"]
    w3, b3 = params["w3"], params["b3"]
    out_features = params["out_features"]
    if compute_dtype is None:
        compute_dtype = w1.dtype          # bf16 by default

    B = z.shape[0]
    x = z.reshape(B, -1)                  # z.view(-1, 128*7*7)
    K1, H1 = w1.shape
    _, H2 = w2.shape
    _, OUTP = w3.shape
    assert x.shape[1] == K1, (x.shape, K1)

    # Pad the batch to a sublane multiple so the output store is unmasked.
    sub = _sublane_align(x.dtype)
    b_pad = _round_up(B, sub)
    if b_pad != B:
        x = jnp.pad(x, ((0, b_pad - B), (0, 0)))

    tb = _pick_tile(b_pad, 256, sub)
    # Single-shot K: the 6272x256 w1 block is ~3.2 MB bf16 (6.4 MB f32) —
    # well under the scoped-VMEM budget even double-buffered, and at small
    # batch the kernel is w1-fetch bound so extra K steps only add per-step
    # overhead.
    tk = _pick_tile(K1, 8192, _LANE)

    b1r = b1.reshape(1, H1)
    b2r = b2.reshape(1, H2)
    b3r = b3.reshape(1, OUTP)

    kernel = functools.partial(_decode_pose_kernel, compute_dtype=compute_dtype)

    y_pad = pl.pallas_call(
        kernel,
        out_shape=jax.ShapeDtypeStruct((b_pad, OUTP), x.dtype),
        grid_spec=pltpu.PrefetchScalarGridSpec(
            num_scalar_prefetch=0,
            grid=(b_pad // tb, K1 // tk),
            in_specs=[
                pl.BlockSpec((tb, tk), lambda b, kk: (b, kk)),     # x tile
                pl.BlockSpec((tk, H1), lambda b, kk: (kk, 0)),     # w1 tile
                pl.BlockSpec((1, H1), lambda b, kk: (0, 0)),       # b1 (resident)
                pl.BlockSpec((H1, H2), lambda b, kk: (0, 0)),      # w2 (resident)
                pl.BlockSpec((1, H2), lambda b, kk: (0, 0)),       # b2 (resident)
                pl.BlockSpec((H2, OUTP), lambda b, kk: (0, 0)),    # w3 (padded)
                pl.BlockSpec((1, OUTP), lambda b, kk: (0, 0)),     # b3 (padded)
            ],
            out_specs=pl.BlockSpec((tb, OUTP), lambda b, kk: (b, 0)),
            scratch_shapes=[pltpu.VMEM((tb, H1), jnp.float32)],
        ),
        compiler_params=pltpu.CompilerParams(
            # batch axis parallel (megacore on v7x for big batches); K reduces.
            dimension_semantics=("parallel", "arbitrary"),
            vmem_limit_bytes=_vmem_limit_bytes(),
        ),
    )(x, w1, b1r, w2, b2r, w3, b3r)

    return y_pad[:B, :out_features]


if __name__ == "__main__":
    k = 5
    B = 2
    key = jax.random.PRNGKey(0)
    kz, k1w, k1b, k2w, k2b, k3w, k3b, kxd, kwd, kbd = jax.random.split(key, 10)

    def init_linear(kw, kb, out_f, in_f):
        bound = 1.0 / (in_f ** 0.5)
        w = jax.random.uniform(kw, (out_f, in_f), jnp.float32, -bound, bound)
        b = jax.random.uniform(kb, (out_f,), jnp.float32, -bound, bound)
        return w, b

    IN1, H1, H2, OUT = 128 * 7 * 7, 256, 128, 6 * k
    fc1 = init_linear(k1w, k1b, H1, IN1)   # PyTorch layout (out, in)
    fc2 = init_linear(k2w, k2b, H2, H1)
    fc3 = init_linear(k3w, k3b, OUT, H2)

    # Encoded state z5 of PoseAndMaskEncoder: (B, 128, 7, 7).
    z = jax.random.normal(kz, (B, 128, 7, 7), jnp.float32)

    # Reference (PyTorch Linear semantics) at highest precision.
    hp = jax.lax.Precision.HIGHEST
    xf = z.reshape(B, -1)
    s1 = jnp.dot(xf, fc1[0].T, precision=hp) + fc1[1]
    s2 = jnp.dot(s1, fc2[0].T, precision=hp) + fc2[1]
    ref = jnp.dot(s2, fc3[0].T, precision=hp) + fc3[1]

    # Default path: bf16 weights + bf16 MXU compute, f32 accumulation.
    params_bf16 = prepare_decode_pose_params(fc1, fc2, fc3)
    poses = decode_pose_forward(z, params_bf16)
    jax.block_until_ready(poses)
    assert poses.shape == (B, OUT), poses.shape
    assert jnp.allclose(poses, ref, atol=5e-2, rtol=5e-2), \
        float(jnp.max(jnp.abs(poses - ref)))

    # Full-precision path (f32 params + f32 MXU; default MXU precision, so
    # not bit-identical to Precision.HIGHEST — 5e-3 tolerance covers it).
    params_f32 = prepare_decode_pose_params(fc1, fc2, fc3,
                                            param_dtype=jnp.float32)
    poses_f32 = decode_pose_forward(z, params_f32)
    jax.block_until_ready(poses_f32)
    assert poses_f32.shape == (B, OUT)
    assert jnp.allclose(poses_f32, ref, atol=5e-3, rtol=5e-3), \
        float(jnp.max(jnp.abs(poses_f32 - ref)))

    # Generic tiled Dense kernel: exercises the (M, N, K) accumulated path.
    M, K, N = 256, 1536, 384
    bound = 1.0 / (K ** 0.5)
    xd = jax.random.normal(kxd, (M, K), jnp.float32)
    wd = jax.random.uniform(kwd, (N, K), jnp.float32, -bound, bound)  # (out, in)
    bd = jax.random.uniform(kbd, (N,), jnp.float32, -bound, bound)
    wd_io = wd.T  # one-time "init time" pre-transpose, not per forward call
    yd_ref = jnp.maximum(jnp.dot(xd, wd.T, precision=hp) + bd, 0.0)

    yd = dense_forward(xd, wd_io, bd, activation="relu")        # bf16 default
    jax.block_until_ready(yd)
    assert jnp.allclose(yd, yd_ref, atol=3e-2, rtol=3e-2), \
        float(jnp.max(jnp.abs(yd - yd_ref)))

    yd32 = dense_forward(xd, wd_io, bd, activation="relu",
                         compute_dtype=jnp.float32)
    jax.block_until_ready(yd32)
    assert jnp.allclose(yd32, yd_ref, atol=5e-3, rtol=5e-3), \
        float(jnp.max(jnp.abs(yd32 - yd_ref)))

    print("KERNEL_OK")
</pallas_src>

<mosaic_0001>
module attributes {stable_mosaic.version = 11 : i64} {
  func.func @_decode_pose_kernel(%arg0: i32, %arg1: i32, %arg2: memref<8x6272xf32, #tpu.memory_space<vmem>>, %arg3: memref<6272x256xbf16, #tpu.memory_space<vmem>>, %arg4: memref<1x256xf32, #tpu.memory_space<vmem>>, %arg5: memref<256x128xbf16, #tpu.memory_space<vmem>>, %arg6: memref<1x128xf32, #tpu.memory_space<vmem>>, %arg7: memref<128x128xbf16, #tpu.memory_space<vmem>>, %arg8: memref<1x128xf32, #tpu.memory_space<vmem>>, %arg9: memref<8x128xf32, #tpu.memory_space<vmem>>, %arg10: memref<8x256xf32, #tpu.memory_space<vmem>>) attributes {dimension_semantics = [#tpu.dimension_semantics<parallel>, #tpu.dimension_semantics<arbitrary>], iteration_bounds = array<i64: 1, 1>, scalar_prefetch = 0 : i64, scratch_operands = 1 : i64, tpu.core_type = #tpu.core_type<tc>, window_params = [{transform_indices = @transform_0, window_bounds = array<i64: 8, 6272>}, {transform_indices = @transform_1, window_bounds = array<i64: 6272, 256>}, {pipeline_mode = #tpu.pipeline_mode<synchronous>, transform_indices = @transform_2, window_bounds = array<i64: 1, 256>}, {pipeline_mode = #tpu.pipeline_mode<synchronous>, transform_indices = @transform_3, window_bounds = array<i64: 256, 128>}, {pipeline_mode = #tpu.pipeline_mode<synchronous>, transform_indices = @transform_4, window_bounds = array<i64: 1, 128>}, {pipeline_mode = #tpu.pipeline_mode<synchronous>, transform_indices = @transform_5, window_bounds = array<i64: 128, 128>}, {pipeline_mode = #tpu.pipeline_mode<synchronous>, transform_indices = @transform_6, window_bounds = array<i64: 1, 128>}, {transform_indices = @transform_7, window_bounds = array<i64: 8, 128>}]} {
    %c0_i32 = arith.constant 0 : i32
    %0 = arith.cmpi eq, %arg1, %c0_i32 : i32
    %1 = arith.extui %0 : i1 to i32
    %c0_i32_0 = arith.constant 0 : i32
    %2 = arith.cmpi ne, %1, %c0_i32_0 : i32
    scf.if %2 {
      %c0_10 = arith.constant 0 : index
      %c0_11 = arith.constant 0 : index
      %13 = vector.load %arg4[%c0_10, %c0_11] : memref<1x256xf32, #tpu.memory_space<vmem>>, vector<1x256xf32>
      %14 = vector.shape_cast %13 : vector<1x256xf32> to vector<1x256xf32>
      %15 = vector.broadcast %14 : vector<1x256xf32> to vector<8x256xf32>
      %c0_12 = arith.constant 0 : index
      %c0_13 = arith.constant 0 : index
      %16 = vector.load %arg10[%c0_12, %c0_13] : memref<8x256xf32, #tpu.memory_space<vmem>>, vector<8x256xf32>
      tpu.vector_store %arg10[%c0_12, %c0_13], %15 {strides = array<i32>} : memref<8x256xf32, #tpu.memory_space<vmem>>, vector<8x256xf32>,
    } else {
    }
    %c0 = arith.constant 0 : index
    %c0_1 = arith.constant 0 : index
    %3 = vector.load %arg10[%c0, %c0_1] : memref<8x256xf32, #tpu.memory_space<vmem>>, vector<8x256xf32>
    %c0_2 = arith.constant 0 : index
    %c0_3 = arith.constant 0 : index
    %4 = vector.load %arg2[%c0_2, %c0_3] : memref<8x6272xf32, #tpu.memory_space<vmem>>, vector<8x6272xf32>
    %5 = arith.truncf %4 : vector<8x6272xf32> to vector<8x6272xbf16>
    %c0_4 = arith.constant 0 : index
    %c0_5 = arith.constant 0 : index
    %6 = vector.load %arg3[%c0_4, %c0_5] : memref<6272x256xbf16, #tpu.memory_space<vmem>>, vector<6272x256xbf16>
    %cst = arith.constant dense<0.000000e+00> : vector<8x256xf32>
    %7 = tpu.matmul %5, %6, %cst {dimension_numbers = #tpu.dot_dimension_numbers<[1], [0], [0], [1], [0, 0, 1, 1], [], []>} : vector<8x6272xbf16>, vector<6272x256xbf16>, vector<8x256xf32> -> vector<8x256xf32>
    %8 = arith.addf %3, %7 : vector<8x256xf32>
    %c0_6 = arith.constant 0 : index
    %c0_7 = arith.constant 0 : index
    %9 = vector.load %arg10[%c0_6, %c0_7] : memref<8x256xf32, #tpu.memory_space<vmem>>, vector<8x256xf32>
    tpu.vector_store %arg10[%c0_6, %c0_7], %8 {strides = array<i32>} : memref<8x256xf32, #tpu.memory_space<vmem>>, vector<8x256xf32>,
    %c0_i32_8 = arith.constant 0 : i32
    %10 = arith.cmpi eq, %arg1, %c0_i32_8 : i32
    %11 = arith.extui %10 : i1 to i32
    %c0_i32_9 = arith.constant 0 : i32
    %12 = arith.cmpi ne, %11, %c0_i32_9 : i32
    scf.if %12 {
      %c0_10 = arith.constant 0 : index
      %c0_11 = arith.constant 0 : index
      %13 = vector.load %arg10[%c0_10, %c0_11] : memref<8x256xf32, #tpu.memory_space<vmem>>, vector<8x256xf32>
      %14 = arith.truncf %13 : vector<8x256xf32> to vector<8x256xbf16>
      %c0_12 = arith.constant 0 : index
      %c0_13 = arith.constant 0 : index
      %15 = vector.load %arg5[%c0_12, %c0_13] : memref<256x128xbf16, #tpu.memory_space<vmem>>, vector<256x128xbf16>
      %cst_14 = arith.constant dense<0.000000e+00> : vector<8x128xf32>
      %16 = tpu.matmul %14, %15, %cst_14 {dimension_numbers = #tpu.dot_dimension_numbers<[1], [0], [0], [1], [0, 0, 1, 1], [], []>} : vector<8x256xbf16>, vector<256x128xbf16>, vector<8x128xf32> -> vector<8x128xf32>
      %c0_15 = arith.constant 0 : index
      %c0_16 = arith.constant 0 : index
      %17 = vector.load %arg6[%c0_15, %c0_16] : memref<1x128xf32, #tpu.memory_space<vmem>>, vector<1x128xf32>
      %18 = vector.broadcast %17 : vector<1x128xf32> to vector<8x128xf32>
      %19 = arith.addf %16, %18 : vector<8x128xf32>
      %20 = arith.truncf %19 : vector<8x128xf32> to vector<8x128xbf16>
      %c0_17 = arith.constant 0 : index
      %c0_18 = arith.constant 0 : index
      %21 = vector.load %arg7[%c0_17, %c0_18] : memref<128x128xbf16, #tpu.memory_space<vmem>>, vector<128x128xbf16>
      %cst_19 = arith.constant dense<0.000000e+00> : vector<8x128xf32>
      %22 = tpu.matmul %20, %21, %cst_19 {dimension_numbers = #tpu.dot_dimension_numbers<[1], [0], [0], [1], [0, 0, 1, 1], [], []>} : vector<8x128xbf16>, vector<128x128xbf16>, vector<8x128xf32> -> vector<8x128xf32>
      %c0_20 = arith.constant 0 : index
      %c0_21 = arith.constant 0 : index
      %23 = vector.load %arg8[%c0_20, %c0_21] : memref<1x128xf32, #tpu.memory_space<vmem>>, vector<1x128xf32>
      %24 = vector.broadcast %23 : vector<1x128xf32> to vector<8x128xf32>
      %25 = arith.addf %22, %24 : vector<8x128xf32>
      %c0_22 = arith.constant 0 : index
      %c0_23 = arith.constant 0 : index
      %26 = vector.load %arg9[%c0_22, %c0_23] : memref<8x128xf32, #tpu.memory_space<vmem>>, vector<8x128xf32>
      tpu.vector_store %arg9[%c0_22, %c0_23], %25 {strides = array<i32>} : memref<8x128xf32, #tpu.memory_space<vmem>>, vector<8x128xf32>,
    } else {
    }
    return
  }
  func.func @transform_0(%arg0: i32, %arg1: i32) -> (i32, i32) {
    %c0_i32 = arith.constant 0 : i32
    return %arg0, %arg1 : i32, i32
  }
  func.func @transform_1(%arg0: i32, %arg1: i32) -> (i32, i32) {
    %c0_i32 = arith.constant 0 : i32
    %c0_i32_0 = arith.constant 0 : i32
    return %arg1, %c0_i32 : i32, i32
  }
  func.func @transform_2(%arg0: i32, %arg1: i32) -> (i32, i32) {
    %c0_i32 = arith.constant 0 : i32
    %c0_i32_0 = arith.constant 0 : i32
    %c0_i32_1 = arith.constant 0 : i32
    return %c0_i32, %c0_i32_0 : i32, i32
  }
  func.func @transform_3(%arg0: i32, %arg1: i32) -> (i32, i32) {
    %c0_i32 = arith.constant 0 : i32
    %c0_i32_0 = arith.constant 0 : i32
    %c0_i32_1 = arith.constant 0 : i32
    return %c0_i32, %c0_i32_0 : i32, i32
  }
  func.func @transform_4(%arg0: i32, %arg1: i32) -> (i32, i32) {
    %c0_i32 = arith.constant 0 : i32
    %c0_i32_0 = arith.constant 0 : i32
    %c0_i32_1 = arith.constant 0 : i32
    return %c0_i32, %c0_i32_0 : i32, i32
  }
  func.func @transform_5(%arg0: i32, %arg1: i32) -> (i32, i32) {
    %c0_i32 = arith.constant 0 : i32
    %c0_i32_0 = arith.constant 0 : i32
    %c0_i32_1 = arith.constant 0 : i32
    return %c0_i32, %c0_i32_0 : i32, i32
  }
  func.func @transform_6(%arg0: i32, %arg1: i32) -> (i32, i32) {
    %c0_i32 = arith.constant 0 : i32
    %c0_i32_0 = arith.constant 0 : i32
    %c0_i32_1 = arith.constant 0 : i32
    return %c0_i32, %c0_i32_0 : i32, i32
  }
  func.func @transform_7(%arg0: i32, %arg1: i32) -> (i32, i32) {
    %c0_i32 = arith.constant 0 : i32
    %c0_i32_0 = arith.constant 0 : i32
    return %arg0, %c0_i32 : i32, i32
  }
}

</mosaic_0001>

<llo_original>
// kernel: tpu_custom_call.1
$region0: #{tpu_custom_call.1}
  #allocation0 [shape = 'u32[]', space=smem, size = 0x4, offset = 0x4, fixed_abs, tag = 'smem constant byte address 0x4 - core index']
  #allocation1 [shape = 'u32[72,128]{1,0:T(1,128)}', space=vmem, size = 0x9000, scoped, tag = 'internal scratch']
  #allocation2 [shape = 'f32[8,256]{1,0:T(8,128)}', space=vmem, size = 0x2000, scoped, tag = 'scratch operand']
  %s0 = inlined_call_operand.hbm [shape: f32[8,6272], index: 0, kind: input, shape index: {}]
  %s1 = inlined_call_operand.hbm [shape: bf16[6272,256], index: 1, kind: input, shape index: {}]
  %s2 = inlined_call_operand.hbm [shape: f32[1,256], index: 2, kind: input, shape index: {}]
  %s3 = inlined_call_operand.hbm [shape: bf16[256,128], index: 3, kind: input, shape index: {}]
  %s4 = inlined_call_operand.hbm [shape: f32[1,128], index: 4, kind: input, shape index: {}]
  %s5 = inlined_call_operand.hbm [shape: bf16[128,128], index: 5, kind: input, shape index: {}]
  %s6 = inlined_call_operand.hbm [shape: f32[1,128], index: 6, kind: input, shape index: {}]
  %s7 = inlined_call_operand.hbm [shape: f32[8,128], index: 7, kind: output, shape index: {}]
  %s8 = sld [smem:[#allocation0]]
  $region74: #{tpu_custom_call.1} parent=0
    _
  %s10 = ssub.s32 1, %s8
  %s11 = scalar_select 0, %s10, %s8
  $region1: #{tpu_custom_call.1} parent=0
    #allocation3 [shape = 'u8[200704]{0}', space=vmem, size = 0x31000, scoped, tag = 'input window, operand 0, single buffered']
    #allocation4 [shape = 's32[1]{0}', space=sflag, size = 0x4, scoped, tag = 'scoped memory for tpu_custom_call.1']
    #allocation5 [shape = 's32[1]{0}', space=sflag, size = 0x4, scoped, tag = 'scoped memory for tpu_custom_call.1']
    #allocation6 [shape = 'u8[3211264]{0}', space=vmem, size = 0x310000, scoped, tag = 'input window, operand 1, single buffered']
    #allocation7 [shape = 's32[1]{0}', space=sflag, size = 0x4, scoped, tag = 'scoped memory for tpu_custom_call.1']
    #allocation8 [shape = 'u8[1024]{0}', space=vmem, size = 0x400, scoped, tag = 'input window, operand 2, single buffered']
    #allocation9 [shape = 'u8[65536]{0}', space=vmem, size = 0x10000, scoped, tag = 'input window, operand 3, single buffered']
    #allocation10 [shape = 's32[1]{0}', space=sflag, size = 0x4, scoped, tag = 'scoped memory for tpu_custom_call.1']
    #allocation11 [shape = 'u8[512]{0}', space=vmem, size = 0x400, scoped, tag = 'input window, operand 4, single buffered']
    #allocation12 [shape = 'u8[32768]{0}', space=vmem, size = 0x8000, scoped, tag = 'input window, operand 5, single buffered']
    #allocation13 [shape = 's32[1]{0}', space=sflag, size = 0x4, scoped, tag = 'scoped memory for tpu_custom_call.1']
    #allocation14 [shape = 'u8[512]{0}', space=vmem, size = 0x400, scoped, tag = 'input window, operand 6, single buffered']
    #allocation15 [shape = 'u8[4096]{0}', space=vmem, size = 0x1000, scoped, tag = 'output window, operand 0, single buffered']
    %12 = vsyncpa [#allocation4], 0
    %13 = vsyncpa [#allocation7], 0
    %14 = vsyncpa [#allocation10], 0
    %15 = vsyncpa [#allocation13], 0
    %16 = vsyncpa [#allocation5], 0
    // Predicated region
    $region2: #{tpu_custom_call.1} parent=1 // pred_check
      _
    $region3: #{tpu_custom_call.1} parent=1 // pred_check_branch
      %18 = sbr.rel (0) target = $region5
    $region4: #{tpu_custom_call.1} parent=1 // pred_region
      %20 = vsyncadd [#allocation4], 0
      %s22 = sshll.u32 %s0, 4
      %s23 = int_to_ptr.hbm [resolvable:$true] %s22
      %s24 = sshll.u32 [#allocation3], 4
      %s25 = int_to_ptr.vmem [resolvable:$true] %s24
      %27 = dma.hbm_to_vmem [thread:$0]  %s23, 6272, %s25, [#allocation4]
    $region5: #{tpu_custom_call.1} parent=1 // pred_fallthru
      _
    // Predicated region
    $region6: #{tpu_custom_call.1} parent=1 // pred_check
      _
    $region7: #{tpu_custom_call.1} parent=1 // pred_check_branch
      %29 = sbr.rel (0) target = $region9
    $region8: #{tpu_custom_call.1} parent=1 // pred_region
      %31 = vsyncadd [#allocation7], 0
      %s32 = sshll.u32 %s1, 4
      %s33 = int_to_ptr.hbm [resolvable:$true] %s32
      %s34 = sshll.u32 [#allocation6], 4
      %s35 = int_to_ptr.vmem [resolvable:$true] %s34
      %40 = dma.hbm_to_vmem [thread:$0]  %s33, 100352, %s35, [#allocation7], 128, 128, 8
    $region9: #{tpu_custom_call.1} parent=1 // pred_fallthru
      _
    // Predicated region
    $region10: #{tpu_custom_call.1} parent=1 // pred_check
      _
    $region11: #{tpu_custom_call.1} parent=1 // pred_check_branch
      %42 = sbr.rel (0) target = $region13
    $region12: #{tpu_custom_call.1} parent=1 // pred_region
      %44 = vsyncadd [#allocation7], 0
      %s46 = sshll.u32 %s2, 4
      %s47 = int_to_ptr.hbm [resolvable:$true] %s46
      %s48 = sshll.u32 [#allocation8], 4
      %s49 = int_to_ptr.vmem [resolvable:$true] %s48
      %51 = dma.hbm_to_vmem [thread:$0]  %s47, 32, %s49, [#allocation7]
    $region13: #{tpu_custom_call.1} parent=1 // pred_fallthru
      _
    // Predicated region
    $region14: #{tpu_custom_call.1} parent=1 // pred_check
      _
    $region15: #{tpu_custom_call.1} parent=1 // pred_check_branch
      %53 = sbr.rel (0) target = $region17
    $region16: #{tpu_custom_call.1} parent=1 // pred_region
      %55 = vsyncadd [#allocation10], 0
      %s56 = sshll.u32 %s3, 4
      %s57 = int_to_ptr.hbm [resolvable:$true] %s56
      %s58 = sshll.u32 [#allocation9], 4
      %s59 = int_to_ptr.vmem [resolvable:$true] %s58
      %64 = dma.hbm_to_vmem [thread:$0]  %s57, 2048, %s59, [#allocation10], 64, 64, 4
    $region17: #{tpu_custom_call.1} parent=1 // pred_fallthru
      _
    // Predicated region
    $region18: #{tpu_custom_call.1} parent=1 // pred_check
      _
    $region19: #{tpu_custom_call.1} parent=1 // pred_check_branch
      %66 = sbr.rel (0) target = $region21
    $region20: #{tpu_custom_call.1} parent=1 // pred_region
      %68 = vsyncadd [#allocation10], 0
      %s70 = sshll.u32 %s4, 4
      %s71 = int_to_ptr.hbm [resolvable:$true] %s70
      %s72 = sshll.u32 [#allocation11], 4
      %s73 = int_to_ptr.vmem [resolvable:$true] %s72
      %75 = dma.hbm_to_vmem [thread:$0]  %s71, 16, %s73, [#allocation10]
    $region21: #{tpu_custom_call.1} parent=1 // pred_fallthru
      _
    // Predicated region
    $region22: #{tpu_custom_call.1} parent=1 // pred_check
      _
    $region23: #{tpu_custom_call.1} parent=1 // pred_check_branch
      %77 = sbr.rel (0) target = $region25
    $region24: #{tpu_custom_call.1} parent=1 // pred_region
      %79 = vsyncadd [#allocation13], 0
      %s80 = sshll.u32 %s5, 4
      %s81 = int_to_ptr.hbm [resolvable:$true] %s80
      %s82 = sshll.u32 [#allocation12], 4
      %s83 = int_to_ptr.vmem [resolvable:$true] %s82
      %88 = dma.hbm_to_vmem [thread:$0]  %s81, 1024, %s83, [#allocation13], 64, 64, 4
    $region25: #{tpu_custom_call.1} parent=1 // pred_fallthru
      _
    // Predicated region
    $region26: #{tpu_custom_call.1} parent=1 // pred_check
      _
    $region27: #{tpu_custom_call.1} parent=1 // pred_check_branch
      %90 = sbr.rel (0) target = $region29
    $region28: #{tpu_custom_call.1} parent=1 // pred_region
      %92 = vsyncadd [#allocation13], 0
      %s94 = sshll.u32 %s6, 4
      %s95 = int_to_ptr.hbm [resolvable:$true] %s94
      %s96 = sshll.u32 [#allocation14], 4
      %s97 = int_to_ptr.vmem [resolvable:$true] %s96
      %99 = dma.hbm_to_vmem [thread:$0]  %s95, 16, %s97, [#allocation13]
    $region29: #{tpu_custom_call.1} parent=1 // pred_fallthru
      _
    // Predicated region
    $region30: #{tpu_custom_call.1} parent=1 // pred_check
      _
    $region31: #{tpu_custom_call.1} parent=1 // pred_check_branch
      %101 = sbr.rel (0) target = $region33
    $region32: #{tpu_custom_call.1} parent=1 // pred_region
      %103 = dma.done [#allocation4], 6272
    $region33: #{tpu_custom_call.1} parent=1 // pred_fallthru
      _
    // Predicated region
    $region34: #{tpu_custom_call.1} parent=1 // pred_check
      _
    $region35: #{tpu_custom_call.1} parent=1 // pred_check_branch
      %105 = sbr.rel (0) target = $region37
    $region36: #{tpu_custom_call.1} parent=1 // pred_region
      %107 = dma.done [#allocation7], 100352
    $region37: #{tpu_custom_call.1} parent=1 // pred_fallthru
      _
    // Predicated region
    $region38: #{tpu_custom_call.1} parent=1 // pred_check
      _
    $region39: #{tpu_custom_call.1} parent=1 // pred_check_branch
      %109 = sbr.rel (0) target = $region41
    $region40: #{tpu_custom_call.1} parent=1 // pred_region
      %111 = dma.done [#allocation7], 32
    $region41: #{tpu_custom_call.1} parent=1 // pred_fallthru
      _
    // Predicated region
    $region42: #{tpu_custom_call.1} parent=1 // pred_check
      _
    $region43: #{tpu_custom_call.1} parent=1 // pred_check_branch
      %113 = sbr.rel (0) target = $region45
    $region44: #{tpu_custom_call.1} parent=1 // pred_region
      %115 = dma.done [#allocation10], 2048
    $region45: #{tpu_custom_call.1} parent=1 // pred_fallthru
      _
    // Predicated region
    $region46: #{tpu_custom_call.1} parent=1 // pred_check
      _
    $region47: #{tpu_custom_call.1} parent=1 // pred_check_branch
      %117 = sbr.rel (0) target = $region49
    $region48: #{tpu_custom_call.1} parent=1 // pred_region
      %119 = dma.done [#allocation10], 16
    $region49: #{tpu_custom_call.1} parent=1 // pred_fallthru
      _
    // Predicated region
    $region50: #{tpu_custom_call.1} parent=1 // pred_check
      _
    $region51: #{tpu_custom_call.1} parent=1 // pred_check_branch
      %121 = sbr.rel (0) target = $region53
    $region52: #{tpu_custom_call.1} parent=1 // pred_region
      %123 = dma.done [#allocation13], 1024
    $region53: #{tpu_custom_call.1} parent=1 // pred_fallthru
      _
    // Predicated region
    $region54: #{tpu_custom_call.1} parent=1 // pred_check
      _
    $region55: #{tpu_custom_call.1} parent=1 // pred_check_branch
      %125 = sbr.rel (0) target = $region57
    $region56: #{tpu_custom_call.1} parent=1 // pred_region
      %127 = dma.done [#allocation13], 16
    $region57: #{tpu_custom_call.1} parent=1 // pred_fallthru
      _
    %p128 = scmp.eq.s32.totalorder 0, 0
    // Predicated region
    $region58: #{tpu_custom_call.1} parent=1 // pred_check
      %p129 = pneg %p128
    $region59: #{tpu_custom_call.1} parent=1 // pred_check_branch
      %131 = sbr.rel (%p129) target = $region61
    $region60: #{tpu_custom_call.1} parent=1 // pred_region
      %v132 = vld [vmem:[#allocation8] sm:$0x3]
      %v134 = vperm.slane %v132, 0
      %v135 = vperm.slane %v132, 1
      %138 = vst [vmem:[#allocation2] sm:$0xff] %v134
      %139 = vst [vmem:[#allocation2 + $0x8] sm:$0xff] %v135
    $region61: #{tpu_custom_call.1} parent=1 // pred_fallthru
      _
    %v140 = vld [vmem:[#allocation2] sm:$0xff]
    %v141 = vld [vmem:[#allocation2 + $0x8] sm:$0xff]
    %v142 = vld [vmem:[#allocation3] sm:$0xff]
    %v143 = vld [vmem:[#allocation3 + $0x8] sm:$0xff]
    %v144 = vld [vmem:[#allocation3 + $0x10] sm:$0xff]
    %v145 = vld [vmem:[#allocation3 + $0x18] sm:$0xff]
    %v146 = vld [vmem:[#allocation3 + $0x20] sm:$0xff]
    %v147 = vld [vmem:[#allocation3 + $0x28] sm:$0xff]
    %v148 = vld [vmem:[#allocation3 + $0x30] sm:$0xff]
    %v149 = vld [vmem:[#allocation3 + $0x38] sm:$0xff]
    %v150 = vld [vmem:[#allocation3 + $0x40] sm:$0xff]
    %v151 = vld [vmem:[#allocation3 + $0x48] sm:$0xff]
    %v152 = vld [vmem:[#allocation3 + $0x50] sm:$0xff]
    %v153 = vld [vmem:[#allocation3 + $0x58] sm:$0xff]
    %v154 = vld [vmem:[#allocation3 + $0x60] sm:$0xff]
    %v155 = vld [vmem:[#allocation3 + $0x68] sm:$0xff]
    %v156 = vld [vmem:[#allocation3 + $0x70] sm:$0xff]
    %v157 = vld [vmem:[#allocation3 + $0x78] sm:$0xff]
    %v158 = vld [vmem:[#allocation3 + $0x80] sm:$0xff]
    %v159 = vld [vmem:[#allocation3 + $0x88] sm:$0xff]
    %v160 = vld [vmem:[#allocation3 + $0x90] sm:$0xff]
    %v161 = vld [vmem:[#allocation3 + $0x98] sm:$0xff]
    %v162 = vld [vmem:[#allocation3 + $0xa0] sm:$0xff]
    %v163 = vld [vmem:[#allocation3 + $0xa8] sm:$0xff]
    %v164 = vld [vmem:[#allocation3 + $0xb0] sm:$0xff]
    %v165 = vld [vmem:[#allocation3 + $0xb8] sm:$0xff]
    %v166 = vld [vmem:[#allocation3 + $0xc0] sm:$0xff]
    %v167 = vld [vmem:[#allocation3 + $0xc8] sm:$0xff]
    %v168 = vld [vmem:[#allocation3 + $0xd0] sm:$0xff]
    %v169 = vld [vmem:[#allocation3 + $0xd8] sm:$0xff]
    %v170 = vld [vmem:[#allocation3 + $0xe0] sm:$0xff]
    %v171 = vld [vmem:[#allocation3 + $0xe8] sm:$0xff]
    %v172 = vld [vmem:[#allocation3 + $0xf0] sm:$0xff]
    %v173 = vld [vmem:[#allocation3 + $0xf8] sm:$0xff]
    %v174 = vld [vmem:[#allocation3 + $0x100] sm:$0xff]
    %v175 = vld [vmem:[#allocation3 + $0x108] sm:$0xff]
    %v176 = vld [vmem:[#allocation3 + $0x110] sm:$0xff]
    %v177 = vld [vmem:[#allocation3 + $0x118] sm:$0xff]
    %v178 = vld [vmem:[#allocation3 + $0x120] sm:$0xff]
    %v179 = vld [vmem:[#allocation3 + $0x128] sm:$0xff]
    %v180 = vld [vmem:[#allocation3 + $0x130] sm:$0xff]
    %v181 = vld [vmem:[#allocation3 + $0x138] sm:$0xff]
    %v182 = vld [vmem:[#allocation3 + $0x140] sm:$0xff]
    %v183 = vld [vmem:[#allocation3 + $0x148] sm:$0xff]
    %v184 = vld [vmem:[#allocation3 + $0x150] sm:$0xff]
    %v185 = vld [vmem:[#allocation3 + $0x158] sm:$0xff]
    %v186 = vld [vmem:[#allocation3 + $0x160] sm:$0xff]
    %v187 = vld [vmem:[#allocation3 + $0x168] sm:$0xff]
    %v188 = vld [vmem:[#allocation3 + $0x170] sm:$0xff]
    %v189 = vld [vmem:[#allocation3 + $0x178] sm:$0xff]
    %v190 = vld [vmem:[#allocation3 + $0x180] sm:$0xff]
    %v191 = vpack.c.bf16 %v142, %v142
    %v192 = vpack.c.bf16 %v143, %v143
    %v193 = vpack.c.bf16 %v144, %v144
    %v194 = vpack.c.bf16 %v145, %v145
    %v195 = vpack.c.bf16 %v146, %v146
    %v196 = vpack.c.bf16 %v147, %v147
    %v197 = vpack.c.bf16 %v148, %v148
    %v198 = vpack.c.bf16 %v149, %v149
    %v199 = vpack.c.bf16 %v150, %v150
    %v200 = vpack.c.bf16 %v151, %v151
    %v201 = vpack.c.bf16 %v152, %v152
    %v202 = vpack.c.bf16 %v153, %v153
    %v203 = vpack.c.bf16 %v154, %v154
    %v204 = vpack.c.bf16 %v155, %v155
    %v205 = vpack.c.bf16 %v156, %v156
    %v206 = vpack.c.bf16 %v157, %v157
    %v207 = vpack.c.bf16 %v158, %v158
    %v208 = vpack.c.bf16 %v159, %v159
    %v209 = vpack.c.bf16 %v160, %v160
    %v210 = vpack.c.bf16 %v161, %v161
    %v211 = vpack.c.bf16 %v162, %v162
    %v212 = vpack.c.bf16 %v163, %v163
    %v213 = vpack.c.bf16 %v164, %v164
    %v214 = vpack.c.bf16 %v165, %v165
    %v215 = vpack.c.bf16 %v166, %v166
    %v216 = vpack.c.bf16 %v167, %v167
    %v217 = vpack.c.bf16 %v168, %v168
    %v218 = vpack.c.bf16 %v169, %v169
    %v219 = vpack.c.bf16 %v170, %v170
    %v220 = vpack.c.bf16 %v171, %v171
    %v221 = vpack.c.bf16 %v172, %v172
    %v222 = vpack.c.bf16 %v173, %v173
    %v223 = vpack.c.bf16 %v174, %v174
    %v224 = vpack.c.bf16 %v175, %v175
    %v225 = vpack.c.bf16 %v176, %v176
    %v226 = vpack.c.bf16 %v177, %v177
    %v227 = vpack.c.bf16 %v178, %v178
    %v228 = vpack.c.bf16 %v179, %v179
    %v229 = vpack.c.bf16 %v180, %v180
    %v230 = vpack.c.bf16 %v181, %v181
    %v231 = vpack.c.bf16 %v182, %v182
    %v232 = vpack.c.bf16 %v183, %v183
    %v233 = vpack.c.bf16 %v184, %v184
    %v234 = vpack.c.bf16 %v185, %v185
    %v235 = vpack.c.bf16 %v186, %v186
    %v236 = vpack.c.bf16 %v187, %v187
    %v237 = vpack.c.bf16 %v188, %v188
    %v238 = vpack.c.bf16 %v189, %v189
    %v239 = vpack.c.bf16 %v190, %v190
    %v240 = vld [vmem:[#allocation6] sm:$0xff]
    %v241 = vld [vmem:[#allocation6 + $0x8] sm:$0xff]
    %v242 = vld [vmem:[#allocation6 + $0x10] sm:$0xff]
    %v243 = vld [vmem:[#allocation6 + $0x18] sm:$0xff]
    %v244 = vld [vmem:[#allocation6 + $0x20] sm:$0xff]
    %v245 = vld [vmem:[#allocation6 + $0x28] sm:$0xff]
    %v246 = vld [vmem:[#allocation6 + $0x30] sm:$0xff]
    %v247 = vld [vmem:[#allocation6 + $0x38] sm:$0xff]
    %v248 = vld [vmem:[#allocation6 + $0x40] sm:$0xff]
    %v249 = vld [vmem:[#allocation6 + $0x48] sm:$0xff]
    %v250 = vld [vmem:[#allocation6 + $0x50] sm:$0xff]
    %v251 = vld [vmem:[#allocation6 + $0x58] sm:$0xff]
    %v252 = vld [vmem:[#allocation6 + $0x60] sm:$0xff]
    %v253 = vld [vmem:[#allocation6 + $0x68] sm:$0xff]
    %v254 = vld [vmem:[#allocation6 + $0x70] sm:$0xff]
    %v255 = vld [vmem:[#allocation6 + $0x78] sm:$0xff]
    %v256 = vld [vmem:[#allocation6 + $0x80] sm:$0xff]
    %v257 = vld [vmem:[#allocation6 + $0x88] sm:$0xff]
    %v258 = vld [vmem:[#allocation6 + $0x90] sm:$0xff]
    %v259 = vld [vmem:[#allocation6 + $0x98] sm:$0xff]
    %v260 = vld [vmem:[#allocation6 + $0xa0] sm:$0xff]
    %v261 = vld [vmem:[#allocation6 + $0xa8] sm:$0xff]
    %v262 = vld [vmem:[#allocation6 + $0xb0] sm:$0xff]
    %v263 = vld [vmem:[#allocation6 + $0xb8] sm:$0xff]
    %v264 = vld [vmem:[#allocation6 + $0xc0] sm:$0xff]
    %v265 = vld [vmem:[#allocation6 + $0xc8] sm:$0xff]
    %v266 = vld [vmem:[#allocation6 + $0xd0] sm:$0xff]
    %v267 = vld [vmem:[#allocation6 + $0xd8] sm:$0xff]
    %v268 = vld [vmem:[#allocation6 + $0xe0] sm:$0xff]
    %v269 = vld [vmem:[#allocation6 + $0xe8] sm:$0xff]
    %v270 = vld [vmem:[#allocation6 + $0xf0] sm:$0xff]
    %v271 = vld [vmem:[#allocation6 + $0xf8] sm:$0xff]
    %v272 = vld [vmem:[#allocation6 + $0x100] sm:$0xff]
    %v273 = vld [vmem:[#allocation6 + $0x108] sm:$0xff]
    %v274 = vld [vmem:[#allocation6 + $0x110] sm:$0xff]
    %v275 = vld [vmem:[#allocation6 + $0x118] sm:$0xff]
    %v276 = vld [vmem:[#allocation6 + $0x120] sm:$0xff]
    %v277 = vld [vmem:[#allocation6 + $0x128] sm:$0xff]
    %v278 = vld [vmem:[#allocation6 + $0x130] sm:$0xff]
    %v279 = vld [vmem:[#allocation6 + $0x138] sm:$0xff]
    %v280 = vld [vmem:[#allocation6 + $0x140] sm:$0xff]
    %v281 = vld [vmem:[#allocation6 + $0x148] sm:$0xff]
    %v282 = vld [vmem:[#allocation6 + $0x150] sm:$0xff]
    %v283 = vld [vmem:[#allocation6 + $0x158] sm:$0xff]
    %v284 = vld [vmem:[#allocation6 + $0x160] sm:$0xff]
    %v285 = vld [vmem:[#allocation6 + $0x168] sm:$0xff]
    %v286 = vld [vmem:[#allocation6 + $0x170] sm:$0xff]
    %v287 = vld [vmem:[#allocation6 + $0x178] sm:$0xff]
    %v288 = vld [vmem:[#allocation6 + $0x180] sm:$0xff]
    %v289 = vld [vmem:[#allocation6 + $0x188] sm:$0xff]
    %v290 = vld [vmem:[#allocation6 + $0x190] sm:$0xff]
    %v291 = vld [vmem:[#allocation6 + $0x198] sm:$0xff]
    %v292 = vld [vmem:[#allocation6 + $0x1a0] sm:$0xff]
    %v293 = vld [vmem:[#allocation6 + $0x1a8] sm:$0xff]
    %v294 = vld [vmem:[#allocation6 + $0x1b0] sm:$0xff]
    %v295 = vld [vmem:[#allocation6 + $0x1b8] sm:$0xff]
    %v296 = vld [vmem:[#allocation6 + $0x1c0] sm:$0xff]
    %v297 = vld [vmem:[#allocation6 + $0x1c8] sm:$0xff]
    %v298 = vld [vmem:[#allocation6 + $0x1d0] sm:$0xff]
    %v299 = vld [vmem:[#allocation6 + $0x1d8] sm:$0xff]
    %v300 = vld [vmem:[#allocation6 + $0x1e0] sm:$0xff]
    %v301 = vld [vmem:[#allocation6 + $0x1e8] sm:$0xff]
    %v302 = vld [vmem:[#allocation6 + $0x1f0] sm:$0xff]
    %v303 = vld [vmem:[#allocation6 + $0x1f8] sm:$0xff]
    %v304 = vld [vmem:[#allocation6 + $0x200] sm:$0xff]
    %v305 = vld [vmem:[#allocation6 + $0x208] sm:$0xff]
    %v306 = vld [vmem:[#allocation6 + $0x210] sm:$0xff]
    %v307 = vld [vmem:[#allocation6 + $0x218] sm:$0xff]
    %v308 = vld [vmem:[#allocation6 + $0x220] sm:$0xff]
    %v309 = vld [vmem:[#allocation6 + $0x228] sm:$0xff]
    %v310 = vld [vmem:[#allocation6 + $0x230] sm:$0xff]
    %v311 = vld [vmem:[#allocation6 + $0x238] sm:$0xff]
    %v312 = vld [vmem:[#allocation6 + $0x240] sm:$0xff]
    %v313 = vld [vmem:[#allocation6 + $0x248] sm:$0xff]
    %v314 = vld [vmem:[#allocation6 + $0x250] sm:$0xff]
    %v315 = vld [vmem:[#allocation6 + $0x258] sm:$0xff]
    %v316 = vld [vmem:[#allocation6 + $0x260] sm:$0xff]
    %v317 = vld [vmem:[#allocation6 + $0x268] sm:$0xff]
    %v318 = vld [vmem:[#allocation6 + $0x270] sm:$0xff]
    %v319 = vld [vmem:[#allocation6 + $0x278] sm:$0xff]
    %v320 = vld [vmem:[#allocation6 + $0x280] sm:$0xff]
    %v321 = vld [vmem:[#allocation6 + $0x288] sm:$0xff]
    %v322 = vld [vmem:[#allocation6 + $0x290] sm:$0xff]
    %v323 = vld [vmem:[#allocation6 + $0x298] sm:$0xff]
    %v324 = vld [vmem:[#allocation6 + $0x2a0] sm:$0xff]
    %v325 = vld [vmem:[#allocation6 + $0x2a8] sm:$0xff]
    %v326 = vld [vmem:[#allocation6 + $0x2b0] sm:$0xff]
    %v327 = vld [vmem:[#allocation6 + $0x2b8] sm:$0xff]
    %v328 = vld [vmem:[#allocation6 + $0x2c0] sm:$0xff]
    %v329 = vld [vmem:[#allocation6 + $0x2c8] sm:$0xff]
    %v330 = vld [vmem:[#allocation6 + $0x2d0] sm:$0xff]
    %v331 = vld [vmem:[#allocation6 + $0x2d8] sm:$0xff]
    %v332 = vld [vmem:[#allocation6 + $0x2e0] sm:$0xff]
    %v333 = vld [vmem:[#allocation6 + $0x2e8] sm:$0xff]
    %v334 = vld [vmem:[#allocation6 + $0x2f0] sm:$0xff]
    %v335 = vld [vmem:[#allocation6 + $0x2f8] sm:$0xff]
    %v336 = vld [vmem:[#allocation6 + $0x300] sm:$0xff]
    %v337 = vld [vmem:[#allocation6 + $0x308] sm:$0xff]
    %v338 = vld [vmem:[#allocation6 + $0x310] sm:$0xff]
    %v339 = vld [vmem:[#allocation6 + $0x318] sm:$0xff]
    %v340 = vld [vmem:[#allocation6 + $0x320] sm:$0xff]
    %v341 = vld [vmem:[#allocation6 + $0x328] sm:$0xff]
    %v342 = vld [vmem:[#allocation6 + $0x330] sm:$0xff]
    %v343 = vld [vmem:[#allocation6 + $0x338] sm:$0xff]
    %v344 = vld [vmem:[#allocation6 + $0x340] sm:$0xff]
    %v345 = vld [vmem:[#allocation6 + $0x348] sm:$0xff]
    %v346 = vld [vmem:[#allocation6 + $0x350] sm:$0xff]
    %v347 = vld [vmem:[#allocation6 + $0x358] sm:$0xff]
    %v348 = vld [vmem:[#allocation6 + $0x360] sm:$0xff]
    %v349 = vld [vmem:[#allocation6 + $0x368] sm:$0xff]
    %v350 = vld [vmem:[#allocation6 + $0x370] sm:$0xff]
    %v351 = vld [vmem:[#allocation6 + $0x378] sm:$0xff]
    %v352 = vld [vmem:[#allocation6 + $0x380] sm:$0xff]
    %v353 = vld [vmem:[#allocation6 + $0x388] sm:$0xff]
    %v354 = vld [vmem:[#allocation6 + $0x390] sm:$0xff]
    %v355 = vld [vmem:[#allocation6 + $0x398] sm:$0xff]
    %v356 = vld [vmem:[#allocation6 + $0x3a0] sm:$0xff]
    %v357 = vld [vmem:[#allocation6 + $0x3a8] sm:$0xff]
    %v358 = vld [vmem:[#allocation6 + $0x3b0] sm:$0xff]
    %v359 = vld [vmem:[#allocation6 + $0x3b8] sm:$0xff]
    %v360 = vld [vmem:[#allocation6 + $0x3c0] sm:$0xff]
    %v361 = vld [vmem:[#allocation6 + $0x3c8] sm:$0xff]
    %v362 = vld [vmem:[#allocation6 + $0x3d0] sm:$0xff]
    %v363 = vld [vmem:[#allocation6 + $0x3d8] sm:$0xff]
    %v364 = vld [vmem:[#allocation6 + $0x3e0] sm:$0xff]
    %v365 = vld [vmem:[#allocation6 + $0x3e8] sm:$0xff]
    %v366 = vld [vmem:[#allocation6 + $0x3f0] sm:$0xff]
    %v367 = vld [vmem:[#allocation6 + $0x3f8] sm:$0xff]
    %v368 = vld [vmem:[#allocation6 + $0x400] sm:$0xff]
    %v369 = vld [vmem:[#allocation6 + $0x408] sm:$0xff]
    %v370 = vld [vmem:[#allocation6 + $0x410] sm:$0xff]
    %v371 = vld [vmem:[#allocation6 + $0x418] sm:$0xff]
    %v372 = vld [vmem:[#allocation6 + $0x420] sm:$0xff]
    %v373 = vld [vmem:[#allocation6 + $0x428] sm:$0xff]
    %v374 = vld [vmem:[#allocation6 + $0x430] sm:$0xff]
    %v375 = vld [vmem:[#allocation6 + $0x438] sm:$0xff]
    %v376 = vld [vmem:[#allocation6 + $0x440] sm:$0xff]
    %v377 = vld [vmem:[#allocation6 + $0x448] sm:$0xff]
    %v378 = vld [vmem:[#allocation6 + $0x450] sm:$0xff]
    %v379 = vld [vmem:[#allocation6 + $0x458] sm:$0xff]
    %v380 = vld [vmem:[#allocation6 + $0x460] sm:$0xff]
    %v381 = vld [vmem:[#allocation6 + $0x468] sm:$0xff]
    %v382 = vld [vmem:[#allocation6 + $0x470] sm:$0xff]
    %v383 = vld [vmem:[#allocation6 + $0x478] sm:$0xff]
    %v384 = vld [vmem:[#allocation6 + $0x480] sm:$0xff]
    %v385 = vld [vmem:[#allocation6 + $0x488] sm:$0xff]
    %v386 = vld [vmem:[#allocation6 + $0x490] sm:$0xff]
    %v387 = vld [vmem:[#allocation6 + $0x498] sm:$0xff]
    %v388 = vld [vmem:[#allocation6 + $0x4a0] sm:$0xff]
    %v389 = vld [vmem:[#allocation6 + $0x4a8] sm:$0xff]
    %v390 = vld [vmem:[#allocation6 + $0x4b0] sm:$0xff]
    %v391 = vld [vmem:[#allocation6 + $0x4b8] sm:$0xff]
    %v392 = vld [vmem:[#allocation6 + $0x4c0] sm:$0xff]
    %v393 = vld [vmem:[#allocation6 + $0x4c8] sm:$0xff]
    %v394 = vld [vmem:[#allocation6 + $0x4d0] sm:$0xff]
    %v395 = vld [vmem:[#allocation6 + $0x4d8] sm:$0xff]
    %v396 = vld [vmem:[#allocation6 + $0x4e0] sm:$0xff]
    %v397 = vld [vmem:[#allocation6 + $0x4e8] sm:$0xff]
    %v398 = vld [vmem:[#allocation6 + $0x4f0] sm:$0xff]
    %v399 = vld [vmem:[#allocation6 + $0x4f8] sm:$0xff]
    %v400 = vld [vmem:[#allocation6 + $0x500] sm:$0xff]
    %v401 = vld [vmem:[#allocation6 + $0x508] sm:$0xff]
    %v402 = vld [vmem:[#allocation6 + $0x510] sm:$0xff]
    %v403 = vld [vmem:[#allocation6 + $0x518] sm:$0xff]
    %v404 = vld [vmem:[#allocation6 + $0x520] sm:$0xff]
    %v405 = vld [vmem:[#allocation6 + $0x528] sm:$0xff]
    %v406 = vld [vmem:[#allocation6 + $0x530] sm:$0xff]
    %v407 = vld [vmem:[#allocation6 + $0x538] sm:$0xff]
    %v408 = vld [vmem:[#allocation6 + $0x540] sm:$0xff]
    %v409 = vld [vmem:[#allocation6 + $0x548] sm:$0xff]
    %v410 = vld [vmem:[#allocation6 + $0x550] sm:$0xff]
    %v411 = vld [vmem:[#allocation6 + $0x558] sm:$0xff]
    %v412 = vld [vmem:[#allocation6 + $0x560] sm:$0xff]
    %v413 = vld [vmem:[#allocation6 + $0x568] sm:$0xff]
    %v414 = vld [vmem:[#allocation6 + $0x570] sm:$0xff]
    %v415 = vld [vmem:[#allocation6 + $0x578] sm:$0xff]
    %v416 = vld [vmem:[#allocation6 + $0x580] sm:$0xff]
    %v417 = vld [vmem:[#allocation6 + $0x588] sm:$0xff]
    %v418 = vld [vmem:[#allocation6 + $0x590] sm:$0xff]
    %v419 = vld [vmem:[#allocation6 + $0x598] sm:$0xff]
    %v420 = vld [vmem:[#allocation6 + $0x5a0] sm:$0xff]
    %v421 = vld [vmem:[#allocation6 + $0x5a8] sm:$0xff]
    %v422 = vld [vmem:[#allocation6 + $0x5b0] sm:$0xff]
    %v423 = vld [vmem:[#allocation6 + $0x5b8] sm:$0xff]
    %v424 = vld [vmem:[#allocation6 + $0x5c0] sm:$0xff]
    %v425 = vld [vmem:[#allocation6 + $0x5c8] sm:$0xff]
    %v426 = vld [vmem:[#allocation6 + $0x5d0] sm:$0xff]
    %v427 = vld [vmem:[#allocation6 + $0x5d8] sm:$0xff]
    %v428 = vld [vmem:[#allocation6 + $0x5e0] sm:$0xff]
    %v429 = vld [vmem:[#allocation6 + $0x5e8] sm:$0xff]
    %v430 = vld [vmem:[#allocation6 + $0x5f0] sm:$0xff]
    %v431 = vld [vmem:[#allocation6 + $0x5f8] sm:$0xff]
    %v432 = vld [vmem:[#allocation6 + $0x600] sm:$0xff]
    %v433 = vld [vmem:[#allocation6 + $0x608] sm:$0xff]
    %v434 = vld [vmem:[#allocation6 + $0x610] sm:$0xff]
    %v435 = vld [vmem:[#allocation6 + $0x618] sm:$0xff]
    %v436 = vld [vmem:[#allocation6 + $0x620] sm:$0xff]
    %v437 = vld [vmem:[#allocation6 + $0x628] sm:$0xff]
    %v438 = vld [vmem:[#allocation6 + $0x630] sm:$0xff]
    %v439 = vld [vmem:[#allocation6 + $0x638] sm:$0xff]
    %v440 = vld [vmem:[#allocation6 + $0x640] sm:$0xff]
    %v441 = vld [vmem:[#allocation6 + $0x648] sm:$0xff]
    %v442 = vld [vmem:[#allocation6 + $0x650] sm:$0xff]
    %v443 = vld [vmem:[#allocation6 + $0x658] sm:$0xff]
    %v444 = vld [vmem:[#allocation6 + $0x660] sm:$0xff]
    %v445 = vld [vmem:[#allocation6 + $0x668] sm:$0xff]
    %v446 = vld [vmem:[#allocation6 + $0x670] sm:$0xff]
    %v447 = vld [vmem:[#allocation6 + $0x678] sm:$0xff]
    %v448 = vld [vmem:[#allocation6 + $0x680] sm:$0xff]
    %v449 = vld [vmem:[#allocation6 + $0x688] sm:$0xff]
    %v450 = vld [vmem:[#allocation6 + $0x690] sm:$0xff]
    %v451 = vld [vmem:[#allocation6 + $0x698] sm:$0xff]
    %v452 = vld [vmem:[#allocation6 + $0x6a0] sm:$0xff]
    %v453 = vld [vmem:[#allocation6 + $0x6a8] sm:$0xff]
    %v454 = vld [vmem:[#allocation6 + $0x6b0] sm:$0xff]
    %v455 = vld [vmem:[#allocation6 + $0x6b8] sm:$0xff]
    %v456 = vld [vmem:[#allocation6 + $0x6c0] sm:$0xff]
    %v457 = vld [vmem:[#allocation6 + $0x6c8] sm:$0xff]
    %v458 = vld [vmem:[#allocation6 + $0x6d0] sm:$0xff]
    %v459 = vld [vmem:[#allocation6 + $0x6d8] sm:$0xff]
    %v460 = vld [vmem:[#allocation6 + $0x6e0] sm:$0xff]
    %v461 = vld [vmem:[#allocation6 + $0x6e8] sm:$0xff]
    %v462 = vld [vmem:[#allocation6 + $0x6f0] sm:$0xff]
    %v463 = vld [vmem:[#allocation6 + $0x6f8] sm:$0xff]
    %v464 = vld [vmem:[#allocation6 + $0x700] sm:$0xff]
    %v465 = vld [vmem:[#allocation6 + $0x708] sm:$0xff]
    %v466 = vld [vmem:[#allocation6 + $0x710] sm:$0xff]
    %v467 = vld [vmem:[#allocation6 + $0x718] sm:$0xff]
    %v468 = vld [vmem:[#allocation6 + $0x720] sm:$0xff]
    %v469 = vld [vmem:[#allocation6 + $0x728] sm:$0xff]
    %v470 = vld [vmem:[#allocation6 + $0x730] sm:$0xff]
    %v471 = vld [vmem:[#allocation6 + $0x738] sm:$0xff]
    %v472 = vld [vmem:[#allocation6 + $0x740] sm:$0xff]
    %v473 = vld [vmem:[#allocation6 + $0x748] sm:$0xff]
    %v474 = vld [vmem:[#allocation6 + $0x750] sm:$0xff]
    %v475 = vld [vmem:[#allocation6 + $0x758] sm:$0xff]
    %v476 = vld [vmem:[#allocation6 + $0x760] sm:$0xff]
    %v477 = vld [vmem:[#allocation6 + $0x768] sm:$0xff]
    %v478 = vld [vmem:[#allocation6 + $0x770] sm:$0xff]
    %v479 = vld [vmem:[#allocation6 + $0x778] sm:$0xff]
    %v480 = vld [vmem:[#allocation6 + $0x780] sm:$0xff]
    %v481 = vld [vmem:[#allocation6 + $0x788] sm:$0xff]
    %v482 = vld [vmem:[#allocation6 + $0x790] sm:$0xff]
    %v483 = vld [vmem:[#allocation6 + $0x798] sm:$0xff]
    %v484 = vld [vmem:[#allocation6 + $0x7a0] sm:$0xff]
    %v485 = vld [vmem:[#allocation6 + $0x7a8] sm:$0xff]
    %v486 = vld [vmem:[#allocation6 + $0x7b0] sm:$0xff]
    %v487 = vld [vmem:[#allocation6 + $0x7b8] sm:$0xff]
    %v488 = vld [vmem:[#allocation6 + $0x7c0] sm:$0xff]
    %v489 = vld [vmem:[#allocation6 + $0x7c8] sm:$0xff]
    %v490 = vld [vmem:[#allocation6 + $0x7d0] sm:$0xff]
    %v491 = vld [vmem:[#allocation6 + $0x7d8] sm:$0xff]
    %v492 = vld [vmem:[#allocation6 + $0x7e0] sm:$0xff]
    %v493 = vld [vmem:[#allocation6 + $0x7e8] sm:$0xff]
    %v494 = vld [vmem:[#allocation6 + $0x7f0] sm:$0xff]
    %v495 = vld [vmem:[#allocation6 + $0x7f8] sm:$0xff]
    %v496 = vld [vmem:[#allocation6 + $0x800] sm:$0xff]
    %v497 = vld [vmem:[#allocation6 + $0x808] sm:$0xff]
    %v498 = vld [vmem:[#allocation6 + $0x810] sm:$0xff]
    %v499 = vld [vmem:[#allocation6 + $0x818] sm:$0xff]
    %v500 = vld [vmem:[#allocation6 + $0x820] sm:$0xff]
    %v501 = vld [vmem:[#allocation6 + $0x828] sm:$0xff]
    %v502 = vld [vmem:[#allocation6 + $0x830] sm:$0xff]
    %v503 = vld [vmem:[#allocation6 + $0x838] sm:$0xff]
    %v504 = vld [vmem:[#allocation6 + $0x840] sm:$0xff]
    %v505 = vld [vmem:[#allocation6 + $0x848] sm:$0xff]
    %v506 = vld [vmem:[#allocation6 + $0x850] sm:$0xff]
    %v507 = vld [vmem:[#allocation6 + $0x858] sm:$0xff]
    %v508 = vld [vmem:[#allocation6 + $0x860] sm:$0xff]
    %v509 = vld [vmem:[#allocation6 + $0x868] sm:$0xff]
    %v510 = vld [vmem:[#allocation6 + $0x870] sm:$0xff]
    %v511 = vld [vmem:[#allocation6 + $0x878] sm:$0xff]
    %v512 = vld [vmem:[#allocation6 + $0x880] sm:$0xff]
    %v513 = vld [vmem:[#allocation6 + $0x888] sm:$0xff]
    %v514 = vld [vmem:[#allocation6 + $0x890] sm:$0xff]
    %v515 = vld [vmem:[#allocation6 + $0x898] sm:$0xff]
    %v516 = vld [vmem:[#allocation6 + $0x8a0] sm:$0xff]
    %v517 = vld [vmem:[#allocation6 + $0x8a8] sm:$0xff]
    %v518 = vld [vmem:[#allocation6 + $0x8b0] sm:$0xff]
    %v519 = vld [vmem:[#allocation6 + $0x8b8] sm:$0xff]
    %v520 = vld [vmem:[#allocation6 + $0x8c0] sm:$0xff]
    %v521 = vld [vmem:[#allocation6 + $0x8c8] sm:$0xff]
    %v522 = vld [vmem:[#allocation6 + $0x8d0] sm:$0xff]
    %v523 = vld [vmem:[#allocation6 + $0x8d8] sm:$0xff]
    %v524 = vld [vmem:[#allocation6 + $0x8e0] sm:$0xff]
    %v525 = vld [vmem:[#allocation6 + $0x8e8] sm:$0xff]
    %v526 = vld [vmem:[#allocation6 + $0x8f0] sm:$0xff]
    %v527 = vld [vmem:[#allocation6 + $0x8f8] sm:$0xff]
    %v528 = vld [vmem:[#allocation6 + $0x900] sm:$0xff]
    %v529 = vld [vmem:[#allocation6 + $0x908] sm:$0xff]
    %v530 = vld [vmem:[#allocation6 + $0x910] sm:$0xff]
    %v531 = vld [vmem:[#allocation6 + $0x918] sm:$0xff]
    %v532 = vld [vmem:[#allocation6 + $0x920] sm:$0xff]
    %v533 = vld [vmem:[#allocation6 + $0x928] sm:$0xff]
    %v534 = vld [vmem:[#allocation6 + $0x930] sm:$0xff]
    %v535 = vld [vmem:[#allocation6 + $0x938] sm:$0xff]
    %v536 = vld [vmem:[#allocation6 + $0x940] sm:$0xff]
    %v537 = vld [vmem:[#allocation6 + $0x948] sm:$0xff]
    %v538 = vld [vmem:[#allocation6 + $0x950] sm:$0xff]
    %v539 = vld [vmem:[#allocation6 + $0x958] sm:$0xff]
    %v540 = vld [vmem:[#allocation6 + $0x960] sm:$0xff]
    %v541 = vld [vmem:[#allocation6 + $0x968] sm:$0xff]
    %v542 = vld [vmem:[#allocation6 + $0x970] sm:$0xff]
    %v543 = vld [vmem:[#allocation6 + $0x978] sm:$0xff]
    %v544 = vld [vmem:[#allocation6 + $0x980] sm:$0xff]
    %v545 = vld [vmem:[#allocation6 + $0x988] sm:$0xff]
    %v546 = vld [vmem:[#allocation6 + $0x990] sm:$0xff]
    %v547 = vld [vmem:[#allocation6 + $0x998] sm:$0xff]
    %v548 = vld [vmem:[#allocation6 + $0x9a0] sm:$0xff]
    %v549 = vld [vmem:[#allocation6 + $0x9a8] sm:$0xff]
    %v550 = vld [vmem:[#allocation6 + $0x9b0] sm:$0xff]
    %v551 = vld [vmem:[#allocation6 + $0x9b8] sm:$0xff]
    %v552 = vld [vmem:[#allocation6 + $0x9c0] sm:$0xff]
    %v553 = vld [vmem:[#allocation6 + $0x9c8] sm:$0xff]
    %v554 = vld [vmem:[#allocation6 + $0x9d0] sm:$0xff]
    %v555 = vld [vmem:[#allocation6 + $0x9d8] sm:$0xff]
    %v556 = vld [vmem:[#allocation6 + $0x9e0] sm:$0xff]
    %v557 = vld [vmem:[#allocation6 + $0x9e8] sm:$0xff]
    %v558 = vld [vmem:[#allocation6 + $0x9f0] sm:$0xff]
    %v559 = vld [vmem:[#allocation6 + $0x9f8] sm:$0xff]
    %v560 = vld [vmem:[#allocation6 + $0xa00] sm:$0xff]
    %v561 = vld [vmem:[#allocation6 + $0xa08] sm:$0xff]
    %v562 = vld [vmem:[#allocation6 + $0xa10] sm:$0xff]
    %v563 = vld [vmem:[#allocation6 + $0xa18] sm:$0xff]
    %v564 = vld [vmem:[#allocation6 + $0xa20] sm:$0xff]
    %v565 = vld [vmem:[#allocation6 + $0xa28] sm:$0xff]
    %v566 = vld [vmem:[#allocation6 + $0xa30] sm:$0xff]
    %v567 = vld [vmem:[#allocation6 + $0xa38] sm:$0xff]
    %v568 = vld [vmem:[#allocation6 + $0xa40] sm:$0xff]
    %v569 = vld [vmem:[#allocation6 + $0xa48] sm:$0xff]
    %v570 = vld [vmem:[#allocation6 + $0xa50] sm:$0xff]
    %v571 = vld [vmem:[#allocation6 + $0xa58] sm:$0xff]
    %v572 = vld [vmem:[#allocation6 + $0xa60] sm:$0xff]
    %v573 = vld [vmem:[#allocation6 + $0xa68] sm:$0xff]
    %v574 = vld [vmem:[#allocation6 + $0xa70] sm:$0xff]
    %v575 = vld [vmem:[#allocation6 + $0xa78] sm:$0xff]
    %v576 = vld [vmem:[#allocation6 + $0xa80] sm:$0xff]
    %v577 = vld [vmem:[#allocation6 + $0xa88] sm:$0xff]
    %v578 = vld [vmem:[#allocation6 + $0xa90] sm:$0xff]
    %v579 = vld [vmem:[#allocation6 + $0xa98] sm:$0xff]
    %v580 = vld [vmem:[#allocation6 + $0xaa0] sm:$0xff]
    %v581 = vld [vmem:[#allocation6 + $0xaa8] sm:$0xff]
    %v582 = vld [vmem:[#allocation6 + $0xab0] sm:$0xff]
    %v583 = vld [vmem:[#allocation6 + $0xab8] sm:$0xff]
    %v584 = vld [vmem:[#allocation6 + $0xac0] sm:$0xff]
    %v585 = vld [vmem:[#allocation6 + $0xac8] sm:$0xff]
    %v586 = vld [vmem:[#allocation6 + $0xad0] sm:$0xff]
    %v587 = vld [vmem:[#allocation6 + $0xad8] sm:$0xff]
    %v588 = vld [vmem:[#allocation6 + $0xae0] sm:$0xff]
    %v589 = vld [vmem:[#allocation6 + $0xae8] sm:$0xff]
    %v590 = vld [vmem:[#allocation6 + $0xaf0] sm:$0xff]
    %v591 = vld [vmem:[#allocation6 + $0xaf8] sm:$0xff]
    %v592 = vld [vmem:[#allocation6 + $0xb00] sm:$0xff]
    %v593 = vld [vmem:[#allocation6 + $0xb08] sm:$0xff]
    %v594 = vld [vmem:[#allocation6 + $0xb10] sm:$0xff]
    %v595 = vld [vmem:[#allocation6 + $0xb18] sm:$0xff]
    %v596 = vld [vmem:[#allocation6 + $0xb20] sm:$0xff]
    %v597 = vld [vmem:[#allocation6 + $0xb28] sm:$0xff]
    %v598 = vld [vmem:[#allocation6 + $0xb30] sm:$0xff]
    %v599 = vld [vmem:[#allocation6 + $0xb38] sm:$0xff]
    %v600 = vld [vmem:[#allocation6 + $0xb40] sm:$0xff]
    %v601 = vld [vmem:[#allocation6 + $0xb48] sm:$0xff]
    %v602 = vld [vmem:[#allocation6 + $0xb50] sm:$0xff]
    %v603 = vld [vmem:[#allocation6 + $0xb58] sm:$0xff]
    %v604 = vld [vmem:[#allocation6 + $0xb60] sm:$0xff]
    %v605 = vld [vmem:[#allocation6 + $0xb68] sm:$0xff]
    %v606 = vld [vmem:[#allocation6 + $0xb70] sm:$0xff]
    %v607 = vld [vmem:[#allocation6 + $0xb78] sm:$0xff]
    %v608 = vld [vmem:[#allocation6 + $0xb80] sm:$0xff]
    %v609 = vld [vmem:[#allocation6 + $0xb88] sm:$0xff]
    %v610 = vld [vmem:[#allocation6 + $0xb90] sm:$0xff]
    %v611 = vld [vmem:[#allocation6 + $0xb98] sm:$0xff]
    %v612 = vld [vmem:[#allocation6 + $0xba0] sm:$0xff]
    %v613 = vld [vmem:[#allocation6 + $0xba8] sm:$0xff]
    %v614 = vld [vmem:[#allocation6 + $0xbb0] sm:$0xff]
    %v615 = vld [vmem:[#allocation6 + $0xbb8] sm:$0xff]
    %v616 = vld [vmem:[#allocation6 + $0xbc0] sm:$0xff]
    %v617 = vld [vmem:[#allocation6 + $0xbc8] sm:$0xff]
    %v618 = vld [vmem:[#allocation6 + $0xbd0] sm:$0xff]
    %v619 = vld [vmem:[#allocation6 + $0xbd8] sm:$0xff]
    %v620 = vld [vmem:[#allocation6 + $0xbe0] sm:$0xff]
    %v621 = vld [vmem:[#allocation6 + $0xbe8] sm:$0xff]
    %v622 = vld [vmem:[#allocation6 + $0xbf0] sm:$0xff]
    %v623 = vld [vmem:[#allocation6 + $0xbf8] sm:$0xff]
    %v624 = vld [vmem:[#allocation6 + $0xc00] sm:$0xff]
    %v625 = vld [vmem:[#allocation6 + $0xc08] sm:$0xff]
    %v626 = vld [vmem:[#allocation6 + $0xc10] sm:$0xff]
    %v627 = vld [vmem:[#allocation6 + $0xc18] sm:$0xff]
    %v628 = vld [vmem:[#allocation6 + $0xc20] sm:$0xff]
    %v629 = vld [vmem:[#allocation6 + $0xc28] sm:$0xff]
    %v630 = vld [vmem:[#allocation6 + $0xc30] sm:$0xff]
    %v631 = vld [vmem:[#allocation6 + $0xc38] sm:$0xff]
    %v632 = vld [vmem:[#allocation6 + $0xc40] sm:$0xff]
    %v633 = vld [vmem:[#allocation6 + $0xc48] sm:$0xff]
    %v634 = vld [vmem:[#allocation6 + $0xc50] sm:$0xff]
    %v635 = vld [vmem:[#allocation6 + $0xc58] sm:$0xff]
    %v636 = vld [vmem:[#allocation6 + $0xc60] sm:$0xff]
    %v637 = vld [vmem:[#allocation6 + $0xc68] sm:$0xff]
    %v638 = vld [vmem:[#allocation6 + $0xc70] sm:$0xff]
    %v639 = vld [vmem:[#allocation6 + $0xc78] sm:$0xff]
    %v640 = vld [vmem:[#allocation6 + $0xc80] sm:$0xff]
    %v641 = vld [vmem:[#allocation6 + $0xc88] sm:$0xff]
    %v642 = vld [vmem:[#allocation6 + $0xc90] sm:$0xff]
    %v643 = vld [vmem:[#allocation6 + $0xc98] sm:$0xff]
    %v644 = vld [vmem:[#allocation6 + $0xca0] sm:$0xff]
    %v645 = vld [vmem:[#allocation6 + $0xca8] sm:$0xff]
    %v646 = vld [vmem:[#allocation6 + $0xcb0] sm:$0xff]
    %v647 = vld [vmem:[#allocation6 + $0xcb8] sm:$0xff]
    %v648 = vld [vmem:[#allocation6 + $0xcc0] sm:$0xff]
    %v649 = vld [vmem:[#allocation6 + $0xcc8] sm:$0xff]
    %v650 = vld [vmem:[#allocation6 + $0xcd0] sm:$0xff]
    %v651 = vld [vmem:[#allocation6 + $0xcd8] sm:$0xff]
    %v652 = vld [vmem:[#allocation6 + $0xce0] sm:$0xff]
    %v653 = vld [vmem:[#allocation6 + $0xce8] sm:$0xff]
    %v654 = vld [vmem:[#allocation6 + $0xcf0] sm:$0xff]
    %v655 = vld [vmem:[#allocation6 + $0xcf8] sm:$0xff]
    %v656 = vld [vmem:[#allocation6 + $0xd00] sm:$0xff]
    %v657 = vld [vmem:[#allocation6 + $0xd08] sm:$0xff]
    %v658 = vld [vmem:[#allocation6 + $0xd10] sm:$0xff]
    %v659 = vld [vmem:[#allocation6 + $0xd18] sm:$0xff]
    %v660 = vld [vmem:[#allocation6 + $0xd20] sm:$0xff]
    %v661 = vld [vmem:[#allocation6 + $0xd28] sm:$0xff]
    %v662 = vld [vmem:[#allocation6 + $0xd30] sm:$0xff]
    %v663 = vld [vmem:[#allocation6 + $0xd38] sm:$0xff]
    %v664 = vld [vmem:[#allocation6 + $0xd40] sm:$0xff]
    %v665 = vld [vmem:[#allocation6 + $0xd48] sm:$0xff]
    %v666 = vld [vmem:[#allocation6 + $0xd50] sm:$0xff]
    %v667 = vld [vmem:[#allocation6 + $0xd58] sm:$0xff]
    %v668 = vld [vmem:[#allocation6 + $0xd60] sm:$0xff]
    %v669 = vld [vmem:[#allocation6 + $0xd68] sm:$0xff]
    %v670 = vld [vmem:[#allocation6 + $0xd70] sm:$0xff]
    %v671 = vld [vmem:[#allocation6 + $0xd78] sm:$0xff]
    %v672 = vld [vmem:[#allocation6 + $0xd80] sm:$0xff]
    %v673 = vld [vmem:[#allocation6 + $0xd88] sm:$0xff]
    %v674 = vld [vmem:[#allocation6 + $0xd90] sm:$0xff]
    %v675 = vld [vmem:[#allocation6 + $0xd98] sm:$0xff]
    %v676 = vld [vmem:[#allocation6 + $0xda0] sm:$0xff]
    %v677 = vld [vmem:[#allocation6 + $0xda8] sm:$0xff]
    %v678 = vld [vmem:[#allocation6 + $0xdb0] sm:$0xff]
    %v679 = vld [vmem:[#allocation6 + $0xdb8] sm:$0xff]
    %v680 = vld [vmem:[#allocation6 + $0xdc0] sm:$0xff]
    %v681 = vld [vmem:[#allocation6 + $0xdc8] sm:$0xff]
    %v682 = vld [vmem:[#allocation6 + $0xdd0] sm:$0xff]
    %v683 = vld [vmem:[#allocation6 + $0xdd8] sm:$0xff]
    %v684 = vld [vmem:[#allocation6 + $0xde0] sm:$0xff]
    %v685 = vld [vmem:[#allocation6 + $0xde8] sm:$0xff]
    %v686 = vld [vmem:[#allocation6 + $0xdf0] sm:$0xff]
    %v687 = vld [vmem:[#allocation6 + $0xdf8] sm:$0xff]
    %v688 = vld [vmem:[#allocation6 + $0xe00] sm:$0xff]
    %v689 = vld [vmem:[#allocation6 + $0xe08] sm:$0xff]
    %v690 = vld [vmem:[#allocation6 + $0xe10] sm:$0xff]
    %v691 = vld [vmem:[#allocation6 + $0xe18] sm:$0xff]
    %v692 = vld [vmem:[#allocation6 + $0xe20] sm:$0xff]
    %v693 = vld [vmem:[#allocation6 + $0xe28] sm:$0xff]
    %v694 = vld [vmem:[#allocation6 + $0xe30] sm:$0xff]
    %v695 = vld [vmem:[#allocation6 + $0xe38] sm:$0xff]
    %v696 = vld [vmem:[#allocation6 + $0xe40] sm:$0xff]
    %v697 = vld [vmem:[#allocation6 + $0xe48] sm:$0xff]
    %v698 = vld [vmem:[#allocation6 + $0xe50] sm:$0xff]
    %v699 = vld [vmem:[#allocation6 + $0xe58] sm:$0xff]
    %v700 = vld [vmem:[#allocation6 + $0xe60] sm:$0xff]
    %v701 = vld [vmem:[#allocation6 + $0xe68] sm:$0xff]
    %v702 = vld [vmem:[#allocation6 + $0xe70] sm:$0xff]
    %v703 = vld [vmem:[#allocation6 + $0xe78] sm:$0xff]
    %v704 = vld [vmem:[#allocation6 + $0xe80] sm:$0xff]
    %v705 = vld [vmem:[#allocation6 + $0xe88] sm:$0xff]
    %v706 = vld [vmem:[#allocation6 + $0xe90] sm:$0xff]
    %v707 = vld [vmem:[#allocation6 + $0xe98] sm:$0xff]
    %v708 = vld [vmem:[#allocation6 + $0xea0] sm:$0xff]
    %v709 = vld [vmem:[#allocation6 + $0xea8] sm:$0xff]
    %v710 = vld [vmem:[#allocation6 + $0xeb0] sm:$0xff]
    %v711 = vld [vmem:[#allocation6 + $0xeb8] sm:$0xff]
    %v712 = vld [vmem:[#allocation6 + $0xec0] sm:$0xff]
    %v713 = vld [vmem:[#allocation6 + $0xec8] sm:$0xff]
    %v714 = vld [vmem:[#allocation6 + $0xed0] sm:$0xff]
    %v715 = vld [vmem:[#allocation6 + $0xed8] sm:$0xff]
    %v716 = vld [vmem:[#allocation6 + $0xee0] sm:$0xff]
    %v717 = vld [vmem:[#allocation6 + $0xee8] sm:$0xff]
    %v718 = vld [vmem:[#allocation6 + $0xef0] sm:$0xff]
    %v719 = vld [vmem:[#allocation6 + $0xef8] sm:$0xff]
    %v720 = vld [vmem:[#allocation6 + $0xf00] sm:$0xff]
    %v721 = vld [vmem:[#allocation6 + $0xf08] sm:$0xff]
    %v722 = vld [vmem:[#allocation6 + $0xf10] sm:$0xff]
    %v723 = vld [vmem:[#allocation6 + $0xf18] sm:$0xff]
    %v724 = vld [vmem:[#allocation6 + $0xf20] sm:$0xff]
    %v725 = vld [vmem:[#allocation6 + $0xf28] sm:$0xff]
    %v726 = vld [vmem:[#allocation6 + $0xf30] sm:$0xff]
    %v727 = vld [vmem:[#allocation6 + $0xf38] sm:$0xff]
    %v728 = vld [vmem:[#allocation6 + $0xf40] sm:$0xff]
    %v729 = vld [vmem:[#allocation6 + $0xf48] sm:$0xff]
    %v730 = vld [vmem:[#allocation6 + $0xf50] sm:$0xff]
    %v731 = vld [vmem:[#allocation6 + $0xf58] sm:$0xff]
    %v732 = vld [vmem:[#allocation6 + $0xf60] sm:$0xff]
    %v733 = vld [vmem:[#allocation6 + $0xf68] sm:$0xff]
    %v734 = vld [vmem:[#allocation6 + $0xf70] sm:$0xff]
    %v735 = vld [vmem:[#allocation6 + $0xf78] sm:$0xff]
    %v736 = vld [vmem:[#allocation6 + $0xf80] sm:$0xff]
    %v737 = vld [vmem:[#allocation6 + $0xf88] sm:$0xff]
    %v738 = vld [vmem:[#allocation6 + $0xf90] sm:$0xff]
    %v739 = vld [vmem:[#allocation6 + $0xf98] sm:$0xff]
    %v740 = vld [vmem:[#allocation6 + $0xfa0] sm:$0xff]
    %v741 = vld [vmem:[#allocation6 + $0xfa8] sm:$0xff]
    %v742 = vld [vmem:[#allocation6 + $0xfb0] sm:$0xff]
    %v743 = vld [vmem:[#allocation6 + $0xfb8] sm:$0xff]
    %v744 = vld [vmem:[#allocation6 + $0xfc0] sm:$0xff]
    %v745 = vld [vmem:[#allocation6 + $0xfc8] sm:$0xff]
    %v746 = vld [vmem:[#allocation6 + $0xfd0] sm:$0xff]
    %v747 = vld [vmem:[#allocation6 + $0xfd8] sm:$0xff]
    %v748 = vld [vmem:[#allocation6 + $0xfe0] sm:$0xff]
    %v749 = vld [vmem:[#allocation6 + $0xfe8] sm:$0xff]
    %v750 = vld [vmem:[#allocation6 + $0xff0] sm:$0xff]
    %v751 = vld [vmem:[#allocation6 + $0xff8] sm:$0xff]
    %v752 = vld [vmem:[#allocation6 + $0x1000] sm:$0xff]
    %v753 = vld [vmem:[#allocation6 + $0x1008] sm:$0xff]
    %v754 = vld [vmem:[#allocation6 + $0x1010] sm:$0xff]
    %v755 = vld [vmem:[#allocation6 + $0x1018] sm:$0xff]
    %v756 = vld [vmem:[#allocation6 + $0x1020] sm:$0xff]
    %v757 = vld [vmem:[#allocation6 + $0x1028] sm:$0xff]
    %v758 = vld [vmem:[#allocation6 + $0x1030] sm:$0xff]
    %v759 = vld [vmem:[#allocation6 + $0x1038] sm:$0xff]
    %v760 = vld [vmem:[#allocation6 + $0x1040] sm:$0xff]
    %v761 = vld [vmem:[#allocation6 + $0x1048] sm:$0xff]
    %v762 = vld [vmem:[#allocation6 + $0x1050] sm:$0xff]
    %v763 = vld [vmem:[#allocation6 + $0x1058] sm:$0xff]
    %v764 = vld [vmem:[#allocation6 + $0x1060] sm:$0xff]
    %v765 = vld [vmem:[#allocation6 + $0x1068] sm:$0xff]
    %v766 = vld [vmem:[#allocation6 + $0x1070] sm:$0xff]
    %v767 = vld [vmem:[#allocation6 + $0x1078] sm:$0xff]
    %v768 = vld [vmem:[#allocation6 + $0x1080] sm:$0xff]
    %v769 = vld [vmem:[#allocation6 + $0x1088] sm:$0xff]
    %v770 = vld [vmem:[#allocation6 + $0x1090] sm:$0xff]
    %v771 = vld [vmem:[#allocation6 + $0x1098] sm:$0xff]
    %v772 = vld [vmem:[#allocation6 + $0x10a0] sm:$0xff]
    %v773 = vld [vmem:[#allocation6 + $0x10a8] sm:$0xff]
    %v774 = vld [vmem:[#allocation6 + $0x10b0] sm:$0xff]
    %v775 = vld [vmem:[#allocation6 + $0x10b8] sm:$0xff]
    %v776 = vld [vmem:[#allocation6 + $0x10c0] sm:$0xff]
    %v777 = vld [vmem:[#allocation6 + $0x10c8] sm:$0xff]
    %v778 = vld [vmem:[#allocation6 + $0x10d0] sm:$0xff]
    %v779 = vld [vmem:[#allocation6 + $0x10d8] sm:$0xff]
    %v780 = vld [vmem:[#allocation6 + $0x10e0] sm:$0xff]
    %v781 = vld [vmem:[#allocation6 + $0x10e8] sm:$0xff]
    %v782 = vld [vmem:[#allocation6 + $0x10f0] sm:$0xff]
    %v783 = vld [vmem:[#allocation6 + $0x10f8] sm:$0xff]
    %v784 = vld [vmem:[#allocation6 + $0x1100] sm:$0xff]
    %v785 = vld [vmem:[#allocation6 + $0x1108] sm:$0xff]
    %v786 = vld [vmem:[#allocation6 + $0x1110] sm:$0xff]
    %v787 = vld [vmem:[#allocation6 + $0x1118] sm:$0xff]
    %v788 = vld [vmem:[#allocation6 + $0x1120] sm:$0xff]
    %v789 = vld [vmem:[#allocation6 + $0x1128] sm:$0xff]
    %v790 = vld [vmem:[#allocation6 + $0x1130] sm:$0xff]
    %v791 = vld [vmem:[#allocation6 + $0x1138] sm:$0xff]
    %v792 = vld [vmem:[#allocation6 + $0x1140] sm:$0xff]
    %v793 = vld [vmem:[#allocation6 + $0x1148] sm:$0xff]
    %v794 = vld [vmem:[#allocation6 + $0x1150] sm:$0xff]
    %v795 = vld [vmem:[#allocation6 + $0x1158] sm:$0xff]
    %v796 = vld [vmem:[#allocation6 + $0x1160] sm:$0xff]
    %v797 = vld [vmem:[#allocation6 + $0x1168] sm:$0xff]
    %v798 = vld [vmem:[#allocation6 + $0x1170] sm:$0xff]
    %v799 = vld [vmem:[#allocation6 + $0x1178] sm:$0xff]
    %v800 = vld [vmem:[#allocation6 + $0x1180] sm:$0xff]
    %v801 = vld [vmem:[#allocation6 + $0x1188] sm:$0xff]
    %v802 = vld [vmem:[#allocation6 + $0x1190] sm:$0xff]
    %v803 = vld [vmem:[#allocation6 + $0x1198] sm:$0xff]
    %v804 = vld [vmem:[#allocation6 + $0x11a0] sm:$0xff]
    %v805 = vld [vmem:[#allocation6 + $0x11a8] sm:$0xff]
    %v806 = vld [vmem:[#allocation6 + $0x11b0] sm:$0xff]
    %v807 = vld [vmem:[#allocation6 + $0x11b8] sm:$0xff]
    %v808 = vld [vmem:[#allocation6 + $0x11c0] sm:$0xff]
    %v809 = vld [vmem:[#allocation6 + $0x11c8] sm:$0xff]
    %v810 = vld [vmem:[#allocation6 + $0x11d0] sm:$0xff]
    %v811 = vld [vmem:[#allocation6 + $0x11d8] sm:$0xff]
    %v812 = vld [vmem:[#allocation6 + $0x11e0] sm:$0xff]
    %v813 = vld [vmem:[#allocation6 + $0x11e8] sm:$0xff]
    %v814 = vld [vmem:[#allocation6 + $0x11f0] sm:$0xff]
    %v815 = vld [vmem:[#allocation6 + $0x11f8] sm:$0xff]
    %v816 = vld [vmem:[#allocation6 + $0x1200] sm:$0xff]
    %v817 = vld [vmem:[#allocation6 + $0x1208] sm:$0xff]
    %v818 = vld [vmem:[#allocation6 + $0x1210] sm:$0xff]
    %v819 = vld [vmem:[#allocation6 + $0x1218] sm:$0xff]
    %v820 = vld [vmem:[#allocation6 + $0x1220] sm:$0xff]
    %v821 = vld [vmem:[#allocation6 + $0x1228] sm:$0xff]
    %v822 = vld [vmem:[#allocation6 + $0x1230] sm:$0xff]
    %v823 = vld [vmem:[#allocation6 + $0x1238] sm:$0xff]
    %v824 = vld [vmem:[#allocation6 + $0x1240] sm:$0xff]
    %v825 = vld [vmem:[#allocation6 + $0x1248] sm:$0xff]
    %v826 = vld [vmem:[#allocation6 + $0x1250] sm:$0xff]
    %v827 = vld [vmem:[#allocation6 + $0x1258] sm:$0xff]
    %v828 = vld [vmem:[#allocation6 + $0x1260] sm:$0xff]
    %v829 = vld [vmem:[#allocation6 + $0x1268] sm:$0xff]
    %v830 = vld [vmem:[#allocation6 + $0x1270] sm:$0xff]
    %v831 = vld [vmem:[#allocation6 + $0x1278] sm:$0xff]
    %v832 = vld [vmem:[#allocation6 + $0x1280] sm:$0xff]
    %v833 = vld [vmem:[#allocation6 + $0x1288] sm:$0xff]
    %v834 = vld [vmem:[#allocation6 + $0x1290] sm:$0xff]
    %v835 = vld [vmem:[#allocation6 + $0x1298] sm:$0xff]
    %v836 = vld [vmem:[#allocation6 + $0x12a0] sm:$0xff]
    %v837 = vld [vmem:[#allocation6 + $0x12a8] sm:$0xff]
    %v838 = vld [vmem:[#allocation6 + $0x12b0] sm:$0xff]
    %v839 = vld [vmem:[#allocation6 + $0x12b8] sm:$0xff]
    %v840 = vld [vmem:[#allocation6 + $0x12c0] sm:$0xff]
    %v841 = vld [vmem:[#allocation6 + $0x12c8] sm:$0xff]
    %v842 = vld [vmem:[#allocation6 + $0x12d0] sm:$0xff]
    %v843 = vld [vmem:[#allocation6 + $0x12d8] sm:$0xff]
    %v844 = vld [vmem:[#allocation6 + $0x12e0] sm:$0xff]
    %v845 = vld [vmem:[#allocation6 + $0x12e8] sm:$0xff]
    %v846 = vld [vmem:[#allocation6 + $0x12f0] sm:$0xff]
    %v847 = vld [vmem:[#allocation6 + $0x12f8] sm:$0xff]
    %v848 = vld [vmem:[#allocation6 + $0x1300] sm:$0xff]
    %v849 = vld [vmem:[#allocation6 + $0x1308] sm:$0xff]
    %v850 = vld [vmem:[#allocation6 + $0x1310] sm:$0xff]
    %v851 = vld [vmem:[#allocation6 + $0x1318] sm:$0xff]
    %v852 = vld [vmem:[#allocation6 + $0x1320] sm:$0xff]
    %v853 = vld [vmem:[#allocation6 + $0x1328] sm:$0xff]
    %v854 = vld [vmem:[#allocation6 + $0x1330] sm:$0xff]
    %v855 = vld [vmem:[#allocation6 + $0x1338] sm:$0xff]
    %v856 = vld [vmem:[#allocation6 + $0x1340] sm:$0xff]
    %v857 = vld [vmem:[#allocation6 + $0x1348] sm:$0xff]
    %v858 = vld [vmem:[#allocation6 + $0x1350] sm:$0xff]
    %v859 = vld [vmem:[#allocation6 + $0x1358] sm:$0xff]
    %v860 = vld [vmem:[#allocation6 + $0x1360] sm:$0xff]
    %v861 = vld [vmem:[#allocation6 + $0x1368] sm:$0xff]
    %v862 = vld [vmem:[#allocation6 + $0x1370] sm:$0xff]
    %v863 = vld [vmem:[#allocation6 + $0x1378] sm:$0xff]
    %v864 = vld [vmem:[#allocation6 + $0x1380] sm:$0xff]
    %v865 = vld [vmem:[#allocation6 + $0x1388] sm:$0xff]
    %v866 = vld [vmem:[#allocation6 + $0x1390] sm:$0xff]
    %v867 = vld [vmem:[#allocation6 + $0x1398] sm:$0xff]
    %v868 = vld [vmem:[#allocation6 + $0x13a0] sm:$0xff]
    %v869 = vld [vmem:[#allocation6 + $0x13a8] sm:$0xff]
    %v870 = vld [vmem:[#allocation6 + $0x13b0] sm:$0xff]
    %v871 = vld [vmem:[#allocation6 + $0x13b8] sm:$0xff]
    %v872 = vld [vmem:[#allocation6 + $0x13c0] sm:$0xff]
    %v873 = vld [vmem:[#allocation6 + $0x13c8] sm:$0xff]
    %v874 = vld [vmem:[#allocation6 + $0x13d0] sm:$0xff]
    %v875 = vld [vmem:[#allocation6 + $0x13d8] sm:$0xff]
    %v876 = vld [vmem:[#allocation6 + $0x13e0] sm:$0xff]
    %v877 = vld [vmem:[#allocation6 + $0x13e8] sm:$0xff]
    %v878 = vld [vmem:[#allocation6 + $0x13f0] sm:$0xff]
    %v879 = vld [vmem:[#allocation6 + $0x13f8] sm:$0xff]
    %v880 = vld [vmem:[#allocation6 + $0x1400] sm:$0xff]
    %v881 = vld [vmem:[#allocation6 + $0x1408] sm:$0xff]
    %v882 = vld [vmem:[#allocation6 + $0x1410] sm:$0xff]
    %v883 = vld [vmem:[#allocation6 + $0x1418] sm:$0xff]
    %v884 = vld [vmem:[#allocation6 + $0x1420] sm:$0xff]
    %v885 = vld [vmem:[#allocation6 + $0x1428] sm:$0xff]
    %v886 = vld [vmem:[#allocation6 + $0x1430] sm:$0xff]
    %v887 = vld [vmem:[#allocation6 + $0x1438] sm:$0xff]
    %v888 = vld [vmem:[#allocation6 + $0x1440] sm:$0xff]
    %v889 = vld [vmem:[#allocation6 + $0x1448] sm:$0xff]
    %v890 = vld [vmem:[#allocation6 + $0x1450] sm:$0xff]
    %v891 = vld [vmem:[#allocation6 + $0x1458] sm:$0xff]
    %v892 = vld [vmem:[#allocation6 + $0x1460] sm:$0xff]
    %v893 = vld [vmem:[#allocation6 + $0x1468] sm:$0xff]
    %v894 = vld [vmem:[#allocation6 + $0x1470] sm:$0xff]
    %v895 = vld [vmem:[#allocation6 + $0x1478] sm:$0xff]
    %v896 = vld [vmem:[#allocation6 + $0x1480] sm:$0xff]
    %v897 = vld [vmem:[#allocation6 + $0x1488] sm:$0xff]
    %v898 = vld [vmem:[#allocation6 + $0x1490] sm:$0xff]
    %v899 = vld [vmem:[#allocation6 + $0x1498] sm:$0xff]
    %v900 = vld [vmem:[#allocation6 + $0x14a0] sm:$0xff]
    %v901 = vld [vmem:[#allocation6 + $0x14a8] sm:$0xff]
    %v902 = vld [vmem:[#allocation6 + $0x14b0] sm:$0xff]
    %v903 = vld [vmem:[#allocation6 + $0x14b8] sm:$0xff]
    %v904 = vld [vmem:[#allocation6 + $0x14c0] sm:$0xff]
    %v905 = vld [vmem:[#allocation6 + $0x14c8] sm:$0xff]
    %v906 = vld [vmem:[#allocation6 + $0x14d0] sm:$0xff]
    %v907 = vld [vmem:[#allocation6 + $0x14d8] sm:$0xff]
    %v908 = vld [vmem:[#allocation6 + $0x14e0] sm:$0xff]
    %v909 = vld [vmem:[#allocation6 + $0x14e8] sm:$0xff]
    %v910 = vld [vmem:[#allocation6 + $0x14f0] sm:$0xff]
    %v911 = vld [vmem:[#allocation6 + $0x14f8] sm:$0xff]
    %v912 = vld [vmem:[#allocation6 + $0x1500] sm:$0xff]
    %v913 = vld [vmem:[#allocation6 + $0x1508] sm:$0xff]
    %v914 = vld [vmem:[#allocation6 + $0x1510] sm:$0xff]
    %v915 = vld [vmem:[#allocation6 + $0x1518] sm:$0xff]
    %v916 = vld [vmem:[#allocation6 + $0x1520] sm:$0xff]
    %v917 = vld [vmem:[#allocation6 + $0x1528] sm:$0xff]
    %v918 = vld [vmem:[#allocation6 + $0x1530] sm:$0xff]
    %v919 = vld [vmem:[#allocation6 + $0x1538] sm:$0xff]
    %v920 = vld [vmem:[#allocation6 + $0x1540] sm:$0xff]
    %v921 = vld [vmem:[#allocation6 + $0x1548] sm:$0xff]
    %v922 = vld [vmem:[#allocation6 + $0x1550] sm:$0xff]
    %v923 = vld [vmem:[#allocation6 + $0x1558] sm:$0xff]
    %v924 = vld [vmem:[#allocation6 + $0x1560] sm:$0xff]
    %v925 = vld [vmem:[#allocation6 + $0x1568] sm:$0xff]
    %v926 = vld [vmem:[#allocation6 + $0x1570] sm:$0xff]
    %v927 = vld [vmem:[#allocation6 + $0x1578] sm:$0xff]
    %v928 = vld [vmem:[#allocation6 + $0x1580] sm:$0xff]
    %v929 = vld [vmem:[#allocation6 + $0x1588] sm:$0xff]
    %v930 = vld [vmem:[#allocation6 + $0x1590] sm:$0xff]
    %v931 = vld [vmem:[#allocation6 + $0x1598] sm:$0xff]
    %v932 = vld [vmem:[#allocation6 + $0x15a0] sm:$0xff]
    %v933 = vld [vmem:[#allocation6 + $0x15a8] sm:$0xff]
    %v934 = vld [vmem:[#allocation6 + $0x15b0] sm:$0xff]
    %v935 = vld [vmem:[#allocation6 + $0x15b8] sm:$0xff]
    %v936 = vld [vmem:[#allocation6 + $0x15c0] sm:$0xff]
    %v937 = vld [vmem:[#allocation6 + $0x15c8] sm:$0xff]
    %v938 = vld [vmem:[#allocation6 + $0x15d0] sm:$0xff]
    %v939 = vld [vmem:[#allocation6 + $0x15d8] sm:$0xff]
    %v940 = vld [vmem:[#allocation6 + $0x15e0] sm:$0xff]
    %v941 = vld [vmem:[#allocation6 + $0x15e8] sm:$0xff]
    %v942 = vld [vmem:[#allocation6 + $0x15f0] sm:$0xff]
    %v943 = vld [vmem:[#allocation6 + $0x15f8] sm:$0xff]
    %v944 = vld [vmem:[#allocation6 + $0x1600] sm:$0xff]
    %v945 = vld [vmem:[#allocation6 + $0x1608] sm:$0xff]
    %v946 = vld [vmem:[#allocation6 + $0x1610] sm:$0xff]
    %v947 = vld [vmem:[#allocation6 + $0x1618] sm:$0xff]
    %v948 = vld [vmem:[#allocation6 + $0x1620] sm:$0xff]
    %v949 = vld [vmem:[#allocation6 + $0x1628] sm:$0xff]
    %v950 = vld [vmem:[#allocation6 + $0x1630] sm:$0xff]
    %v951 = vld [vmem:[#allocation6 + $0x1638] sm:$0xff]
    %v952 = vld [vmem:[#allocation6 + $0x1640] sm:$0xff]
    %v953 = vld [vmem:[#allocation6 + $0x1648] sm:$0xff]
    %v954 = vld [vmem:[#allocation6 + $0x1650] sm:$0xff]
    %v955 = vld [vmem:[#allocation6 + $0x1658] sm:$0xff]
    %v956 = vld [vmem:[#allocation6 + $0x1660] sm:$0xff]
    %v957 = vld [vmem:[#allocation6 + $0x1668] sm:$0xff]
    %v958 = vld [vmem:[#allocation6 + $0x1670] sm:$0xff]
    %v959 = vld [vmem:[#allocation6 + $0x1678] sm:$0xff]
    %v960 = vld [vmem:[#allocation6 + $0x1680] sm:$0xff]
    %v961 = vld [vmem:[#allocation6 + $0x1688] sm:$0xff]
    %v962 = vld [vmem:[#allocation6 + $0x1690] sm:$0xff]
    %v963 = vld [vmem:[#allocation6 + $0x1698] sm:$0xff]
    %v964 = vld [vmem:[#allocation6 + $0x16a0] sm:$0xff]
    %v965 = vld [vmem:[#allocation6 + $0x16a8] sm:$0xff]
    %v966 = vld [vmem:[#allocation6 + $0x16b0] sm:$0xff]
    %v967 = vld [vmem:[#allocation6 + $0x16b8] sm:$0xff]
    %v968 = vld [vmem:[#allocation6 + $0x16c0] sm:$0xff]
    %v969 = vld [vmem:[#allocation6 + $0x16c8] sm:$0xff]
    %v970 = vld [vmem:[#allocation6 + $0x16d0] sm:$0xff]
    %v971 = vld [vmem:[#allocation6 + $0x16d8] sm:$0xff]
    %v972 = vld [vmem:[#allocation6 + $0x16e0] sm:$0xff]
    %v973 = vld [vmem:[#allocation6 + $0x16e8] sm:$0xff]
    %v974 = vld [vmem:[#allocation6 + $0x16f0] sm:$0xff]
    %v975 = vld [vmem:[#allocation6 + $0x16f8] sm:$0xff]
    %v976 = vld [vmem:[#allocation6 + $0x1700] sm:$0xff]
    %v977 = vld [vmem:[#allocation6 + $0x1708] sm:$0xff]
    %v978 = vld [vmem:[#allocation6 + $0x1710] sm:$0xff]
    %v979 = vld [vmem:[#allocation6 + $0x1718] sm:$0xff]
    %v980 = vld [vmem:[#allocation6 + $0x1720] sm:$0xff]
    %v981 = vld [vmem:[#allocation6 + $0x1728] sm:$0xff]
    %v982 = vld [vmem:[#allocation6 + $0x1730] sm:$0xff]
    %v983 = vld [vmem:[#allocation6 + $0x1738] sm:$0xff]
    %v984 = vld [vmem:[#allocation6 + $0x1740] sm:$0xff]
    %v985 = vld [vmem:[#allocation6 + $0x1748] sm:$0xff]
    %v986 = vld [vmem:[#allocation6 + $0x1750] sm:$0xff]
    %v987 = vld [vmem:[#allocation6 + $0x1758] sm:$0xff]
    %v988 = vld [vmem:[#allocation6 + $0x1760] sm:$0xff]
    %v989 = vld [vmem:[#allocation6 + $0x1768] sm:$0xff]
    %v990 = vld [vmem:[#allocation6 + $0x1770] sm:$0xff]
    %v991 = vld [vmem:[#allocation6 + $0x1778] sm:$0xff]
    %v992 = vld [vmem:[#allocation6 + $0x1780] sm:$0xff]
    %v993 = vld [vmem:[#allocation6 + $0x1788] sm:$0xff]
    %v994 = vld [vmem:[#allocation6 + $0x1790] sm:$0xff]
    %v995 = vld [vmem:[#allocation6 + $0x1798] sm:$0xff]
    %v996 = vld [vmem:[#allocation6 + $0x17a0] sm:$0xff]
    %v997 = vld [vmem:[#allocation6 + $0x17a8] sm:$0xff]
    %v998 = vld [vmem:[#allocation6 + $0x17b0] sm:$0xff]
    %v999 = vld [vmem:[#allocation6 + $0x17b8] sm:$0xff]
    %v1000 = vld [vmem:[#allocation6 + $0x17c0] sm:$0xff]
    %v1001 = vld [vmem:[#allocation6 + $0x17c8] sm:$0xff]
    %v1002 = vld [vmem:[#allocation6 + $0x17d0] sm:$0xff]
    %v1003 = vld [vmem:[#allocation6 + $0x17d8] sm:$0xff]
    %v1004 = vld [vmem:[#allocation6 + $0x17e0] sm:$0xff]
    %v1005 = vld [vmem:[#allocation6 + $0x17e8] sm:$0xff]
    %v1006 = vld [vmem:[#allocation6 + $0x17f0] sm:$0xff]
    %v1007 = vld [vmem:[#allocation6 + $0x17f8] sm:$0xff]
    %v1008 = vld [vmem:[#allocation6 + $0x1800] sm:$0xff]
    %v1009 = vld [vmem:[#allocation6 + $0x1808] sm:$0xff]
    %v1010 = vld [vmem:[#allocation6 + $0x1810] sm:$0xff]
    %v1011 = vld [vmem:[#allocation6 + $0x1818] sm:$0xff]
    %v1012 = vld [vmem:[#allocation6 + $0x1820] sm:$0xff]
    %v1013 = vld [vmem:[#allocation6 + $0x1828] sm:$0xff]
    %v1014 = vld [vmem:[#allocation6 + $0x1830] sm:$0xff]
    %v1015 = vld [vmem:[#allocation6 + $0x1838] sm:$0xff]
    %v1016 = vld [vmem:[#allocation6 + $0x1840] sm:$0xff]
    %v1017 = vld [vmem:[#allocation6 + $0x1848] sm:$0xff]
    %v1018 = vld [vmem:[#allocation6 + $0x1850] sm:$0xff]
    %v1019 = vld [vmem:[#allocation6 + $0x1858] sm:$0xff]
    %v1020 = vld [vmem:[#allocation6 + $0x1860] sm:$0xff]
    %v1021 = vld [vmem:[#allocation6 + $0x1868] sm:$0xff]
    %v1022 = vld [vmem:[#allocation6 + $0x1870] sm:$0xff]
    %v1023 = vld [vmem:[#allocation6 + $0x1878] sm:$0xff]
    %v1808 = vunpack.c.l.b16 %v240
    %v1809 = vunpack.c.h.b16 %v240
    %v1810 = vunpack.c.l.b16 %v241
    %v1811 = vunpack.c.h.b16 %v241
    %v1812 = vunpack.c.l.b16 %v242
    %v1813 = vunpack.c.h.b16 %v242
    %v1814 = vunpack.c.l.b16 %v243
    %v1815 = vunpack.c.h.b16 %v243
    %v1816 = vunpack.c.l.b16 %v244
    %v1817 = vunpack.c.h.b16 %v244
    %v1818 = vunpack.c.l.b16 %v245
    %v1819 = vunpack.c.h.b16 %v245
    %v1820 = vunpack.c.l.b16 %v246
    %v1821 = vunpack.c.h.b16 %v246
    %v1822 = vunpack.c.l.b16 %v247
    %v1823 = vunpack.c.h.b16 %v247
    %v1824 = vunpack.c.l.b16 %v248
    %v1825 = vunpack.c.h.b16 %v248
    %v1826 = vunpack.c.l.b16 %v249
    %v1827 = vunpack.c.h.b16 %v249
    %v1828 = vunpack.c.l.b16 %v250
    %v1829 = vunpack.c.h.b16 %v250
    %v1830 = vunpack.c.l.b16 %v251
    %v1831 = vunpack.c.h.b16 %v251
    %v1832 = vunpack.c.l.b16 %v252
    %v1833 = vunpack.c.h.b16 %v252
    %v1834 = vunpack.c.l.b16 %v253
    %v1835 = vunpack.c.h.b16 %v253
    %v1836 = vunpack.c.l.b16 %v254
    %v1837 = vunpack.c.h.b16 %v254
    %v1838 = vunpack.c.l.b16 %v255
    %v1839 = vunpack.c.h.b16 %v255
    %v1840 = vunpack.c.l.b16 %v256
    %v1841 = vunpack.c.h.b16 %v256
    %v1842 = vunpack.c.l.b16 %v257
    %v1843 = vunpack.c.h.b16 %v257
    %v1844 = vunpack.c.l.b16 %v258
    %v1845 = vunpack.c.h.b16 %v258
    %v1846 = vunpack.c.l.b16 %v259
    %v1847 = vunpack.c.h.b16 %v259
    %v1848 = vunpack.c.l.b16 %v260
    %v1849 = vunpack.c.h.b16 %v260
    %v1850 = vunpack.c.l.b16 %v261
    %v1851 = vunpack.c.h.b16 %v261
    %v1852 = vunpack.c.l.b16 %v262
    %v1853 = vunpack.c.h.b16 %v262
    %v1854 = vunpack.c.l.b16 %v263
    %v1855 = vunpack.c.h.b16 %v263
    %v1856 = vunpack.c.l.b16 %v264
    %v1857 = vunpack.c.h.b16 %v264
    %v1858 = vunpack.c.l.b16 %v265
    %v1859 = vunpack.c.h.b16 %v265
    %v1860 = vunpack.c.l.b16 %v266
    %v1861 = vunpack.c.h.b16 %v266
    %v1862 = vunpack.c.l.b16 %v267
    %v1863 = vunpack.c.h.b16 %v267
    %v1864 = vunpack.c.l.b16 %v268
    %v1865 = vunpack.c.h.b16 %v268
    %v1866 = vunpack.c.l.b16 %v269
    %v1867 = vunpack.c.h.b16 %v269
    %v1868 = vunpack.c.l.b16 %v270
    %v1869 = vunpack.c.h.b16 %v270
    %v1870 = vunpack.c.l.b16 %v271
    %v1871 = vunpack.c.h.b16 %v271
    %v1872 = vunpack.c.l.b16 %v272
    %v1873 = vunpack.c.h.b16 %v272
    %v1874 = vunpack.c.l.b16 %v273
    %v1875 = vunpack.c.h.b16 %v273
    %v1876 = vunpack.c.l.b16 %v274
    %v1877 = vunpack.c.h.b16 %v274
    %v1878 = vunpack.c.l.b16 %v275
    %v1879 = vunpack.c.h.b16 %v275
    %v1880 = vunpack.c.l.b16 %v276
    %v1881 = vunpack.c.h.b16 %v276
    %v1882 = vunpack.c.l.b16 %v277
    %v1883 = vunpack.c.h.b16 %v277
    %v1884 = vunpack.c.l.b16 %v278
    %v1885 = vunpack.c.h.b16 %v278
    %v1886 = vunpack.c.l.b16 %v279
    %v1887 = vunpack.c.h.b16 %v279
    %v1888 = vunpack.c.l.b16 %v280
    %v1889 = vunpack.c.h.b16 %v280
    %v1890 = vunpack.c.l.b16 %v281
    %v1891 = vunpack.c.h.b16 %v281
    %v1892 = vunpack.c.l.b16 %v282
    %v1893 = vunpack.c.h.b16 %v282
    %v1894 = vunpack.c.l.b16 %v283
    %v1895 = vunpack.c.h.b16 %v283
    %v1896 = vunpack.c.l.b16 %v284
    %v1897 = vunpack.c.h.b16 %v284
    %v1898 = vunpack.c.l.b16 %v285
    %v1899 = vunpack.c.h.b16 %v285
    %v1900 = vunpack.c.l.b16 %v286
    %v1901 = vunpack.c.h.b16 %v286
    %v1902 = vunpack.c.l.b16 %v287
    %v1903 = vunpack.c.h.b16 %v287
    %v1904 = vunpack.c.l.b16 %v288
    %v1905 = vunpack.c.h.b16 %v288
    %v1906 = vunpack.c.l.b16 %v289
    %v1907 = vunpack.c.h.b16 %v289
    %v1908 = vunpack.c.l.b16 %v290
    %v1909 = vunpack.c.h.b16 %v290
    %v1910 = vunpack.c.l.b16 %v291
    %v1911 = vunpack.c.h.b16 %v291
    %v1912 = vunpack.c.l.b16 %v292
    %v1913 = vunpack.c.h.b16 %v292
    %v1914 = vunpack.c.l.b16 %v293
    %v1915 = vunpack.c.h.b16 %v293
    %v1916 = vunpack.c.l.b16 %v294
    %v1917 = vunpack.c.h.b16 %v294
    %v1918 = vunpack.c.l.b16 %v295
    %v1919 = vunpack.c.h.b16 %v295
    %v1920 = vunpack.c.l.b16 %v296
    %v1921 = vunpack.c.h.b16 %v296
    %v1922 = vunpack.c.l.b16 %v297
    %v1923 = vunpack.c.h.b16 %v297
    %v1924 = vunpack.c.l.b16 %v298
    %v1925 = vunpack.c.h.b16 %v298
    %v1926 = vunpack.c.l.b16 %v299
    %v1927 = vunpack.c.h.b16 %v299
    %v1928 = vunpack.c.l.b16 %v300
    %v1929 = vunpack.c.h.b16 %v300
    %v1930 = vunpack.c.l.b16 %v301
    %v1931 = vunpack.c.h.b16 %v301
    %v1932 = vunpack.c.l.b16 %v302
    %v1933 = vunpack.c.h.b16 %v302
    %v1934 = vunpack.c.l.b16 %v303
    %v1935 = vunpack.c.h.b16 %v303
    %v1936 = vunpack.c.l.b16 %v304
    %v1937 = vunpack.c.h.b16 %v304
    %v1938 = vunpack.c.l.b16 %v305
    %v1939 = vunpack.c.h.b16 %v305
    %v1940 = vunpack.c.l.b16 %v306
    %v1941 = vunpack.c.h.b16 %v306
    %v1942 = vunpack.c.l.b16 %v307
    %v1943 = vunpack.c.h.b16 %v307
    %v1944 = vunpack.c.l.b16 %v308
    %v1945 = vunpack.c.h.b16 %v308
    %v1946 = vunpack.c.l.b16 %v309
    %v1947 = vunpack.c.h.b16 %v309
    %v1948 = vunpack.c.l.b16 %v310
    %v1949 = vunpack.c.h.b16 %v310
    %v1950 = vunpack.c.l.b16 %v311
    %v1951 = vunpack.c.h.b16 %v311
    %v1952 = vunpack.c.l.b16 %v312
    %v1953 = vunpack.c.h.b16 %v312
    %v1954 = vunpack.c.l.b16 %v313
    %v1955 = vunpack.c.h.b16 %v313
    %v1956 = vunpack.c.l.b16 %v314
    %v1957 = vunpack.c.h.b16 %v314
    %v1958 = vunpack.c.l.b16 %v315
    %v1959 = vunpack.c.h.b16 %v315
    %v1960 = vunpack.c.l.b16 %v316
    %v1961 = vunpack.c.h.b16 %v316
    %v1962 = vunpack.c.l.b16 %v317
    %v1963 = vunpack.c.h.b16 %v317
    %v1964 = vunpack.c.l.b16 %v318
    %v1965 = vunpack.c.h.b16 %v318
    %v1966 = vunpack.c.l.b16 %v319
    %v1967 = vunpack.c.h.b16 %v319
    %v1968 = vunpack.c.l.b16 %v320
    %v1969 = vunpack.c.h.b16 %v320
    %v1970 = vunpack.c.l.b16 %v321
    %v1971 = vunpack.c.h.b16 %v321
    %v1972 = vunpack.c.l.b16 %v322
    %v1973 = vunpack.c.h.b16 %v322
    %v1974 = vunpack.c.l.b16 %v323
    %v1975 = vunpack.c.h.b16 %v323
    %v1976 = vunpack.c.l.b16 %v324
    %v1977 = vunpack.c.h.b16 %v324
    %v1978 = vunpack.c.l.b16 %v325
    %v1979 = vunpack.c.h.b16 %v325
    %v1980 = vunpack.c.l.b16 %v326
    %v1981 = vunpack.c.h.b16 %v326
    %v1982 = vunpack.c.l.b16 %v327
    %v1983 = vunpack.c.h.b16 %v327
    %v1984 = vunpack.c.l.b16 %v328
    %v1985 = vunpack.c.h.b16 %v328
    %v1986 = vunpack.c.l.b16 %v329
    %v1987 = vunpack.c.h.b16 %v329
    %v1988 = vunpack.c.l.b16 %v330
    %v1989 = vunpack.c.h.b16 %v330
    %v1990 = vunpack.c.l.b16 %v331
    %v1991 = vunpack.c.h.b16 %v331
    %v1992 = vunpack.c.l.b16 %v332
    %v1993 = vunpack.c.h.b16 %v332
    %v1994 = vunpack.c.l.b16 %v333
    %v1995 = vunpack.c.h.b16 %v333
    %v1996 = vunpack.c.l.b16 %v334
    %v1997 = vunpack.c.h.b16 %v334
    %v1998 = vunpack.c.l.b16 %v335
    %v1999 = vunpack.c.h.b16 %v335
    %v2000 = vunpack.c.l.b16 %v336
    %v2001 = vunpack.c.h.b16 %v336
    %v2002 = vunpack.c.l.b16 %v337
    %v2003 = vunpack.c.h.b16 %v337
    %v2004 = vunpack.c.l.b16 %v338
    %v2005 = vunpack.c.h.b16 %v338
    %v2006 = vunpack.c.l.b16 %v339
    %v2007 = vunpack.c.h.b16 %v339
    %v2008 = vunpack.c.l.b16 %v340
    %v2009 = vunpack.c.h.b16 %v340
    %v2010 = vunpack.c.l.b16 %v341
    %v2011 = vunpack.c.h.b16 %v341
    %v2012 = vunpack.c.l.b16 %v342
    %v2013 = vunpack.c.h.b16 %v342
    %v2014 = vunpack.c.l.b16 %v343
    %v2015 = vunpack.c.h.b16 %v343
    %v2016 = vunpack.c.l.b16 %v344
    %v2017 = vunpack.c.h.b16 %v344
    %v2018 = vunpack.c.l.b16 %v345
    %v2019 = vunpack.c.h.b16 %v345
    %v2020 = vunpack.c.l.b16 %v346
    %v2021 = vunpack.c.h.b16 %v346
    %v2022 = vunpack.c.l.b16 %v347
    %v2023 = vunpack.c.h.b16 %v347
    %v2024 = vunpack.c.l.b16 %v348
    %v2025 = vunpack.c.h.b16 %v348
    %v2026 = vunpack.c.l.b16 %v349
    %v2027 = vunpack.c.h.b16 %v349
    %v2028 = vunpack.c.l.b16 %v350
    %v2029 = vunpack.c.h.b16 %v350
    %v2030 = vunpack.c.l.b16 %v351
    %v2031 = vunpack.c.h.b16 %v351
    %v2032 = vunpack.c.l.b16 %v352
    %v2033 = vunpack.c.h.b16 %v352
    %v2034 = vunpack.c.l.b16 %v353
    %v2035 = vunpack.c.h.b16 %v353
    %v2036 = vunpack.c.l.b16 %v354
    %v2037 = vunpack.c.h.b16 %v354
    %v2038 = vunpack.c.l.b16 %v355
    %v2039 = vunpack.c.h.b16 %v355
    %v2040 = vunpack.c.l.b16 %v356
    %v2041 = vunpack.c.h.b16 %v356
    %v2042 = vunpack.c.l.b16 %v357
    %v2043 = vunpack.c.h.b16 %v357
    %v2044 = vunpack.c.l.b16 %v358
    %v2045 = vunpack.c.h.b16 %v358
    %v2046 = vunpack.c.l.b16 %v359
    %v2047 = vunpack.c.h.b16 %v359
    %v2048 = vunpack.c.l.b16 %v360
    %v2049 = vunpack.c.h.b16 %v360
    %v2050 = vunpack.c.l.b16 %v361
    %v2051 = vunpack.c.h.b16 %v361
    %v2052 = vunpack.c.l.b16 %v362
    %v2053 = vunpack.c.h.b16 %v362
    %v2054 = vunpack.c.l.b16 %v363
    %v2055 = vunpack.c.h.b16 %v363
    %v2056 = vunpack.c.l.b16 %v364
    %v2057 = vunpack.c.h.b16 %v364
    %v2058 = vunpack.c.l.b16 %v365
    %v2059 = vunpack.c.h.b16 %v365
    %v2060 = vunpack.c.l.b16 %v366
    %v2061 = vunpack.c.h.b16 %v366
    %v2062 = vunpack.c.l.b16 %v367
    %v2063 = vunpack.c.h.b16 %v367
    %v2064 = vunpack.c.l.b16 %v368
    %v2065 = vunpack.c.h.b16 %v368
    %v2066 = vunpack.c.l.b16 %v369
    %v2067 = vunpack.c.h.b16 %v369
    %v2068 = vunpack.c.l.b16 %v370
    %v2069 = vunpack.c.h.b16 %v370
    %v2070 = vunpack.c.l.b16 %v371
    %v2071 = vunpack.c.h.b16 %v371
    %v2072 = vunpack.c.l.b16 %v372
    %v2073 = vunpack.c.h.b16 %v372
    %v2074 = vunpack.c.l.b16 %v373
    %v2075 = vunpack.c.h.b16 %v373
    %v2076 = vunpack.c.l.b16 %v374
    %v2077 = vunpack.c.h.b16 %v374
    %v2078 = vunpack.c.l.b16 %v375
    %v2079 = vunpack.c.h.b16 %v375
    %v2080 = vunpack.c.l.b16 %v376
    %v2081 = vunpack.c.h.b16 %v376
    %v2082 = vunpack.c.l.b16 %v377
    %v2083 = vunpack.c.h.b16 %v377
    %v2084 = vunpack.c.l.b16 %v378
    %v2085 = vunpack.c.h.b16 %v378
    %v2086 = vunpack.c.l.b16 %v379
    %v2087 = vunpack.c.h.b16 %v379
    %v2088 = vunpack.c.l.b16 %v380
    %v2089 = vunpack.c.h.b16 %v380
    %v2090 = vunpack.c.l.b16 %v381
    %v2091 = vunpack.c.h.b16 %v381
    %v2092 = vunpack.c.l.b16 %v382
    %v2093 = vunpack.c.h.b16 %v382
    %v2094 = vunpack.c.l.b16 %v383
    %v2095 = vunpack.c.h.b16 %v383
    %v2096 = vunpack.c.l.b16 %v384
    %v2097 = vunpack.c.h.b16 %v384
    %v2098 = vunpack.c.l.b16 %v385
    %v2099 = vunpack.c.h.b16 %v385
    %v2100 = vunpack.c.l.b16 %v386
    %v2101 = vunpack.c.h.b16 %v386
    %v2102 = vunpack.c.l.b16 %v387
    %v2103 = vunpack.c.h.b16 %v387
    %v2104 = vunpack.c.l.b16 %v388
    %v2105 = vunpack.c.h.b16 %v388
    %v2106 = vunpack.c.l.b16 %v389
    %v2107 = vunpack.c.h.b16 %v389
    %v2108 = vunpack.c.l.b16 %v390
    %v2109 = vunpack.c.h.b16 %v390
    %v2110 = vunpack.c.l.b16 %v391
    %v2111 = vunpack.c.h.b16 %v391
    %v2112 = vunpack.c.l.b16 %v392
    %v2113 = vunpack.c.h.b16 %v392
    %v2114 = vunpack.c.l.b16 %v393
    %v2115 = vunpack.c.h.b16 %v393
    %v2116 = vunpack.c.l.b16 %v394
    %v2117 = vunpack.c.h.b16 %v394
    %v2118 = vunpack.c.l.b16 %v395
    %v2119 = vunpack.c.h.b16 %v395
    %v2120 = vunpack.c.l.b16 %v396
    %v2121 = vunpack.c.h.b16 %v396
    %v2122 = vunpack.c.l.b16 %v397
    %v2123 = vunpack.c.h.b16 %v397
    %v2124 = vunpack.c.l.b16 %v398
    %v2125 = vunpack.c.h.b16 %v398
    %v2126 = vunpack.c.l.b16 %v399
    %v2127 = vunpack.c.h.b16 %v399
    %v2128 = vunpack.c.l.b16 %v400
    %v2129 = vunpack.c.h.b16 %v400
    %v2130 = vunpack.c.l.b16 %v401
    %v2131 = vunpack.c.h.b16 %v401
    %v2132 = vunpack.c.l.b16 %v402
    %v2133 = vunpack.c.h.b16 %v402
    %v2134 = vunpack.c.l.b16 %v403
    %v2135 = vunpack.c.h.b16 %v403
    %v2136 = vunpack.c.l.b16 %v404
    %v2137 = vunpack.c.h.b16 %v404
    %v2138 = vunpack.c.l.b16 %v405
    %v2139 = vunpack.c.h.b16 %v405
    %v2140 = vunpack.c.l.b16 %v406
    %v2141 = vunpack.c.h.b16 %v406
    %v2142 = vunpack.c.l.b16 %v407
    %v2143 = vunpack.c.h.b16 %v407
    %v2144 = vunpack.c.l.b16 %v408
    %v2145 = vunpack.c.h.b16 %v408
    %v2146 = vunpack.c.l.b16 %v409
    %v2147 = vunpack.c.h.b16 %v409
    %v2148 = vunpack.c.l.b16 %v410
    %v2149 = vunpack.c.h.b16 %v410
    %v2150 = vunpack.c.l.b16 %v411
    %v2151 = vunpack.c.h.b16 %v411
    %v2152 = vunpack.c.l.b16 %v412
    %v2153 = vunpack.c.h.b16 %v412
    %v2154 = vunpack.c.l.b16 %v413
    %v2155 = vunpack.c.h.b16 %v413
    %v2156 = vunpack.c.l.b16 %v414
    %v2157 = vunpack.c.h.b16 %v414
    %v2158 = vunpack.c.l.b16 %v415
    %v2159 = vunpack.c.h.b16 %v415
    %v2160 = vunpack.c.l.b16 %v416
    %v2161 = vunpack.c.h.b16 %v416
    %v2162 = vunpack.c.l.b16 %v417
    %v2163 = vunpack.c.h.b16 %v417
    %v2164 = vunpack.c.l.b16 %v418
    %v2165 = vunpack.c.h.b16 %v418
    %v2166 = vunpack.c.l.b16 %v419
    %v2167 = vunpack.c.h.b16 %v419
    %v2168 = vunpack.c.l.b16 %v420
    %v2169 = vunpack.c.h.b16 %v420
    %v2170 = vunpack.c.l.b16 %v421
    %v2171 = vunpack.c.h.b16 %v421
    %v2172 = vunpack.c.l.b16 %v422
    %v2173 = vunpack.c.h.b16 %v422
    %v2174 = vunpack.c.l.b16 %v423
    %v2175 = vunpack.c.h.b16 %v423
    %v2176 = vunpack.c.l.b16 %v424
    %v2177 = vunpack.c.h.b16 %v424
    %v2178 = vunpack.c.l.b16 %v425
    %v2179 = vunpack.c.h.b16 %v425
    %v2180 = vunpack.c.l.b16 %v426
    %v2181 = vunpack.c.h.b16 %v426
    %v2182 = vunpack.c.l.b16 %v427
    %v2183 = vunpack.c.h.b16 %v427
    %v2184 = vunpack.c.l.b16 %v428
    %v2185 = vunpack.c.h.b16 %v428
    %v2186 = vunpack.c.l.b16 %v429
    %v2187 = vunpack.c.h.b16 %v429
    %v2188 = vunpack.c.l.b16 %v430
    %v2189 = vunpack.c.h.b16 %v430
    %v2190 = vunpack.c.l.b16 %v431
    %v2191 = vunpack.c.h.b16 %v431
    %v2192 = vunpack.c.l.b16 %v432
    %v2193 = vunpack.c.h.b16 %v432
    %v2194 = vunpack.c.l.b16 %v433
    %v2195 = vunpack.c.h.b16 %v433
    %v2196 = vunpack.c.l.b16 %v434
    %v2197 = vunpack.c.h.b16 %v434
    %v2198 = vunpack.c.l.b16 %v435
    %v2199 = vunpack.c.h.b16 %v435
    %v2200 = vunpack.c.l.b16 %v436
    %v2201 = vunpack.c.h.b16 %v436
    %v2202 = vunpack.c.l.b16 %v437
    %v2203 = vunpack.c.h.b16 %v437
    %v2204 = vunpack.c.l.b16 %v438
    %v2205 = vunpack.c.h.b16 %v438
    %v2206 = vunpack.c.l.b16 %v439
    %v2207 = vunpack.c.h.b16 %v439
    %v2208 = vunpack.c.l.b16 %v440
    %v2209 = vunpack.c.h.b16 %v440
    %v2210 = vunpack.c.l.b16 %v441
    %v2211 = vunpack.c.h.b16 %v441
    %v2212 = vunpack.c.l.b16 %v442
    %v2213 = vunpack.c.h.b16 %v442
    %v2214 = vunpack.c.l.b16 %v443
    %v2215 = vunpack.c.h.b16 %v443
    %v2216 = vunpack.c.l.b16 %v444
    %v2217 = vunpack.c.h.b16 %v444
    %v2218 = vunpack.c.l.b16 %v445
    %v2219 = vunpack.c.h.b16 %v445
    %v2220 = vunpack.c.l.b16 %v446
    %v2221 = vunpack.c.h.b16 %v446
    %v2222 = vunpack.c.l.b16 %v447
    %v2223 = vunpack.c.h.b16 %v447
    %v2224 = vunpack.c.l.b16 %v448
    %v2225 = vunpack.c.h.b16 %v448
    %v2226 = vunpack.c.l.b16 %v449
    %v2227 = vunpack.c.h.b16 %v449
    %v2228 = vunpack.c.l.b16 %v450
    %v2229 = vunpack.c.h.b16 %v450
    %v2230 = vunpack.c.l.b16 %v451
    %v2231 = vunpack.c.h.b16 %v451
    %v2232 = vunpack.c.l.b16 %v452
    %v2233 = vunpack.c.h.b16 %v452
    %v2234 = vunpack.c.l.b16 %v453
    %v2235 = vunpack.c.h.b16 %v453
    %v2236 = vunpack.c.l.b16 %v454
    %v2237 = vunpack.c.h.b16 %v454
    %v2238 = vunpack.c.l.b16 %v455
    %v2239 = vunpack.c.h.b16 %v455
    %v2240 = vunpack.c.l.b16 %v456
    %v2241 = vunpack.c.h.b16 %v456
    %v2242 = vunpack.c.l.b16 %v457
    %v2243 = vunpack.c.h.b16 %v457
    %v2244 = vunpack.c.l.b16 %v458
    %v2245 = vunpack.c.h.b16 %v458
    %v2246 = vunpack.c.l.b16 %v459
    %v2247 = vunpack.c.h.b16 %v459
    %v2248 = vunpack.c.l.b16 %v460
    %v2249 = vunpack.c.h.b16 %v460
    %v2250 = vunpack.c.l.b16 %v461
    %v2251 = vunpack.c.h.b16 %v461
    %v2252 = vunpack.c.l.b16 %v462
    %v2253 = vunpack.c.h.b16 %v462
    %v2254 = vunpack.c.l.b16 %v463
    %v2255 = vunpack.c.h.b16 %v463
    %v2256 = vunpack.c.l.b16 %v464
    %v2257 = vunpack.c.h.b16 %v464
    %v2258 = vunpack.c.l.b16 %v465
    %v2259 = vunpack.c.h.b16 %v465
    %v2260 = vunpack.c.l.b16 %v466
    %v2261 = vunpack.c.h.b16 %v466
    %v2262 = vunpack.c.l.b16 %v467
    %v2263 = vunpack.c.h.b16 %v467
    %v2264 = vunpack.c.l.b16 %v468
    %v2265 = vunpack.c.h.b16 %v468
    %v2266 = vunpack.c.l.b16 %v469
    %v2267 = vunpack.c.h.b16 %v469
    %v2268 = vunpack.c.l.b16 %v470
    %v2269 = vunpack.c.h.b16 %v470
    %v2270 = vunpack.c.l.b16 %v471
    %v2271 = vunpack.c.h.b16 %v471
    %v2272 = vunpack.c.l.b16 %v472
    %v2273 = vunpack.c.h.b16 %v472
    %v2274 = vunpack.c.l.b16 %v473
    %v2275 = vunpack.c.h.b16 %v473
    %v2276 = vunpack.c.l.b16 %v474
    %v2277 = vunpack.c.h.b16 %v474
    %v2278 = vunpack.c.l.b16 %v475
    %v2279 = vunpack.c.h.b16 %v475
    %v2280 = vunpack.c.l.b16 %v476
    %v2281 = vunpack.c.h.b16 %v476
    %v2282 = vunpack.c.l.b16 %v477
    %v2283 = vunpack.c.h.b16 %v477
    %v2284 = vunpack.c.l.b16 %v478
    %v2285 = vunpack.c.h.b16 %v478
    %v2286 = vunpack.c.l.b16 %v479
    %v2287 = vunpack.c.h.b16 %v479
    %v2288 = vunpack.c.l.b16 %v480
    %v2289 = vunpack.c.h.b16 %v480
    %v2290 = vunpack.c.l.b16 %v481
    %v2291 = vunpack.c.h.b16 %v481
    %v2292 = vunpack.c.l.b16 %v482
    %v2293 = vunpack.c.h.b16 %v482
    %v2294 = vunpack.c.l.b16 %v483
    %v2295 = vunpack.c.h.b16 %v483
    %v2296 = vunpack.c.l.b16 %v484
    %v2297 = vunpack.c.h.b16 %v484
    %v2298 = vunpack.c.l.b16 %v485
    %v2299 = vunpack.c.h.b16 %v485
    %v2300 = vunpack.c.l.b16 %v486
    %v2301 = vunpack.c.h.b16 %v486
    %v2302 = vunpack.c.l.b16 %v487
    %v2303 = vunpack.c.h.b16 %v487
    %v2304 = vunpack.c.l.b16 %v488
    %v2305 = vunpack.c.h.b16 %v488
    %v2306 = vunpack.c.l.b16 %v489
    %v2307 = vunpack.c.h.b16 %v489
    %v2308 = vunpack.c.l.b16 %v490
    %v2309 = vunpack.c.h.b16 %v490
    %v2310 = vunpack.c.l.b16 %v491
    %v2311 = vunpack.c.h.b16 %v491
    %v2312 = vunpack.c.l.b16 %v492
    %v2313 = vunpack.c.h.b16 %v492
    %v2314 = vunpack.c.l.b16 %v493
    %v2315 = vunpack.c.h.b16 %v493
    %v2316 = vunpack.c.l.b16 %v494
    %v2317 = vunpack.c.h.b16 %v494
    %v2318 = vunpack.c.l.b16 %v495
    %v2319 = vunpack.c.h.b16 %v495
    %v2320 = vunpack.c.l.b16 %v496
    %v2321 = vunpack.c.h.b16 %v496
    %v2322 = vunpack.c.l.b16 %v497
    %v2323 = vunpack.c.h.b16 %v497
    %v2324 = vunpack.c.l.b16 %v498
    %v2325 = vunpack.c.h.b16 %v498
    %v2326 = vunpack.c.l.b16 %v499
    %v2327 = vunpack.c.h.b16 %v499
    %v2328 = vunpack.c.l.b16 %v500
    %v2329 = vunpack.c.h.b16 %v500
    %v2330 = vunpack.c.l.b16 %v501
    %v2331 = vunpack.c.h.b16 %v501
    %v2332 = vunpack.c.l.b16 %v502
    %v2333 = vunpack.c.h.b16 %v502
    %v2334 = vunpack.c.l.b16 %v503
    %v2335 = vunpack.c.h.b16 %v503
    %v2336 = vunpack.c.l.b16 %v504
    %v2337 = vunpack.c.h.b16 %v504
    %v2338 = vunpack.c.l.b16 %v505
    %v2339 = vunpack.c.h.b16 %v505
    %v2340 = vunpack.c.l.b16 %v506
    %v2341 = vunpack.c.h.b16 %v506
    %v2342 = vunpack.c.l.b16 %v507
    %v2343 = vunpack.c.h.b16 %v507
    %v2344 = vunpack.c.l.b16 %v508
    %v2345 = vunpack.c.h.b16 %v508
    %v2346 = vunpack.c.l.b16 %v509
    %v2347 = vunpack.c.h.b16 %v509
    %v2348 = vunpack.c.l.b16 %v510
    %v2349 = vunpack.c.h.b16 %v510
    %v2350 = vunpack.c.l.b16 %v511
    %v2351 = vunpack.c.h.b16 %v511
    %v2352 = vunpack.c.l.b16 %v512
    %v2353 = vunpack.c.h.b16 %v512
    %v2354 = vunpack.c.l.b16 %v513
    %v2355 = vunpack.c.h.b16 %v513
    %v2356 = vunpack.c.l.b16 %v514
    %v2357 = vunpack.c.h.b16 %v514
    %v2358 = vunpack.c.l.b16 %v515
    %v2359 = vunpack.c.h.b16 %v515
    %v2360 = vunpack.c.l.b16 %v516
    %v2361 = vunpack.c.h.b16 %v516
    %v2362 = vunpack.c.l.b16 %v517
    %v2363 = vunpack.c.h.b16 %v517
    %v2364 = vunpack.c.l.b16 %v518
    %v2365 = vunpack.c.h.b16 %v518
    %v2366 = vunpack.c.l.b16 %v519
    %v2367 = vunpack.c.h.b16 %v519
    %v2368 = vunpack.c.l.b16 %v520
    %v2369 = vunpack.c.h.b16 %v520
    %v2370 = vunpack.c.l.b16 %v521
    %v2371 = vunpack.c.h.b16 %v521
    %v2372 = vunpack.c.l.b16 %v522
    %v2373 = vunpack.c.h.b16 %v522
    %v2374 = vunpack.c.l.b16 %v523
    %v2375 = vunpack.c.h.b16 %v523
    %v2376 = vunpack.c.l.b16 %v524
    %v2377 = vunpack.c.h.b16 %v524
    %v2378 = vunpack.c.l.b16 %v525
    %v2379 = vunpack.c.h.b16 %v525
    %v2380 = vunpack.c.l.b16 %v526
    %v2381 = vunpack.c.h.b16 %v526
    %v2382 = vunpack.c.l.b16 %v527
    %v2383 = vunpack.c.h.b16 %v527
    %v2384 = vunpack.c.l.b16 %v528
    %v2385 = vunpack.c.h.b16 %v528
    %v2386 = vunpack.c.l.b16 %v529
    %v2387 = vunpack.c.h.b16 %v529
    %v2388 = vunpack.c.l.b16 %v530
    %v2389 = vunpack.c.h.b16 %v530
    %v2390 = vunpack.c.l.b16 %v531
    %v2391 = vunpack.c.h.b16 %v531
    %v2392 = vunpack.c.l.b16 %v532
    %v2393 = vunpack.c.h.b16 %v532
    %v2394 = vunpack.c.l.b16 %v533
    %v2395 = vunpack.c.h.b16 %v533
    %v2396 = vunpack.c.l.b16 %v534
    %v2397 = vunpack.c.h.b16 %v534
    %v2398 = vunpack.c.l.b16 %v535
    %v2399 = vunpack.c.h.b16 %v535
    %v2400 = vunpack.c.l.b16 %v536
    %v2401 = vunpack.c.h.b16 %v536
    %v2402 = vunpack.c.l.b16 %v537
    %v2403 = vunpack.c.h.b16 %v537
    %v2404 = vunpack.c.l.b16 %v538
    %v2405 = vunpack.c.h.b16 %v538
    %v2406 = vunpack.c.l.b16 %v539
    %v2407 = vunpack.c.h.b16 %v539
    %v2408 = vunpack.c.l.b16 %v540
    %v2409 = vunpack.c.h.b16 %v540
    %v2410 = vunpack.c.l.b16 %v541
    %v2411 = vunpack.c.h.b16 %v541
    %v2412 = vunpack.c.l.b16 %v542
    %v2413 = vunpack.c.h.b16 %v542
    %v2414 = vunpack.c.l.b16 %v543
    %v2415 = vunpack.c.h.b16 %v543
    %v2416 = vunpack.c.l.b16 %v544
    %v2417 = vunpack.c.h.b16 %v544
    %v2418 = vunpack.c.l.b16 %v545
    %v2419 = vunpack.c.h.b16 %v545
    %v2420 = vunpack.c.l.b16 %v546
    %v2421 = vunpack.c.h.b16 %v546
    %v2422 = vunpack.c.l.b16 %v547
    %v2423 = vunpack.c.h.b16 %v547
    %v2424 = vunpack.c.l.b16 %v548
    %v2425 = vunpack.c.h.b16 %v548
    %v2426 = vunpack.c.l.b16 %v549
    %v2427 = vunpack.c.h.b16 %v549
    %v2428 = vunpack.c.l.b16 %v550
    %v2429 = vunpack.c.h.b16 %v550
    %v2430 = vunpack.c.l.b16 %v551
    %v2431 = vunpack.c.h.b16 %v551
    %v2432 = vunpack.c.l.b16 %v552
    %v2433 = vunpack.c.h.b16 %v552
    %v2434 = vunpack.c.l.b16 %v553
    %v2435 = vunpack.c.h.b16 %v553
    %v2436 = vunpack.c.l.b16 %v554
    %v2437 = vunpack.c.h.b16 %v554
    %v2438 = vunpack.c.l.b16 %v555
    %v2439 = vunpack.c.h.b16 %v555
    %v2440 = vunpack.c.l.b16 %v556
    %v2441 = vunpack.c.h.b16 %v556
    %v2442 = vunpack.c.l.b16 %v557
    %v2443 = vunpack.c.h.b16 %v557
    %v2444 = vunpack.c.l.b16 %v558
    %v2445 = vunpack.c.h.b16 %v558
    %v2446 = vunpack.c.l.b16 %v559
    %v2447 = vunpack.c.h.b16 %v559
    %v2448 = vunpack.c.l.b16 %v560
    %v2449 = vunpack.c.h.b16 %v560
    %v2450 = vunpack.c.l.b16 %v561
    %v2451 = vunpack.c.h.b16 %v561
    %v2452 = vunpack.c.l.b16 %v562
    %v2453 = vunpack.c.h.b16 %v562
    %v2454 = vunpack.c.l.b16 %v563
    %v2455 = vunpack.c.h.b16 %v563
    %v2456 = vunpack.c.l.b16 %v564
    %v2457 = vunpack.c.h.b16 %v564
    %v2458 = vunpack.c.l.b16 %v565
    %v2459 = vunpack.c.h.b16 %v565
    %v2460 = vunpack.c.l.b16 %v566
    %v2461 = vunpack.c.h.b16 %v566
    %v2462 = vunpack.c.l.b16 %v567
    %v2463 = vunpack.c.h.b16 %v567
    %v2464 = vunpack.c.l.b16 %v568
    %v2465 = vunpack.c.h.b16 %v568
    %v2466 = vunpack.c.l.b16 %v569
    %v2467 = vunpack.c.h.b16 %v569
    %v2468 = vunpack.c.l.b16 %v570
    %v2469 = vunpack.c.h.b16 %v570
    %v2470 = vunpack.c.l.b16 %v571
    %v2471 = vunpack.c.h.b16 %v571
    %v2472 = vunpack.c.l.b16 %v572
    %v2473 = vunpack.c.h.b16 %v572
    %v2474 = vunpack.c.l.b16 %v573
    %v2475 = vunpack.c.h.b16 %v573
    %v2476 = vunpack.c.l.b16 %v574
    %v2477 = vunpack.c.h.b16 %v574
    %v2478 = vunpack.c.l.b16 %v575
    %v2479 = vunpack.c.h.b16 %v575
    %v2480 = vunpack.c.l.b16 %v576
    %v2481 = vunpack.c.h.b16 %v576
    %v2482 = vunpack.c.l.b16 %v577
    %v2483 = vunpack.c.h.b16 %v577
    %v2484 = vunpack.c.l.b16 %v578
    %v2485 = vunpack.c.h.b16 %v578
    %v2486 = vunpack.c.l.b16 %v579
    %v2487 = vunpack.c.h.b16 %v579
    %v2488 = vunpack.c.l.b16 %v580
    %v2489 = vunpack.c.h.b16 %v580
    %v2490 = vunpack.c.l.b16 %v581
    %v2491 = vunpack.c.h.b16 %v581
    %v2492 = vunpack.c.l.b16 %v582
    %v2493 = vunpack.c.h.b16 %v582
    %v2494 = vunpack.c.l.b16 %v583
    %v2495 = vunpack.c.h.b16 %v583
    %v2496 = vunpack.c.l.b16 %v584
    %v2497 = vunpack.c.h.b16 %v584
    %v2498 = vunpack.c.l.b16 %v585
    %v2499 = vunpack.c.h.b16 %v585
    %v2500 = vunpack.c.l.b16 %v586
    %v2501 = vunpack.c.h.b16 %v586
    %v2502 = vunpack.c.l.b16 %v587
    %v2503 = vunpack.c.h.b16 %v587
    %v2504 = vunpack.c.l.b16 %v588
    %v2505 = vunpack.c.h.b16 %v588
    %v2506 = vunpack.c.l.b16 %v589
    %v2507 = vunpack.c.h.b16 %v589
    %v2508 = vunpack.c.l.b16 %v590
    %v2509 = vunpack.c.h.b16 %v590
    %v2510 = vunpack.c.l.b16 %v591
    %v2511 = vunpack.c.h.b16 %v591
    %v2512 = vunpack.c.l.b16 %v592
    %v2513 = vunpack.c.h.b16 %v592
    %v2514 = vunpack.c.l.b16 %v593
    %v2515 = vunpack.c.h.b16 %v593
    %v2516 = vunpack.c.l.b16 %v594
    %v2517 = vunpack.c.h.b16 %v594
    %v2518 = vunpack.c.l.b16 %v595
    %v2519 = vunpack.c.h.b16 %v595
    %v2520 = vunpack.c.l.b16 %v596
    %v2521 = vunpack.c.h.b16 %v596
    %v2522 = vunpack.c.l.b16 %v597
    %v2523 = vunpack.c.h.b16 %v597
    %v2524 = vunpack.c.l.b16 %v598
    %v2525 = vunpack.c.h.b16 %v598
    %v2526 = vunpack.c.l.b16 %v599
    %v2527 = vunpack.c.h.b16 %v599
    %v2528 = vunpack.c.l.b16 %v600
    %v2529 = vunpack.c.h.b16 %v600
    %v2530 = vunpack.c.l.b16 %v601
    %v2531 = vunpack.c.h.b16 %v601
    %v2532 = vunpack.c.l.b16 %v602
    %v2533 = vunpack.c.h.b16 %v602
    %v2534 = vunpack.c.l.b16 %v603
    %v2535 = vunpack.c.h.b16 %v603
    %v2536 = vunpack.c.l.b16 %v604
    %v2537 = vunpack.c.h.b16 %v604
    %v2538 = vunpack.c.l.b16 %v605
    %v2539 = vunpack.c.h.b16 %v605
    %v2540 = vunpack.c.l.b16 %v606
    %v2541 = vunpack.c.h.b16 %v606
    %v2542 = vunpack.c.l.b16 %v607
    %v2543 = vunpack.c.h.b16 %v607
    %v2544 = vunpack.c.l.b16 %v608
    %v2545 = vunpack.c.h.b16 %v608
    %v2546 = vunpack.c.l.b16 %v609
    %v2547 = vunpack.c.h.b16 %v609
    %v2548 = vunpack.c.l.b16 %v610
    %v2549 = vunpack.c.h.b16 %v610
    %v2550 = vunpack.c.l.b16 %v611
    %v2551 = vunpack.c.h.b16 %v611
    %v2552 = vunpack.c.l.b16 %v612
    %v2553 = vunpack.c.h.b16 %v612
    %v2554 = vunpack.c.l.b16 %v613
    %v2555 = vunpack.c.h.b16 %v613
    %v2556 = vunpack.c.l.b16 %v614
    %v2557 = vunpack.c.h.b16 %v614
    %v2558 = vunpack.c.l.b16 %v615
    %v2559 = vunpack.c.h.b16 %v615
    %v2560 = vunpack.c.l.b16 %v616
    %v2561 = vunpack.c.h.b16 %v616
    %v2562 = vunpack.c.l.b16 %v617
    %v2563 = vunpack.c.h.b16 %v617
    %v2564 = vunpack.c.l.b16 %v618
    %v2565 = vunpack.c.h.b16 %v618
    %v2566 = vunpack.c.l.b16 %v619
    %v2567 = vunpack.c.h.b16 %v619
    %v2568 = vunpack.c.l.b16 %v620
    %v2569 = vunpack.c.h.b16 %v620
    %v2570 = vunpack.c.l.b16 %v621
    %v2571 = vunpack.c.h.b16 %v621
    %v2572 = vunpack.c.l.b16 %v622
    %v2573 = vunpack.c.h.b16 %v622
    %v2574 = vunpack.c.l.b16 %v623
    %v2575 = vunpack.c.h.b16 %v623
    %v2576 = vunpack.c.l.b16 %v624
    %v2577 = vunpack.c.h.b16 %v624
    %v2578 = vunpack.c.l.b16 %v625
    %v2579 = vunpack.c.h.b16 %v625
    %v2580 = vunpack.c.l.b16 %v626
    %v2581 = vunpack.c.h.b16 %v626
    %v2582 = vunpack.c.l.b16 %v627
    %v2583 = vunpack.c.h.b16 %v627
    %v2584 = vunpack.c.l.b16 %v628
    %v2585 = vunpack.c.h.b16 %v628
    %v2586 = vunpack.c.l.b16 %v629
    %v2587 = vunpack.c.h.b16 %v629
    %v2588 = vunpack.c.l.b16 %v630
    %v2589 = vunpack.c.h.b16 %v630
    %v2590 = vunpack.c.l.b16 %v631
    %v2591 = vunpack.c.h.b16 %v631
    %v2592 = vunpack.c.l.b16 %v632
    %v2593 = vunpack.c.h.b16 %v632
    %v2594 = vunpack.c.l.b16 %v633
    %v2595 = vunpack.c.h.b16 %v633
    %v2596 = vunpack.c.l.b16 %v634
    %v2597 = vunpack.c.h.b16 %v634
    %v2598 = vunpack.c.l.b16 %v635
    %v2599 = vunpack.c.h.b16 %v635
    %v2600 = vunpack.c.l.b16 %v636
    %v2601 = vunpack.c.h.b16 %v636
    %v2602 = vunpack.c.l.b16 %v637
    %v2603 = vunpack.c.h.b16 %v637
    %v2604 = vunpack.c.l.b16 %v638
    %v2605 = vunpack.c.h.b16 %v638
    %v2606 = vunpack.c.l.b16 %v639
    %v2607 = vunpack.c.h.b16 %v639
    %v2608 = vunpack.c.l.b16 %v640
    %v2609 = vunpack.c.h.b16 %v640
    %v2610 = vunpack.c.l.b16 %v641
    %v2611 = vunpack.c.h.b16 %v641
    %v2612 = vunpack.c.l.b16 %v642
    %v2613 = vunpack.c.h.b16 %v642
    %v2614 = vunpack.c.l.b16 %v643
    %v2615 = vunpack.c.h.b16 %v643
    %v2616 = vunpack.c.l.b16 %v644
    %v2617 = vunpack.c.h.b16 %v644
    %v2618 = vunpack.c.l.b16 %v645
    %v2619 = vunpack.c.h.b16 %v645
    %v2620 = vunpack.c.l.b16 %v646
    %v2621 = vunpack.c.h.b16 %v646
    %v2622 = vunpack.c.l.b16 %v647
    %v2623 = vunpack.c.h.b16 %v647
    %v2624 = vunpack.c.l.b16 %v648
    %v2625 = vunpack.c.h.b16 %v648
    %v2626 = vunpack.c.l.b16 %v649
    %v2627 = vunpack.c.h.b16 %v649
    %v2628 = vunpack.c.l.b16 %v650
    %v2629 = vunpack.c.h.b16 %v650
    %v2630 = vunpack.c.l.b16 %v651
    %v2631 = vunpack.c.h.b16 %v651
    %v2632 = vunpack.c.l.b16 %v652
    %v2633 = vunpack.c.h.b16 %v652
    %v2634 = vunpack.c.l.b16 %v653
    %v2635 = vunpack.c.h.b16 %v653
    %v2636 = vunpack.c.l.b16 %v654
    %v2637 = vunpack.c.h.b16 %v654
    %v2638 = vunpack.c.l.b16 %v655
    %v2639 = vunpack.c.h.b16 %v655
    %v2640 = vunpack.c.l.b16 %v656
    %v2641 = vunpack.c.h.b16 %v656
    %v2642 = vunpack.c.l.b16 %v657
    %v2643 = vunpack.c.h.b16 %v657
    %v2644 = vunpack.c.l.b16 %v658
    %v2645 = vunpack.c.h.b16 %v658
    %v2646 = vunpack.c.l.b16 %v659
    %v2647 = vunpack.c.h.b16 %v659
    %v2648 = vunpack.c.l.b16 %v660
    %v2649 = vunpack.c.h.b16 %v660
    %v2650 = vunpack.c.l.b16 %v661
    %v2651 = vunpack.c.h.b16 %v661
    %v2652 = vunpack.c.l.b16 %v662
    %v2653 = vunpack.c.h.b16 %v662
    %v2654 = vunpack.c.l.b16 %v663
    %v2655 = vunpack.c.h.b16 %v663
    %v2656 = vunpack.c.l.b16 %v664
    %v2657 = vunpack.c.h.b16 %v664
    %v2658 = vunpack.c.l.b16 %v665
    %v2659 = vunpack.c.h.b16 %v665
    %v2660 = vunpack.c.l.b16 %v666
    %v2661 = vunpack.c.h.b16 %v666
    %v2662 = vunpack.c.l.b16 %v667
    %v2663 = vunpack.c.h.b16 %v667
    %v2664 = vunpack.c.l.b16 %v668
    %v2665 = vunpack.c.h.b16 %v668
    %v2666 = vunpack.c.l.b16 %v669
    %v2667 = vunpack.c.h.b16 %v669
    %v2668 = vunpack.c.l.b16 %v670
    %v2669 = vunpack.c.h.b16 %v670
    %v2670 = vunpack.c.l.b16 %v671
    %v2671 = vunpack.c.h.b16 %v671
    %v2672 = vunpack.c.l.b16 %v672
    %v2673 = vunpack.c.h.b16 %v672
    %v2674 = vunpack.c.l.b16 %v673
    %v2675 = vunpack.c.h.b16 %v673
    %v2676 = vunpack.c.l.b16 %v674
    %v2677 = vunpack.c.h.b16 %v674
    %v2678 = vunpack.c.l.b16 %v675
    %v2679 = vunpack.c.h.b16 %v675
    %v2680 = vunpack.c.l.b16 %v676
    %v2681 = vunpack.c.h.b16 %v676
    %v2682 = vunpack.c.l.b16 %v677
    %v2683 = vunpack.c.h.b16 %v677
    %v2684 = vunpack.c.l.b16 %v678
    %v2685 = vunpack.c.h.b16 %v678
    %v2686 = vunpack.c.l.b16 %v679
    %v2687 = vunpack.c.h.b16 %v679
    %v2688 = vunpack.c.l.b16 %v680
    %v2689 = vunpack.c.h.b16 %v680
    %v2690 = vunpack.c.l.b16 %v681
    %v2691 = vunpack.c.h.b16 %v681
    %v2692 = vunpack.c.l.b16 %v682
    %v2693 = vunpack.c.h.b16 %v682
    %v2694 = vunpack.c.l.b16 %v683
    %v2695 = vunpack.c.h.b16 %v683
    %v2696 = vunpack.c.l.b16 %v684
    %v2697 = vunpack.c.h.b16 %v684
    %v2698 = vunpack.c.l.b16 %v685
    %v2699 = vunpack.c.h.b16 %v685
    %v2700 = vunpack.c.l.b16 %v686
    %v2701 = vunpack.c.h.b16 %v686
    %v2702 = vunpack.c.l.b16 %v687
    %v2703 = vunpack.c.h.b16 %v687
    %v2704 = vunpack.c.l.b16 %v688
    %v2705 = vunpack.c.h.b16 %v688
    %v2706 = vunpack.c.l.b16 %v689
    %v2707 = vunpack.c.h.b16 %v689
    %v2708 = vunpack.c.l.b16 %v690
    %v2709 = vunpack.c.h.b16 %v690
    %v2710 = vunpack.c.l.b16 %v691
    %v2711 = vunpack.c.h.b16 %v691
    %v2712 = vunpack.c.l.b16 %v692
    %v2713 = vunpack.c.h.b16 %v692
    %v2714 = vunpack.c.l.b16 %v693
    %v2715 = vunpack.c.h.b16 %v693
    %v2716 = vunpack.c.l.b16 %v694
    %v2717 = vunpack.c.h.b16 %v694
    %v2718 = vunpack.c.l.b16 %v695
    %v2719 = vunpack.c.h.b16 %v695
    %v2720 = vunpack.c.l.b16 %v696
    %v2721 = vunpack.c.h.b16 %v696
    %v2722 = vunpack.c.l.b16 %v697
    %v2723 = vunpack.c.h.b16 %v697
    %v2724 = vunpack.c.l.b16 %v698
    %v2725 = vunpack.c.h.b16 %v698
    %v2726 = vunpack.c.l.b16 %v699
    %v2727 = vunpack.c.h.b16 %v699
    %v2728 = vunpack.c.l.b16 %v700
    %v2729 = vunpack.c.h.b16 %v700
    %v2730 = vunpack.c.l.b16 %v701
    %v2731 = vunpack.c.h.b16 %v701
    %v2732 = vunpack.c.l.b16 %v702
    %v2733 = vunpack.c.h.b16 %v702
    %v2734 = vunpack.c.l.b16 %v703
    %v2735 = vunpack.c.h.b16 %v703
    %v2736 = vunpack.c.l.b16 %v704
    %v2737 = vunpack.c.h.b16 %v704
    %v2738 = vunpack.c.l.b16 %v705
    %v2739 = vunpack.c.h.b16 %v705
    %v2740 = vunpack.c.l.b16 %v706
    %v2741 = vunpack.c.h.b16 %v706
    %v2742 = vunpack.c.l.b16 %v707
    %v2743 = vunpack.c.h.b16 %v707
    %v2744 = vunpack.c.l.b16 %v708
    %v2745 = vunpack.c.h.b16 %v708
    %v2746 = vunpack.c.l.b16 %v709
    %v2747 = vunpack.c.h.b16 %v709
    %v2748 = vunpack.c.l.b16 %v710
    %v2749 = vunpack.c.h.b16 %v710
    %v2750 = vunpack.c.l.b16 %v711
    %v2751 = vunpack.c.h.b16 %v711
    %v2752 = vunpack.c.l.b16 %v712
    %v2753 = vunpack.c.h.b16 %v712
    %v2754 = vunpack.c.l.b16 %v713
    %v2755 = vunpack.c.h.b16 %v713
    %v2756 = vunpack.c.l.b16 %v714
    %v2757 = vunpack.c.h.b16 %v714
    %v2758 = vunpack.c.l.b16 %v715
    %v2759 = vunpack.c.h.b16 %v715
    %v2760 = vunpack.c.l.b16 %v716
    %v2761 = vunpack.c.h.b16 %v716
    %v2762 = vunpack.c.l.b16 %v717
    %v2763 = vunpack.c.h.b16 %v717
    %v2764 = vunpack.c.l.b16 %v718
    %v2765 = vunpack.c.h.b16 %v718
    %v2766 = vunpack.c.l.b16 %v719
    %v2767 = vunpack.c.h.b16 %v719
    %v2768 = vunpack.c.l.b16 %v720
    %v2769 = vunpack.c.h.b16 %v720
    %v2770 = vunpack.c.l.b16 %v721
    %v2771 = vunpack.c.h.b16 %v721
    %v2772 = vunpack.c.l.b16 %v722
    %v2773 = vunpack.c.h.b16 %v722
    %v2774 = vunpack.c.l.b16 %v723
    %v2775 = vunpack.c.h.b16 %v723
    %v2776 = vunpack.c.l.b16 %v724
    %v2777 = vunpack.c.h.b16 %v724
    %v2778 = vunpack.c.l.b16 %v725
    %v2779 = vunpack.c.h.b16 %v725
    %v2780 = vunpack.c.l.b16 %v726
    %v2781 = vunpack.c.h.b16 %v726
    %v2782 = vunpack.c.l.b16 %v727
    %v2783 = vunpack.c.h.b16 %v727
    %v2784 = vunpack.c.l.b16 %v728
    %v2785 = vunpack.c.h.b16 %v728
    %v2786 = vunpack.c.l.b16 %v729
    %v2787 = vunpack.c.h.b16 %v729
    %v2788 = vunpack.c.l.b16 %v730
    %v2789 = vunpack.c.h.b16 %v730
    %v2790 = vunpack.c.l.b16 %v731
    %v2791 = vunpack.c.h.b16 %v731
    %v2792 = vunpack.c.l.b16 %v732
    %v2793 = vunpack.c.h.b16 %v732
    %v2794 = vunpack.c.l.b16 %v733
    %v2795 = vunpack.c.h.b16 %v733
    %v2796 = vunpack.c.l.b16 %v734
    %v2797 = vunpack.c.h.b16 %v734
    %v2798 = vunpack.c.l.b16 %v735
    %v2799 = vunpack.c.h.b16 %v735
    %v2800 = vunpack.c.l.b16 %v736
    %v2801 = vunpack.c.h.b16 %v736
    %v2802 = vunpack.c.l.b16 %v737
    %v2803 = vunpack.c.h.b16 %v737
    %v2804 = vunpack.c.l.b16 %v738
    %v2805 = vunpack.c.h.b16 %v738
    %v2806 = vunpack.c.l.b16 %v739
    %v2807 = vunpack.c.h.b16 %v739
    %v2808 = vunpack.c.l.b16 %v740
    %v2809 = vunpack.c.h.b16 %v740
    %v2810 = vunpack.c.l.b16 %v741
    %v2811 = vunpack.c.h.b16 %v741
    %v2812 = vunpack.c.l.b16 %v742
    %v2813 = vunpack.c.h.b16 %v742
    %v2814 = vunpack.c.l.b16 %v743
    %v2815 = vunpack.c.h.b16 %v743
    %v2816 = vunpack.c.l.b16 %v744
    %v2817 = vunpack.c.h.b16 %v744
    %v2818 = vunpack.c.l.b16 %v745
    %v2819 = vunpack.c.h.b16 %v745
    %v2820 = vunpack.c.l.b16 %v746
    %v2821 = vunpack.c.h.b16 %v746
    %v2822 = vunpack.c.l.b16 %v747
    %v2823 = vunpack.c.h.b16 %v747
    %v2824 = vunpack.c.l.b16 %v748
    %v2825 = vunpack.c.h.b16 %v748
    %v2826 = vunpack.c.l.b16 %v749
    %v2827 = vunpack.c.h.b16 %v749
    %v2828 = vunpack.c.l.b16 %v750
    %v2829 = vunpack.c.h.b16 %v750
    %v2830 = vunpack.c.l.b16 %v751
    %v2831 = vunpack.c.h.b16 %v751
    %v2832 = vunpack.c.l.b16 %v752
    %v2833 = vunpack.c.h.b16 %v752
    %v2834 = vunpack.c.l.b16 %v753
    %v2835 = vunpack.c.h.b16 %v753
    %v2836 = vunpack.c.l.b16 %v754
    %v2837 = vunpack.c.h.b16 %v754
    %v2838 = vunpack.c.l.b16 %v755
    %v2839 = vunpack.c.h.b16 %v755
    %v2840 = vunpack.c.l.b16 %v756
    %v2841 = vunpack.c.h.b16 %v756
    %v2842 = vunpack.c.l.b16 %v757
    %v2843 = vunpack.c.h.b16 %v757
    %v2844 = vunpack.c.l.b16 %v758
    %v2845 = vunpack.c.h.b16 %v758
    %v2846 = vunpack.c.l.b16 %v759
    %v2847 = vunpack.c.h.b16 %v759
    %v2848 = vunpack.c.l.b16 %v760
    %v2849 = vunpack.c.h.b16 %v760
    %v2850 = vunpack.c.l.b16 %v761
    %v2851 = vunpack.c.h.b16 %v761
    %v2852 = vunpack.c.l.b16 %v762
    %v2853 = vunpack.c.h.b16 %v762
    %v2854 = vunpack.c.l.b16 %v763
    %v2855 = vunpack.c.h.b16 %v763
    %v2856 = vunpack.c.l.b16 %v764
    %v2857 = vunpack.c.h.b16 %v764
    %v2858 = vunpack.c.l.b16 %v765
    %v2859 = vunpack.c.h.b16 %v765
    %v2860 = vunpack.c.l.b16 %v766
    %v2861 = vunpack.c.h.b16 %v766
    %v2862 = vunpack.c.l.b16 %v767
    %v2863 = vunpack.c.h.b16 %v767
    %v2864 = vunpack.c.l.b16 %v768
    %v2865 = vunpack.c.h.b16 %v768
    %v2866 = vunpack.c.l.b16 %v769
    %v2867 = vunpack.c.h.b16 %v769
    %v2868 = vunpack.c.l.b16 %v770
    %v2869 = vunpack.c.h.b16 %v770
    %v2870 = vunpack.c.l.b16 %v771
    %v2871 = vunpack.c.h.b16 %v771
    %v2872 = vunpack.c.l.b16 %v772
    %v2873 = vunpack.c.h.b16 %v772
    %v2874 = vunpack.c.l.b16 %v773
    %v2875 = vunpack.c.h.b16 %v773
    %v2876 = vunpack.c.l.b16 %v774
    %v2877 = vunpack.c.h.b16 %v774
    %v2878 = vunpack.c.l.b16 %v775
    %v2879 = vunpack.c.h.b16 %v775
    %v2880 = vunpack.c.l.b16 %v776
    %v2881 = vunpack.c.h.b16 %v776
    %v2882 = vunpack.c.l.b16 %v777
    %v2883 = vunpack.c.h.b16 %v777
    %v2884 = vunpack.c.l.b16 %v778
    %v2885 = vunpack.c.h.b16 %v778
    %v2886 = vunpack.c.l.b16 %v779
    %v2887 = vunpack.c.h.b16 %v779
    %v2888 = vunpack.c.l.b16 %v780
    %v2889 = vunpack.c.h.b16 %v780
    %v2890 = vunpack.c.l.b16 %v781
    %v2891 = vunpack.c.h.b16 %v781
    %v2892 = vunpack.c.l.b16 %v782
    %v2893 = vunpack.c.h.b16 %v782
    %v2894 = vunpack.c.l.b16 %v783
    %v2895 = vunpack.c.h.b16 %v783
    %v2896 = vunpack.c.l.b16 %v784
    %v2897 = vunpack.c.h.b16 %v784
    %v2898 = vunpack.c.l.b16 %v785
    %v2899 = vunpack.c.h.b16 %v785
    %v2900 = vunpack.c.l.b16 %v786
    %v2901 = vunpack.c.h.b16 %v786
    %v2902 = vunpack.c.l.b16 %v787
    %v2903 = vunpack.c.h.b16 %v787
    %v2904 = vunpack.c.l.b16 %v788
    %v2905 = vunpack.c.h.b16 %v788
    %v2906 = vunpack.c.l.b16 %v789
    %v2907 = vunpack.c.h.b16 %v789
    %v2908 = vunpack.c.l.b16 %v790
    %v2909 = vunpack.c.h.b16 %v790
    %v2910 = vunpack.c.l.b16 %v791
    %v2911 = vunpack.c.h.b16 %v791
    %v2912 = vunpack.c.l.b16 %v792
    %v2913 = vunpack.c.h.b16 %v792
    %v2914 = vunpack.c.l.b16 %v793
    %v2915 = vunpack.c.h.b16 %v793
    %v2916 = vunpack.c.l.b16 %v794
    %v2917 = vunpack.c.h.b16 %v794
    %v2918 = vunpack.c.l.b16 %v795
    %v2919 = vunpack.c.h.b16 %v795
    %v2920 = vunpack.c.l.b16 %v796
    %v2921 = vunpack.c.h.b16 %v796
    %v2922 = vunpack.c.l.b16 %v797
    %v2923 = vunpack.c.h.b16 %v797
    %v2924 = vunpack.c.l.b16 %v798
    %v2925 = vunpack.c.h.b16 %v798
    %v2926 = vunpack.c.l.b16 %v799
    %v2927 = vunpack.c.h.b16 %v799
    %v2928 = vunpack.c.l.b16 %v800
    %v2929 = vunpack.c.h.b16 %v800
    %v2930 = vunpack.c.l.b16 %v801
    %v2931 = vunpack.c.h.b16 %v801
    %v2932 = vunpack.c.l.b16 %v802
    %v2933 = vunpack.c.h.b16 %v802
    %v2934 = vunpack.c.l.b16 %v803
    %v2935 = vunpack.c.h.b16 %v803
    %v2936 = vunpack.c.l.b16 %v804
    %v2937 = vunpack.c.h.b16 %v804
    %v2938 = vunpack.c.l.b16 %v805
    %v2939 = vunpack.c.h.b16 %v805
    %v2940 = vunpack.c.l.b16 %v806
    %v2941 = vunpack.c.h.b16 %v806
    %v2942 = vunpack.c.l.b16 %v807
    %v2943 = vunpack.c.h.b16 %v807
    %v2944 = vunpack.c.l.b16 %v808
    %v2945 = vunpack.c.h.b16 %v808
    %v2946 = vunpack.c.l.b16 %v809
    %v2947 = vunpack.c.h.b16 %v809
    %v2948 = vunpack.c.l.b16 %v810
    %v2949 = vunpack.c.h.b16 %v810
    %v2950 = vunpack.c.l.b16 %v811
    %v2951 = vunpack.c.h.b16 %v811
    %v2952 = vunpack.c.l.b16 %v812
    %v2953 = vunpack.c.h.b16 %v812
    %v2954 = vunpack.c.l.b16 %v813
    %v2955 = vunpack.c.h.b16 %v813
    %v2956 = vunpack.c.l.b16 %v814
    %v2957 = vunpack.c.h.b16 %v814
    %v2958 = vunpack.c.l.b16 %v815
    %v2959 = vunpack.c.h.b16 %v815
    %v2960 = vunpack.c.l.b16 %v816
    %v2961 = vunpack.c.h.b16 %v816
    %v2962 = vunpack.c.l.b16 %v817
    %v2963 = vunpack.c.h.b16 %v817
    %v2964 = vunpack.c.l.b16 %v818
    %v2965 = vunpack.c.h.b16 %v818
    %v2966 = vunpack.c.l.b16 %v819
    %v2967 = vunpack.c.h.b16 %v819
    %v2968 = vunpack.c.l.b16 %v820
    %v2969 = vunpack.c.h.b16 %v820
    %v2970 = vunpack.c.l.b16 %v821
    %v2971 = vunpack.c.h.b16 %v821
    %v2972 = vunpack.c.l.b16 %v822
    %v2973 = vunpack.c.h.b16 %v822
    %v2974 = vunpack.c.l.b16 %v823
    %v2975 = vunpack.c.h.b16 %v823
    %v2976 = vunpack.c.l.b16 %v824
    %v2977 = vunpack.c.h.b16 %v824
    %v2978 = vunpack.c.l.b16 %v825
    %v2979 = vunpack.c.h.b16 %v825
    %v2980 = vunpack.c.l.b16 %v826
    %v2981 = vunpack.c.h.b16 %v826
    %v2982 = vunpack.c.l.b16 %v827
    %v2983 = vunpack.c.h.b16 %v827
    %v2984 = vunpack.c.l.b16 %v828
    %v2985 = vunpack.c.h.b16 %v828
    %v2986 = vunpack.c.l.b16 %v829
    %v2987 = vunpack.c.h.b16 %v829
    %v2988 = vunpack.c.l.b16 %v830
    %v2989 = vunpack.c.h.b16 %v830
    %v2990 = vunpack.c.l.b16 %v831
    %v2991 = vunpack.c.h.b16 %v831
    %v2992 = vunpack.c.l.b16 %v832
    %v2993 = vunpack.c.h.b16 %v832
    %v2994 = vunpack.c.l.b16 %v833
    %v2995 = vunpack.c.h.b16 %v833
    %v2996 = vunpack.c.l.b16 %v834
    %v2997 = vunpack.c.h.b16 %v834
    %v2998 = vunpack.c.l.b16 %v835
    %v2999 = vunpack.c.h.b16 %v835
    %v3000 = vunpack.c.l.b16 %v836
    %v3001 = vunpack.c.h.b16 %v836
    %v3002 = vunpack.c.l.b16 %v837
    %v3003 = vunpack.c.h.b16 %v837
    %v3004 = vunpack.c.l.b16 %v838
    %v3005 = vunpack.c.h.b16 %v838
    %v3006 = vunpack.c.l.b16 %v839
    %v3007 = vunpack.c.h.b16 %v839
    %v3008 = vunpack.c.l.b16 %v840
    %v3009 = vunpack.c.h.b16 %v840
    %v3010 = vunpack.c.l.b16 %v841
    %v3011 = vunpack.c.h.b16 %v841
    %v3012 = vunpack.c.l.b16 %v842
    %v3013 = vunpack.c.h.b16 %v842
    %v3014 = vunpack.c.l.b16 %v843
    %v3015 = vunpack.c.h.b16 %v843
    %v3016 = vunpack.c.l.b16 %v844
    %v3017 = vunpack.c.h.b16 %v844
    %v3018 = vunpack.c.l.b16 %v845
    %v3019 = vunpack.c.h.b16 %v845
    %v3020 = vunpack.c.l.b16 %v846
    %v3021 = vunpack.c.h.b16 %v846
    %v3022 = vunpack.c.l.b16 %v847
    %v3023 = vunpack.c.h.b16 %v847
    %v3024 = vunpack.c.l.b16 %v848
    %v3025 = vunpack.c.h.b16 %v848
    %v3026 = vunpack.c.l.b16 %v849
    %v3027 = vunpack.c.h.b16 %v849
    %v3028 = vunpack.c.l.b16 %v850
    %v3029 = vunpack.c.h.b16 %v850
    %v3030 = vunpack.c.l.b16 %v851
    %v3031 = vunpack.c.h.b16 %v851
    %v3032 = vunpack.c.l.b16 %v852
    %v3033 = vunpack.c.h.b16 %v852
    %v3034 = vunpack.c.l.b16 %v853
    %v3035 = vunpack.c.h.b16 %v853
    %v3036 = vunpack.c.l.b16 %v854
    %v3037 = vunpack.c.h.b16 %v854
    %v3038 = vunpack.c.l.b16 %v855
    %v3039 = vunpack.c.h.b16 %v855
    %v3040 = vunpack.c.l.b16 %v856
    %v3041 = vunpack.c.h.b16 %v856
    %v3042 = vunpack.c.l.b16 %v857
    %v3043 = vunpack.c.h.b16 %v857
    %v3044 = vunpack.c.l.b16 %v858
    %v3045 = vunpack.c.h.b16 %v858
    %v3046 = vunpack.c.l.b16 %v859
    %v3047 = vunpack.c.h.b16 %v859
    %v3048 = vunpack.c.l.b16 %v860
    %v3049 = vunpack.c.h.b16 %v860
    %v3050 = vunpack.c.l.b16 %v861
    %v3051 = vunpack.c.h.b16 %v861
    %v3052 = vunpack.c.l.b16 %v862
    %v3053 = vunpack.c.h.b16 %v862
    %v3054 = vunpack.c.l.b16 %v863
    %v3055 = vunpack.c.h.b16 %v863
    %v3056 = vunpack.c.l.b16 %v864
    %v3057 = vunpack.c.h.b16 %v864
    %v3058 = vunpack.c.l.b16 %v865
    %v3059 = vunpack.c.h.b16 %v865
    %v3060 = vunpack.c.l.b16 %v866
    %v3061 = vunpack.c.h.b16 %v866
    %v3062 = vunpack.c.l.b16 %v867
    %v3063 = vunpack.c.h.b16 %v867
    %v3064 = vunpack.c.l.b16 %v868
    %v3065 = vunpack.c.h.b16 %v868
    %v3066 = vunpack.c.l.b16 %v869
    %v3067 = vunpack.c.h.b16 %v869
    %v3068 = vunpack.c.l.b16 %v870
    %v3069 = vunpack.c.h.b16 %v870
    %v3070 = vunpack.c.l.b16 %v871
    %v3071 = vunpack.c.h.b16 %v871
    %v3072 = vunpack.c.l.b16 %v872
    %v3073 = vunpack.c.h.b16 %v872
    %v3074 = vunpack.c.l.b16 %v873
    %v3075 = vunpack.c.h.b16 %v873
    %v3076 = vunpack.c.l.b16 %v874
    %v3077 = vunpack.c.h.b16 %v874
    %v3078 = vunpack.c.l.b16 %v875
    %v3079 = vunpack.c.h.b16 %v875
    %v3080 = vunpack.c.l.b16 %v876
    %v3081 = vunpack.c.h.b16 %v876
    %v3082 = vunpack.c.l.b16 %v877
    %v3083 = vunpack.c.h.b16 %v877
    %v3084 = vunpack.c.l.b16 %v878
    %v3085 = vunpack.c.h.b16 %v878
    %v3086 = vunpack.c.l.b16 %v879
    %v3087 = vunpack.c.h.b16 %v879
    %v3088 = vunpack.c.l.b16 %v880
    %v3089 = vunpack.c.h.b16 %v880
    %v3090 = vunpack.c.l.b16 %v881
    %v3091 = vunpack.c.h.b16 %v881
    %v3092 = vunpack.c.l.b16 %v882
    %v3093 = vunpack.c.h.b16 %v882
    %v3094 = vunpack.c.l.b16 %v883
    %v3095 = vunpack.c.h.b16 %v883
    %v3096 = vunpack.c.l.b16 %v884
    %v3097 = vunpack.c.h.b16 %v884
    %v3098 = vunpack.c.l.b16 %v885
    %v3099 = vunpack.c.h.b16 %v885
    %v3100 = vunpack.c.l.b16 %v886
    %v3101 = vunpack.c.h.b16 %v886
    %v3102 = vunpack.c.l.b16 %v887
    %v3103 = vunpack.c.h.b16 %v887
    %v3104 = vunpack.c.l.b16 %v888
    %v3105 = vunpack.c.h.b16 %v888
    %v3106 = vunpack.c.l.b16 %v889
    %v3107 = vunpack.c.h.b16 %v889
    %v3108 = vunpack.c.l.b16 %v890
    %v3109 = vunpack.c.h.b16 %v890
    %v3110 = vunpack.c.l.b16 %v891
    %v3111 = vunpack.c.h.b16 %v891
    %v3112 = vunpack.c.l.b16 %v892
    %v3113 = vunpack.c.h.b16 %v892
    %v3114 = vunpack.c.l.b16 %v893
    %v3115 = vunpack.c.h.b16 %v893
    %v3116 = vunpack.c.l.b16 %v894
    %v3117 = vunpack.c.h.b16 %v894
    %v3118 = vunpack.c.l.b16 %v895
    %v3119 = vunpack.c.h.b16 %v895
    %v3120 = vunpack.c.l.b16 %v896
    %v3121 = vunpack.c.h.b16 %v896
    %v3122 = vunpack.c.l.b16 %v897
    %v3123 = vunpack.c.h.b16 %v897
    %v3124 = vunpack.c.l.b16 %v898
    %v3125 = vunpack.c.h.b16 %v898
    %v3126 = vunpack.c.l.b16 %v899
    %v3127 = vunpack.c.h.b16 %v899
    %v3128 = vunpack.c.l.b16 %v900
    %v3129 = vunpack.c.h.b16 %v900
    %v3130 = vunpack.c.l.b16 %v901
    %v3131 = vunpack.c.h.b16 %v901
    %v3132 = vunpack.c.l.b16 %v902
    %v3133 = vunpack.c.h.b16 %v902
    %v3134 = vunpack.c.l.b16 %v903
    %v3135 = vunpack.c.h.b16 %v903
    %v3136 = vunpack.c.l.b16 %v904
    %v3137 = vunpack.c.h.b16 %v904
    %v3138 = vunpack.c.l.b16 %v905
    %v3139 = vunpack.c.h.b16 %v905
    %v3140 = vunpack.c.l.b16 %v906
    %v3141 = vunpack.c.h.b16 %v906
    %v3142 = vunpack.c.l.b16 %v907
    %v3143 = vunpack.c.h.b16 %v907
    %v3144 = vunpack.c.l.b16 %v908
    %v3145 = vunpack.c.h.b16 %v908
    %v3146 = vunpack.c.l.b16 %v909
    %v3147 = vunpack.c.h.b16 %v909
    %v3148 = vunpack.c.l.b16 %v910
    %v3149 = vunpack.c.h.b16 %v910
    %v3150 = vunpack.c.l.b16 %v911
    %v3151 = vunpack.c.h.b16 %v911
    %v3152 = vunpack.c.l.b16 %v912
    %v3153 = vunpack.c.h.b16 %v912
    %v3154 = vunpack.c.l.b16 %v913
    %v3155 = vunpack.c.h.b16 %v913
    %v3156 = vunpack.c.l.b16 %v914
    %v3157 = vunpack.c.h.b16 %v914
    %v3158 = vunpack.c.l.b16 %v915
    %v3159 = vunpack.c.h.b16 %v915
    %v3160 = vunpack.c.l.b16 %v916
    %v3161 = vunpack.c.h.b16 %v916
    %v3162 = vunpack.c.l.b16 %v917
    %v3163 = vunpack.c.h.b16 %v917
    %v3164 = vunpack.c.l.b16 %v918
    %v3165 = vunpack.c.h.b16 %v918
    %v3166 = vunpack.c.l.b16 %v919
    %v3167 = vunpack.c.h.b16 %v919
    %v3168 = vunpack.c.l.b16 %v920
    %v3169 = vunpack.c.h.b16 %v920
    %v3170 = vunpack.c.l.b16 %v921
    %v3171 = vunpack.c.h.b16 %v921
    %v3172 = vunpack.c.l.b16 %v922
    %v3173 = vunpack.c.h.b16 %v922
    %v3174 = vunpack.c.l.b16 %v923
    %v3175 = vunpack.c.h.b16 %v923
    %v3176 = vunpack.c.l.b16 %v924
    %v3177 = vunpack.c.h.b16 %v924
    %v3178 = vunpack.c.l.b16 %v925
    %v3179 = vunpack.c.h.b16 %v925
    %v3180 = vunpack.c.l.b16 %v926
    %v3181 = vunpack.c.h.b16 %v926
    %v3182 = vunpack.c.l.b16 %v927
    %v3183 = vunpack.c.h.b16 %v927
    %v3184 = vunpack.c.l.b16 %v928
    %v3185 = vunpack.c.h.b16 %v928
    %v3186 = vunpack.c.l.b16 %v929
    %v3187 = vunpack.c.h.b16 %v929
    %v3188 = vunpack.c.l.b16 %v930
    %v3189 = vunpack.c.h.b16 %v930
    %v3190 = vunpack.c.l.b16 %v931
    %v3191 = vunpack.c.h.b16 %v931
    %v3192 = vunpack.c.l.b16 %v932
    %v3193 = vunpack.c.h.b16 %v932
    %v3194 = vunpack.c.l.b16 %v933
    %v3195 = vunpack.c.h.b16 %v933
    %v3196 = vunpack.c.l.b16 %v934
    %v3197 = vunpack.c.h.b16 %v934
    %v3198 = vunpack.c.l.b16 %v935
    %v3199 = vunpack.c.h.b16 %v935
    %v3200 = vunpack.c.l.b16 %v936
    %v3201 = vunpack.c.h.b16 %v936
    %v3202 = vunpack.c.l.b16 %v937
    %v3203 = vunpack.c.h.b16 %v937
    %v3204 = vunpack.c.l.b16 %v938
    %v3205 = vunpack.c.h.b16 %v938
    %v3206 = vunpack.c.l.b16 %v939
    %v3207 = vunpack.c.h.b16 %v939
    %v3208 = vunpack.c.l.b16 %v940
    %v3209 = vunpack.c.h.b16 %v940
    %v3210 = vunpack.c.l.b16 %v941
    %v3211 = vunpack.c.h.b16 %v941
    %v3212 = vunpack.c.l.b16 %v942
    %v3213 = vunpack.c.h.b16 %v942
    %v3214 = vunpack.c.l.b16 %v943
    %v3215 = vunpack.c.h.b16 %v943
    %v3216 = vunpack.c.l.b16 %v944
    %v3217 = vunpack.c.h.b16 %v944
    %v3218 = vunpack.c.l.b16 %v945
    %v3219 = vunpack.c.h.b16 %v945
    %v3220 = vunpack.c.l.b16 %v946
    %v3221 = vunpack.c.h.b16 %v946
    %v3222 = vunpack.c.l.b16 %v947
    %v3223 = vunpack.c.h.b16 %v947
    %v3224 = vunpack.c.l.b16 %v948
    %v3225 = vunpack.c.h.b16 %v948
    %v3226 = vunpack.c.l.b16 %v949
    %v3227 = vunpack.c.h.b16 %v949
    %v3228 = vunpack.c.l.b16 %v950
    %v3229 = vunpack.c.h.b16 %v950
    %v3230 = vunpack.c.l.b16 %v951
    %v3231 = vunpack.c.h.b16 %v951
    %v3232 = vunpack.c.l.b16 %v952
    %v3233 = vunpack.c.h.b16 %v952
    %v3234 = vunpack.c.l.b16 %v953
    %v3235 = vunpack.c.h.b16 %v953
    %v3236 = vunpack.c.l.b16 %v954
    %v3237 = vunpack.c.h.b16 %v954
    %v3238 = vunpack.c.l.b16 %v955
    %v3239 = vunpack.c.h.b16 %v955
    %v3240 = vunpack.c.l.b16 %v956
    %v3241 = vunpack.c.h.b16 %v956
    %v3242 = vunpack.c.l.b16 %v957
    %v3243 = vunpack.c.h.b16 %v957
    %v3244 = vunpack.c.l.b16 %v958
    %v3245 = vunpack.c.h.b16 %v958
    %v3246 = vunpack.c.l.b16 %v959
    %v3247 = vunpack.c.h.b16 %v959
    %v3248 = vunpack.c.l.b16 %v960
    %v3249 = vunpack.c.h.b16 %v960
    %v3250 = vunpack.c.l.b16 %v961
    %v3251 = vunpack.c.h.b16 %v961
    %v3252 = vunpack.c.l.b16 %v962
    %v3253 = vunpack.c.h.b16 %v962
    %v3254 = vunpack.c.l.b16 %v963
    %v3255 = vunpack.c.h.b16 %v963
    %v3256 = vunpack.c.l.b16 %v964
    %v3257 = vunpack.c.h.b16 %v964
    %v3258 = vunpack.c.l.b16 %v965
    %v3259 = vunpack.c.h.b16 %v965
    %v3260 = vunpack.c.l.b16 %v966
    %v3261 = vunpack.c.h.b16 %v966
    %v3262 = vunpack.c.l.b16 %v967
    %v3263 = vunpack.c.h.b16 %v967
    %v3264 = vunpack.c.l.b16 %v968
    %v3265 = vunpack.c.h.b16 %v968
    %v3266 = vunpack.c.l.b16 %v969
    %v3267 = vunpack.c.h.b16 %v969
    %v3268 = vunpack.c.l.b16 %v970
    %v3269 = vunpack.c.h.b16 %v970
    %v3270 = vunpack.c.l.b16 %v971
    %v3271 = vunpack.c.h.b16 %v971
    %v3272 = vunpack.c.l.b16 %v972
    %v3273 = vunpack.c.h.b16 %v972
    %v3274 = vunpack.c.l.b16 %v973
    %v3275 = vunpack.c.h.b16 %v973
    %v3276 = vunpack.c.l.b16 %v974
    %v3277 = vunpack.c.h.b16 %v974
    %v3278 = vunpack.c.l.b16 %v975
    %v3279 = vunpack.c.h.b16 %v975
    %v3280 = vunpack.c.l.b16 %v976
    %v3281 = vunpack.c.h.b16 %v976
    %v3282 = vunpack.c.l.b16 %v977
    %v3283 = vunpack.c.h.b16 %v977
    %v3284 = vunpack.c.l.b16 %v978
    %v3285 = vunpack.c.h.b16 %v978
    %v3286 = vunpack.c.l.b16 %v979
    %v3287 = vunpack.c.h.b16 %v979
    %v3288 = vunpack.c.l.b16 %v980
    %v3289 = vunpack.c.h.b16 %v980
    %v3290 = vunpack.c.l.b16 %v981
    %v3291 = vunpack.c.h.b16 %v981
    %v3292 = vunpack.c.l.b16 %v982
    %v3293 = vunpack.c.h.b16 %v982
    %v3294 = vunpack.c.l.b16 %v983
    %v3295 = vunpack.c.h.b16 %v983
    %v3296 = vunpack.c.l.b16 %v984
    %v3297 = vunpack.c.h.b16 %v984
    %v3298 = vunpack.c.l.b16 %v985
    %v3299 = vunpack.c.h.b16 %v985
    %v3300 = vunpack.c.l.b16 %v986
    %v3301 = vunpack.c.h.b16 %v986
    %v3302 = vunpack.c.l.b16 %v987
    %v3303 = vunpack.c.h.b16 %v987
    %v3304 = vunpack.c.l.b16 %v988
    %v3305 = vunpack.c.h.b16 %v988
    %v3306 = vunpack.c.l.b16 %v989
    %v3307 = vunpack.c.h.b16 %v989
    %v3308 = vunpack.c.l.b16 %v990
    %v3309 = vunpack.c.h.b16 %v990
    %v3310 = vunpack.c.l.b16 %v991
    %v3311 = vunpack.c.h.b16 %v991
    %v3312 = vunpack.c.l.b16 %v992
    %v3313 = vunpack.c.h.b16 %v992
    %v3314 = vunpack.c.l.b16 %v993
    %v3315 = vunpack.c.h.b16 %v993
    %v3316 = vunpack.c.l.b16 %v994
    %v3317 = vunpack.c.h.b16 %v994
    %v3318 = vunpack.c.l.b16 %v995
    %v3319 = vunpack.c.h.b16 %v995
    %v3320 = vunpack.c.l.b16 %v996
    %v3321 = vunpack.c.h.b16 %v996
    %v3322 = vunpack.c.l.b16 %v997
    %v3323 = vunpack.c.h.b16 %v997
    %v3324 = vunpack.c.l.b16 %v998
    %v3325 = vunpack.c.h.b16 %v998
    %v3326 = vunpack.c.l.b16 %v999
    %v3327 = vunpack.c.h.b16 %v999
    %v3328 = vunpack.c.l.b16 %v1000
    %v3329 = vunpack.c.h.b16 %v1000
    %v3330 = vunpack.c.l.b16 %v1001
    %v3331 = vunpack.c.h.b16 %v1001
    %v3332 = vunpack.c.l.b16 %v1002
    %v3333 = vunpack.c.h.b16 %v1002
    %v3334 = vunpack.c.l.b16 %v1003
    %v3335 = vunpack.c.h.b16 %v1003
    %v3336 = vunpack.c.l.b16 %v1004
    %v3337 = vunpack.c.h.b16 %v1004
    %v3338 = vunpack.c.l.b16 %v1005
    %v3339 = vunpack.c.h.b16 %v1005
    %v3340 = vunpack.c.l.b16 %v1006
    %v3341 = vunpack.c.h.b16 %v1006
    %v3342 = vunpack.c.l.b16 %v1007
    %v3343 = vunpack.c.h.b16 %v1007
    %v3344 = vunpack.c.l.b16 %v1008
    %v3345 = vunpack.c.h.b16 %v1008
    %v3346 = vunpack.c.l.b16 %v1009
    %v3347 = vunpack.c.h.b16 %v1009
    %v3348 = vunpack.c.l.b16 %v1010
    %v3349 = vunpack.c.h.b16 %v1010
    %v3350 = vunpack.c.l.b16 %v1011
    %v3351 = vunpack.c.h.b16 %v1011
    %v3352 = vunpack.c.l.b16 %v1012
    %v3353 = vunpack.c.h.b16 %v1012
    %v3354 = vunpack.c.l.b16 %v1013
    %v3355 = vunpack.c.h.b16 %v1013
    %v3356 = vunpack.c.l.b16 %v1014
    %v3357 = vunpack.c.h.b16 %v1014
    %v3358 = vunpack.c.l.b16 %v1015
    %v3359 = vunpack.c.h.b16 %v1015
    %v3360 = vunpack.c.l.b16 %v1016
    %v3361 = vunpack.c.h.b16 %v1016
    %v3362 = vunpack.c.l.b16 %v1017
    %v3363 = vunpack.c.h.b16 %v1017
    %v3364 = vunpack.c.l.b16 %v1018
    %v3365 = vunpack.c.h.b16 %v1018
    %v3366 = vunpack.c.l.b16 %v1019
    %v3367 = vunpack.c.h.b16 %v1019
    %v3368 = vunpack.c.l.b16 %v1020
    %v3369 = vunpack.c.h.b16 %v1020
    %v3370 = vunpack.c.l.b16 %v1021
    %v3371 = vunpack.c.h.b16 %v1021
    %v3372 = vunpack.c.l.b16 %v1022
    %v3373 = vunpack.c.h.b16 %v1022
    %v3374 = vunpack.c.l.b16 %v1023
    %v3375 = vunpack.c.h.b16 %v1023
    %v3376 = vpack.c.b16 %v1810, %v1808
    %v3377 = vpack.c.b16 %v1811, %v1809
    %v3378 = vpack.c.b16 %v1814, %v1812
    %v3379 = vpack.c.b16 %v1815, %v1813
    %v3380 = vpack.c.b16 %v1818, %v1816
    %v3381 = vpack.c.b16 %v1819, %v1817
    %v3382 = vpack.c.b16 %v1822, %v1820
    %v3383 = vpack.c.b16 %v1823, %v1821
    %v3384 = vpack.c.b16 %v1826, %v1824
    %v3385 = vpack.c.b16 %v1827, %v1825
    %v3386 = vpack.c.b16 %v1830, %v1828
    %v3387 = vpack.c.b16 %v1831, %v1829
    %v3388 = vpack.c.b16 %v1834, %v1832
    %v3389 = vpack.c.b16 %v1835, %v1833
    %v3390 = vpack.c.b16 %v1838, %v1836
    %v3391 = vpack.c.b16 %v1839, %v1837
    %v3392 = vpack.c.b16 %v1842, %v1840
    %v3393 = vpack.c.b16 %v1843, %v1841
    %v3394 = vpack.c.b16 %v1846, %v1844
    %v3395 = vpack.c.b16 %v1847, %v1845
    %v3396 = vpack.c.b16 %v1850, %v1848
    %v3397 = vpack.c.b16 %v1851, %v1849
    %v3398 = vpack.c.b16 %v1854, %v1852
    %v3399 = vpack.c.b16 %v1855, %v1853
    %v3400 = vpack.c.b16 %v1858, %v1856
    %v3401 = vpack.c.b16 %v1859, %v1857
    %v3402 = vpack.c.b16 %v1862, %v1860
    %v3403 = vpack.c.b16 %v1863, %v1861
    %v3404 = vpack.c.b16 %v1866, %v1864
    %v3405 = vpack.c.b16 %v1867, %v1865
    %v3406 = vpack.c.b16 %v1870, %v1868
    %v3407 = vpack.c.b16 %v1871, %v1869
    %v3408 = vpack.c.b16 %v1874, %v1872
    %v3409 = vpack.c.b16 %v1875, %v1873
    %v3410 = vpack.c.b16 %v1878, %v1876
    %v3411 = vpack.c.b16 %v1879, %v1877
    %v3412 = vpack.c.b16 %v1882, %v1880
    %v3413 = vpack.c.b16 %v1883, %v1881
    %v3414 = vpack.c.b16 %v1886, %v1884
    %v3415 = vpack.c.b16 %v1887, %v1885
    %v3416 = vpack.c.b16 %v1890, %v1888
    %v3417 = vpack.c.b16 %v1891, %v1889
    %v3418 = vpack.c.b16 %v1894, %v1892
    %v3419 = vpack.c.b16 %v1895, %v1893
    %v3420 = vpack.c.b16 %v1898, %v1896
    %v3421 = vpack.c.b16 %v1899, %v1897
    %v3422 = vpack.c.b16 %v1902, %v1900
    %v3423 = vpack.c.b16 %v1903, %v1901
    %v3424 = vpack.c.b16 %v1906, %v1904
    %v3425 = vpack.c.b16 %v1907, %v1905
    %v3426 = vpack.c.b16 %v1910, %v1908
    %v3427 = vpack.c.b16 %v1911, %v1909
    %v3428 = vpack.c.b16 %v1914, %v1912
    %v3429 = vpack.c.b16 %v1915, %v1913
    %v3430 = vpack.c.b16 %v1918, %v1916
    %v3431 = vpack.c.b16 %v1919, %v1917
    %v3432 = vpack.c.b16 %v1922, %v1920
    %v3433 = vpack.c.b16 %v1923, %v1921
    %v3434 = vpack.c.b16 %v1926, %v1924
    %v3435 = vpack.c.b16 %v1927, %v1925
    %v3436 = vpack.c.b16 %v1930, %v1928
    %v3437 = vpack.c.b16 %v1931, %v1929
    %v3438 = vpack.c.b16 %v1934, %v1932
    %v3439 = vpack.c.b16 %v1935, %v1933
    %v3440 = vpack.c.b16 %v1938, %v1936
    %v3441 = vpack.c.b16 %v1939, %v1937
    %v3442 = vpack.c.b16 %v1942, %v1940
    %v3443 = vpack.c.b16 %v1943, %v1941
    %v3444 = vpack.c.b16 %v1946, %v1944
    %v3445 = vpack.c.b16 %v1947, %v1945
    %v3446 = vpack.c.b16 %v1950, %v1948
    %v3447 = vpack.c.b16 %v1951, %v1949
    %v3448 = vpack.c.b16 %v1954, %v1952
    %v3449 = vpack.c.b16 %v1955, %v1953
    %v3450 = vpack.c.b16 %v1958, %v1956
    %v3451 = vpack.c.b16 %v1959, %v1957
    %v3452 = vpack.c.b16 %v1962, %v1960
    %v3453 = vpack.c.b16 %v1963, %v1961
    %v3454 = vpack.c.b16 %v1966, %v1964
    %v3455 = vpack.c.b16 %v1967, %v1965
    %v3456 = vpack.c.b16 %v1970, %v1968
    %v3457 = vpack.c.b16 %v1971, %v1969
    %v3458 = vpack.c.b16 %v1974, %v1972
    %v3459 = vpack.c.b16 %v1975, %v1973
    %v3460 = vpack.c.b16 %v1978, %v1976
    %v3461 = vpack.c.b16 %v1979, %v1977
    %v3462 = vpack.c.b16 %v1982, %v1980
    %v3463 = vpack.c.b16 %v1983, %v1981
    %v3464 = vpack.c.b16 %v1986, %v1984
    %v3465 = vpack.c.b16 %v1987, %v1985
    %v3466 = vpack.c.b16 %v1990, %v1988
    %v3467 = vpack.c.b16 %v1991, %v1989
    %v3468 = vpack.c.b16 %v1994, %v1992
    %v3469 = vpack.c.b16 %v1995, %v1993
    %v3470 = vpack.c.b16 %v1998, %v1996
    %v3471 = vpack.c.b16 %v1999, %v1997
    %v3472 = vpack.c.b16 %v2002, %v2000
    %v3473 = vpack.c.b16 %v2003, %v2001
    %v3474 = vpack.c.b16 %v2006, %v2004
    %v3475 = vpack.c.b16 %v2007, %v2005
    %v3476 = vpack.c.b16 %v2010, %v2008
    %v3477 = vpack.c.b16 %v2011, %v2009
    %v3478 = vpack.c.b16 %v2014, %v2012
    %v3479 = vpack.c.b16 %v2015, %v2013
    %v3480 = vpack.c.b16 %v2018, %v2016
    %v3481 = vpack.c.b16 %v2019, %v2017
    %v3482 = vpack.c.b16 %v2022, %v2020
    %v3483 = vpack.c.b16 %v2023, %v2021
    %v3484 = vpack.c.b16 %v2026, %v2024
    %v3485 = vpack.c.b16 %v2027, %v2025
    %v3486 = vpack.c.b16 %v2030, %v2028
    %v3487 = vpack.c.b16 %v2031, %v2029
    %v3488 = vpack.c.b16 %v2034, %v2032
    %v3489 = vpack.c.b16 %v2035, %v2033
    %v3490 = vpack.c.b16 %v2038, %v2036
    %v3491 = vpack.c.b16 %v2039, %v2037
    %v3492 = vpack.c.b16 %v2042, %v2040
    %v3493 = vpack.c.b16 %v2043, %v2041
    %v3494 = vpack.c.b16 %v2046, %v2044
    %v3495 = vpack.c.b16 %v2047, %v2045
    %v3496 = vpack.c.b16 %v2050, %v2048
    %v3497 = vpack.c.b16 %v2051, %v2049
    %v3498 = vpack.c.b16 %v2054, %v2052
    %v3499 = vpack.c.b16 %v2055, %v2053
    %v3500 = vpack.c.b16 %v2058, %v2056
    %v3501 = vpack.c.b16 %v2059, %v2057
    %v3502 = vpack.c.b16 %v2062, %v2060
    %v3503 = vpack.c.b16 %v2063, %v2061
    %v3504 = vpack.c.b16 %v2066, %v2064
    %v3505 = vpack.c.b16 %v2067, %v2065
    %v3506 = vpack.c.b16 %v2070, %v2068
    %v3507 = vpack.c.b16 %v2071, %v2069
    %v3508 = vpack.c.b16 %v2074, %v2072
    %v3509 = vpack.c.b16 %v2075, %v2073
    %v3510 = vpack.c.b16 %v2078, %v2076
    %v3511 = vpack.c.b16 %v2079, %v2077
    %v3512 = vpack.c.b16 %v2082, %v2080
    %v3513 = vpack.c.b16 %v2083, %v2081
    %v3514 = vpack.c.b16 %v2086, %v2084
    %v3515 = vpack.c.b16 %v2087, %v2085
    %v3516 = vpack.c.b16 %v2090, %v2088
    %v3517 = vpack.c.b16 %v2091, %v2089
    %v3518 = vpack.c.b16 %v2094, %v2092
    %v3519 = vpack.c.b16 %v2095, %v2093
    %v3520 = vpack.c.b16 %v2098, %v2096
    %v3521 = vpack.c.b16 %v2099, %v2097
    %v3522 = vpack.c.b16 %v2102, %v2100
    %v3523 = vpack.c.b16 %v2103, %v2101
    %v3524 = vpack.c.b16 %v2106, %v2104
    %v3525 = vpack.c.b16 %v2107, %v2105
    %v3526 = vpack.c.b16 %v2110, %v2108
    %v3527 = vpack.c.b16 %v2111, %v2109
    %v3528 = vpack.c.b16 %v2114, %v2112
    %v3529 = vpack.c.b16 %v2115, %v2113
    %v3530 = vpack.c.b16 %v2118, %v2116
    %v3531 = vpack.c.b16 %v2119, %v2117
    %v3532 = vpack.c.b16 %v2122, %v2120
    %v3533 = vpack.c.b16 %v2123, %v2121
    %v3534 = vpack.c.b16 %v2126, %v2124
    %v3535 = vpack.c.b16 %v2127, %v2125
    %v3536 = vpack.c.b16 %v2130, %v2128
    %v3537 = vpack.c.b16 %v2131, %v2129
    %v3538 = vpack.c.b16 %v2134, %v2132
    %v3539 = vpack.c.b16 %v2135, %v2133
    %v3540 = vpack.c.b16 %v2138, %v2136
    %v3541 = vpack.c.b16 %v2139, %v2137
    %v3542 = vpack.c.b16 %v2142, %v2140
    %v3543 = vpack.c.b16 %v2143, %v2141
    %v3544 = vpack.c.b16 %v2146, %v2144
    %v3545 = vpack.c.b16 %v2147, %v2145
    %v3546 = vpack.c.b16 %v2150, %v2148
    %v3547 = vpack.c.b16 %v2151, %v2149
    %v3548 = vpack.c.b16 %v2154, %v2152
    %v3549 = vpack.c.b16 %v2155, %v2153
    %v3550 = vpack.c.b16 %v2158, %v2156
    %v3551 = vpack.c.b16 %v2159, %v2157
    %v3552 = vpack.c.b16 %v2162, %v2160
    %v3553 = vpack.c.b16 %v2163, %v2161
    %v3554 = vpack.c.b16 %v2166, %v2164
    %v3555 = vpack.c.b16 %v2167, %v2165
    %v3556 = vpack.c.b16 %v2170, %v2168
    %v3557 = vpack.c.b16 %v2171, %v2169
    %v3558 = vpack.c.b16 %v2174, %v2172
    %v3559 = vpack.c.b16 %v2175, %v2173
    %v3560 = vpack.c.b16 %v2178, %v2176
    %v3561 = vpack.c.b16 %v2179, %v2177
    %v3562 = vpack.c.b16 %v2182, %v2180
    %v3563 = vpack.c.b16 %v2183, %v2181
    %v3564 = vpack.c.b16 %v2186, %v2184
    %v3565 = vpack.c.b16 %v2187, %v2185
    %v3566 = vpack.c.b16 %v2190, %v2188
    %v3567 = vpack.c.b16 %v2191, %v2189
    %v3568 = vpack.c.b16 %v2194, %v2192
    %v3569 = vpack.c.b16 %v2195, %v2193
    %v3570 = vpack.c.b16 %v2198, %v2196
    %v3571 = vpack.c.b16 %v2199, %v2197
    %v3572 = vpack.c.b16 %v2202, %v2200
    %v3573 = vpack.c.b16 %v2203, %v2201
    %v3574 = vpack.c.b16 %v2206, %v2204
    %v3575 = vpack.c.b16 %v2207, %v2205
    %v3576 = vpack.c.b16 %v2210, %v2208
    %v3577 = vpack.c.b16 %v2211, %v2209
    %v3578 = vpack.c.b16 %v2214, %v2212
    %v3579 = vpack.c.b16 %v2215, %v2213
    %v3580 = vpack.c.b16 %v2218, %v2216
    %v3581 = vpack.c.b16 %v2219, %v2217
    %v3582 = vpack.c.b16 %v2222, %v2220
    %v3583 = vpack.c.b16 %v2223, %v2221
    %v3584 = vpack.c.b16 %v2226, %v2224
    %v3585 = vpack.c.b16 %v2227, %v2225
    %v3586 = vpack.c.b16 %v2230, %v2228
    %v3587 = vpack.c.b16 %v2231, %v2229
    %v3588 = vpack.c.b16 %v2234, %v2232
    %v3589 = vpack.c.b16 %v2235, %v2233
    %v3590 = vpack.c.b16 %v2238, %v2236
    %v3591 = vpack.c.b16 %v2239, %v2237
    %v3592 = vpack.c.b16 %v2242, %v2240
    %v3593 = vpack.c.b16 %v2243, %v2241
    %v3594 = vpack.c.b16 %v2246, %v2244
    %v3595 = vpack.c.b16 %v2247, %v2245
    %v3596 = vpack.c.b16 %v2250, %v2248
    %v3597 = vpack.c.b16 %v2251, %v2249
    %v3598 = vpack.c.b16 %v2254, %v2252
    %v3599 = vpack.c.b16 %v2255, %v2253
    %v3600 = vpack.c.b16 %v2258, %v2256
    %v3601 = vpack.c.b16 %v2259, %v2257
    %v3602 = vpack.c.b16 %v2262, %v2260
    %v3603 = vpack.c.b16 %v2263, %v2261
    %v3604 = vpack.c.b16 %v2266, %v2264
    %v3605 = vpack.c.b16 %v2267, %v2265
    %v3606 = vpack.c.b16 %v2270, %v2268
    %v3607 = vpack.c.b16 %v2271, %v2269
    %v3608 = vpack.c.b16 %v2274, %v2272
    %v3609 = vpack.c.b16 %v2275, %v2273
    %v3610 = vpack.c.b16 %v2278, %v2276
    %v3611 = vpack.c.b16 %v2279, %v2277
    %v3612 = vpack.c.b16 %v2282, %v2280
    %v3613 = vpack.c.b16 %v2283, %v2281
    %v3614 = vpack.c.b16 %v2286, %v2284
    %v3615 = vpack.c.b16 %v2287, %v2285
    %v3616 = vpack.c.b16 %v2290, %v2288
    %v3617 = vpack.c.b16 %v2291, %v2289
    %v3618 = vpack.c.b16 %v2294, %v2292
    %v3619 = vpack.c.b16 %v2295, %v2293
    %v3620 = vpack.c.b16 %v2298, %v2296
    %v3621 = vpack.c.b16 %v2299, %v2297
    %v3622 = vpack.c.b16 %v2302, %v2300
    %v3623 = vpack.c.b16 %v2303, %v2301
    %v3624 = vpack.c.b16 %v2306, %v2304
    %v3625 = vpack.c.b16 %v2307, %v2305
    %v3626 = vpack.c.b16 %v2310, %v2308
    %v3627 = vpack.c.b16 %v2311, %v2309
    %v3628 = vpack.c.b16 %v2314, %v2312
    %v3629 = vpack.c.b16 %v2315, %v2313
    %v3630 = vpack.c.b16 %v2318, %v2316
    %v3631 = vpack.c.b16 %v2319, %v2317
    %v3632 = vpack.c.b16 %v2322, %v2320
    %v3633 = vpack.c.b16 %v2323, %v2321
    %v3634 = vpack.c.b16 %v2326, %v2324
    %v3635 = vpack.c.b16 %v2327, %v2325
    %v3636 = vpack.c.b16 %v2330, %v2328
    %v3637 = vpack.c.b16 %v2331, %v2329
    %v3638 = vpack.c.b16 %v2334, %v2332
    %v3639 = vpack.c.b16 %v2335, %v2333
    %v3640 = vpack.c.b16 %v2338, %v2336
    %v3641 = vpack.c.b16 %v2339, %v2337
    %v3642 = vpack.c.b16 %v2342, %v2340
    %v3643 = vpack.c.b16 %v2343, %v2341
    %v3644 = vpack.c.b16 %v2346, %v2344
    %v3645 = vpack.c.b16 %v2347, %v2345
    %v3646 = vpack.c.b16 %v2350, %v2348
    %v3647 = vpack.c.b16 %v2351, %v2349
    %v3648 = vpack.c.b16 %v2354, %v2352
    %v3649 = vpack.c.b16 %v2355, %v2353
    %v3650 = vpack.c.b16 %v2358, %v2356
    %v3651 = vpack.c.b16 %v2359, %v2357
    %v3652 = vpack.c.b16 %v2362, %v2360
    %v3653 = vpack.c.b16 %v2363, %v2361
    %v3654 = vpack.c.b16 %v2366, %v2364
    %v3655 = vpack.c.b16 %v2367, %v2365
    %v3656 = vpack.c.b16 %v2370, %v2368
    %v3657 = vpack.c.b16 %v2371, %v2369
    %v3658 = vpack.c.b16 %v2374, %v2372
    %v3659 = vpack.c.b16 %v2375, %v2373
    %v3660 = vpack.c.b16 %v2378, %v2376
    %v3661 = vpack.c.b16 %v2379, %v2377
    %v3662 = vpack.c.b16 %v2382, %v2380
    %v3663 = vpack.c.b16 %v2383, %v2381
    %v3664 = vpack.c.b16 %v2386, %v2384
    %v3665 = vpack.c.b16 %v2387, %v2385
    %v3666 = vpack.c.b16 %v2390, %v2388
    %v3667 = vpack.c.b16 %v2391, %v2389
    %v3668 = vpack.c.b16 %v2394, %v2392
    %v3669 = vpack.c.b16 %v2395, %v2393
    %v3670 = vpack.c.b16 %v2398, %v2396
    %v3671 = vpack.c.b16 %v2399, %v2397
    %v3672 = vpack.c.b16 %v2402, %v2400
    %v3673 = vpack.c.b16 %v2403, %v2401
    %v3674 = vpack.c.b16 %v2406, %v2404
    %v3675 = vpack.c.b16 %v2407, %v2405
    %v3676 = vpack.c.b16 %v2410, %v2408
    %v3677 = vpack.c.b16 %v2411, %v2409
    %v3678 = vpack.c.b16 %v2414, %v2412
    %v3679 = vpack.c.b16 %v2415, %v2413
    %v3680 = vpack.c.b16 %v2418, %v2416
    %v3681 = vpack.c.b16 %v2419, %v2417
    %v3682 = vpack.c.b16 %v2422, %v2420
    %v3683 = vpack.c.b16 %v2423, %v2421
    %v3684 = vpack.c.b16 %v2426, %v2424
    %v3685 = vpack.c.b16 %v2427, %v2425
    %v3686 = vpack.c.b16 %v2430, %v2428
    %v3687 = vpack.c.b16 %v2431, %v2429
    %v3688 = vpack.c.b16 %v2434, %v2432
    %v3689 = vpack.c.b16 %v2435, %v2433
    %v3690 = vpack.c.b16 %v2438, %v2436
    %v3691 = vpack.c.b16 %v2439, %v2437
    %v3692 = vpack.c.b16 %v2442, %v2440
    %v3693 = vpack.c.b16 %v2443, %v2441
    %v3694 = vpack.c.b16 %v2446, %v2444
    %v3695 = vpack.c.b16 %v2447, %v2445
    %v3696 = vpack.c.b16 %v2450, %v2448
    %v3697 = vpack.c.b16 %v2451, %v2449
    %v3698 = vpack.c.b16 %v2454, %v2452
    %v3699 = vpack.c.b16 %v2455, %v2453
    %v3700 = vpack.c.b16 %v2458, %v2456
    %v3701 = vpack.c.b16 %v2459, %v2457
    %v3702 = vpack.c.b16 %v2462, %v2460
    %v3703 = vpack.c.b16 %v2463, %v2461
    %v3704 = vpack.c.b16 %v2466, %v2464
    %v3705 = vpack.c.b16 %v2467, %v2465
    %v3706 = vpack.c.b16 %v2470, %v2468
    %v3707 = vpack.c.b16 %v2471, %v2469
    %v3708 = vpack.c.b16 %v2474, %v2472
    %v3709 = vpack.c.b16 %v2475, %v2473
    %v3710 = vpack.c.b16 %v2478, %v2476
    %v3711 = vpack.c.b16 %v2479, %v2477
    %v3712 = vpack.c.b16 %v2482, %v2480
    %v3713 = vpack.c.b16 %v2483, %v2481
    %v3714 = vpack.c.b16 %v2486, %v2484
    %v3715 = vpack.c.b16 %v2487, %v2485
    %v3716 = vpack.c.b16 %v2490, %v2488
    %v3717 = vpack.c.b16 %v2491, %v2489
    %v3718 = vpack.c.b16 %v2494, %v2492
    %v3719 = vpack.c.b16 %v2495, %v2493
    %v3720 = vpack.c.b16 %v2498, %v2496
    %v3721 = vpack.c.b16 %v2499, %v2497
    %v3722 = vpack.c.b16 %v2502, %v2500
    %v3723 = vpack.c.b16 %v2503, %v2501
    %v3724 = vpack.c.b16 %v2506, %v2504
    %v3725 = vpack.c.b16 %v2507, %v2505
    %v3726 = vpack.c.b16 %v2510, %v2508
    %v3727 = vpack.c.b16 %v2511, %v2509
    %v3728 = vpack.c.b16 %v2514, %v2512
    %v3729 = vpack.c.b16 %v2515, %v2513
    %v3730 = vpack.c.b16 %v2518, %v2516
    %v3731 = vpack.c.b16 %v2519, %v2517
    %v3732 = vpack.c.b16 %v2522, %v2520
    %v3733 = vpack.c.b16 %v2523, %v2521
    %v3734 = vpack.c.b16 %v2526, %v2524
    %v3735 = vpack.c.b16 %v2527, %v2525
    %v3736 = vpack.c.b16 %v2530, %v2528
    %v3737 = vpack.c.b16 %v2531, %v2529
    %v3738 = vpack.c.b16 %v2534, %v2532
    %v3739 = vpack.c.b16 %v2535, %v2533
    %v3740 = vpack.c.b16 %v2538, %v2536
    %v3741 = vpack.c.b16 %v2539, %v2537
    %v3742 = vpack.c.b16 %v2542, %v2540
    %v3743 = vpack.c.b16 %v2543, %v2541
    %v3744 = vpack.c.b16 %v2546, %v2544
    %v3745 = vpack.c.b16 %v2547, %v2545
    %v3746 = vpack.c.b16 %v2550, %v2548
    %v3747 = vpack.c.b16 %v2551, %v2549
    %v3748 = vpack.c.b16 %v2554, %v2552
    %v3749 = vpack.c.b16 %v2555, %v2553
    %v3750 = vpack.c.b16 %v2558, %v2556
    %v3751 = vpack.c.b16 %v2559, %v2557
    %v3752 = vpack.c.b16 %v2562, %v2560
    %v3753 = vpack.c.b16 %v2563, %v2561
    %v3754 = vpack.c.b16 %v2566, %v2564
    %v3755 = vpack.c.b16 %v2567, %v2565
    %v3756 = vpack.c.b16 %v2570, %v2568
    %v3757 = vpack.c.b16 %v2571, %v2569
    %v3758 = vpack.c.b16 %v2574, %v2572
    %v3759 = vpack.c.b16 %v2575, %v2573
    %v3760 = vpack.c.b16 %v2578, %v2576
    %v3761 = vpack.c.b16 %v2579, %v2577
    %v3762 = vpack.c.b16 %v2582, %v2580
    %v3763 = vpack.c.b16 %v2583, %v2581
    %v3764 = vpack.c.b16 %v2586, %v2584
    %v3765 = vpack.c.b16 %v2587, %v2585
    %v3766 = vpack.c.b16 %v2590, %v2588
    %v3767 = vpack.c.b16 %v2591, %v2589
    %v3768 = vpack.c.b16 %v2594, %v2592
    %v3769 = vpack.c.b16 %v2595, %v2593
    %v3770 = vpack.c.b16 %v2598, %v2596
    %v3771 = vpack.c.b16 %v2599, %v2597
    %v3772 = vpack.c.b16 %v2602, %v2600
    %v3773 = vpack.c.b16 %v2603, %v2601
    %v3774 = vpack.c.b16 %v2606, %v2604
    %v3775 = vpack.c.b16 %v2607, %v2605
    %v3776 = vpack.c.b16 %v2610, %v2608
    %v3777 = vpack.c.b16 %v2611, %v2609
    %v3778 = vpack.c.b16 %v2614, %v2612
    %v3779 = vpack.c.b16 %v2615, %v2613
    %v3780 = vpack.c.b16 %v2618, %v2616
    %v3781 = vpack.c.b16 %v2619, %v2617
    %v3782 = vpack.c.b16 %v2622, %v2620
    %v3783 = vpack.c.b16 %v2623, %v2621
    %v3784 = vpack.c.b16 %v2626, %v2624
    %v3785 = vpack.c.b16 %v2627, %v2625
    %v3786 = vpack.c.b16 %v2630, %v2628
    %v3787 = vpack.c.b16 %v2631, %v2629
    %v3788 = vpack.c.b16 %v2634, %v2632
    %v3789 = vpack.c.b16 %v2635, %v2633
    %v3790 = vpack.c.b16 %v2638, %v2636
    %v3791 = vpack.c.b16 %v2639, %v2637
    %v3792 = vpack.c.b16 %v2642, %v2640
    %v3793 = vpack.c.b16 %v2643, %v2641
    %v3794 = vpack.c.b16 %v2646, %v2644
    %v3795 = vpack.c.b16 %v2647, %v2645
    %v3796 = vpack.c.b16 %v2650, %v2648
    %v3797 = vpack.c.b16 %v2651, %v2649
    %v3798 = vpack.c.b16 %v2654, %v2652
    %v3799 = vpack.c.b16 %v2655, %v2653
    %v3800 = vpack.c.b16 %v2658, %v2656
    %v3801 = vpack.c.b16 %v2659, %v2657
    %v3802 = vpack.c.b16 %v2662, %v2660
    %v3803 = vpack.c.b16 %v2663, %v2661
    %v3804 = vpack.c.b16 %v2666, %v2664
    %v3805 = vpack.c.b16 %v2667, %v2665
    %v3806 = vpack.c.b16 %v2670, %v2668
    %v3807 = vpack.c.b16 %v2671, %v2669
    %v3808 = vpack.c.b16 %v2674, %v2672
    %v3809 = vpack.c.b16 %v2675, %v2673
    %v3810 = vpack.c.b16 %v2678, %v2676
    %v3811 = vpack.c.b16 %v2679, %v2677
    %v3812 = vpack.c.b16 %v2682, %v2680
    %v3813 = vpack.c.b16 %v2683, %v2681
    %v3814 = vpack.c.b16 %v2686, %v2684
    %v3815 = vpack.c.b16 %v2687, %v2685
    %v3816 = vpack.c.b16 %v2690, %v2688
    %v3817 = vpack.c.b16 %v2691, %v2689
    %v3818 = vpack.c.b16 %v2694, %v2692
    %v3819 = vpack.c.b16 %v2695, %v2693
    %v3820 = vpack.c.b16 %v2698, %v2696
    %v3821 = vpack.c.b16 %v2699, %v2697
    %v3822 = vpack.c.b16 %v2702, %v2700
    %v3823 = vpack.c.b16 %v2703, %v2701
    %v3824 = vpack.c.b16 %v2706, %v2704
    %v3825 = vpack.c.b16 %v2707, %v2705
    %v3826 = vpack.c.b16 %v2710, %v2708
    %v3827 = vpack.c.b16 %v2711, %v2709
    %v3828 = vpack.c.b16 %v2714, %v2712
    %v3829 = vpack.c.b16 %v2715, %v2713
    %v3830 = vpack.c.b16 %v2718, %v2716
    %v3831 = vpack.c.b16 %v2719, %v2717
    %v3832 = vpack.c.b16 %v2722, %v2720
    %v3833 = vpack.c.b16 %v2723, %v2721
    %v3834 = vpack.c.b16 %v2726, %v2724
    %v3835 = vpack.c.b16 %v2727, %v2725
    %v3836 = vpack.c.b16 %v2730, %v2728
    %v3837 = vpack.c.b16 %v2731, %v2729
    %v3838 = vpack.c.b16 %v2734, %v2732
    %v3839 = vpack.c.b16 %v2735, %v2733
    %v3840 = vpack.c.b16 %v2738, %v2736
    %v3841 = vpack.c.b16 %v2739, %v2737
    %v3842 = vpack.c.b16 %v2742, %v2740
    %v3843 = vpack.c.b16 %v2743, %v2741
    %v3844 = vpack.c.b16 %v2746, %v2744
    %v3845 = vpack.c.b16 %v2747, %v2745
    %v3846 = vpack.c.b16 %v2750, %v2748
    %v3847 = vpack.c.b16 %v2751, %v2749
    %v3848 = vpack.c.b16 %v2754, %v2752
    %v3849 = vpack.c.b16 %v2755, %v2753
    %v3850 = vpack.c.b16 %v2758, %v2756
    %v3851 = vpack.c.b16 %v2759, %v2757
    %v3852 = vpack.c.b16 %v2762, %v2760
    %v3853 = vpack.c.b16 %v2763, %v2761
    %v3854 = vpack.c.b16 %v2766, %v2764
    %v3855 = vpack.c.b16 %v2767, %v2765
    %v3856 = vpack.c.b16 %v2770, %v2768
    %v3857 = vpack.c.b16 %v2771, %v2769
    %v3858 = vpack.c.b16 %v2774, %v2772
    %v3859 = vpack.c.b16 %v2775, %v2773
    %v3860 = vpack.c.b16 %v2778, %v2776
    %v3861 = vpack.c.b16 %v2779, %v2777
    %v3862 = vpack.c.b16 %v2782, %v2780
    %v3863 = vpack.c.b16 %v2783, %v2781
    %v3864 = vpack.c.b16 %v2786, %v2784
    %v3865 = vpack.c.b16 %v2787, %v2785
    %v3866 = vpack.c.b16 %v2790, %v2788
    %v3867 = vpack.c.b16 %v2791, %v2789
    %v3868 = vpack.c.b16 %v2794, %v2792
    %v3869 = vpack.c.b16 %v2795, %v2793
    %v3870 = vpack.c.b16 %v2798, %v2796
    %v3871 = vpack.c.b16 %v2799, %v2797
    %v3872 = vpack.c.b16 %v2802, %v2800
    %v3873 = vpack.c.b16 %v2803, %v2801
    %v3874 = vpack.c.b16 %v2806, %v2804
    %v3875 = vpack.c.b16 %v2807, %v2805
    %v3876 = vpack.c.b16 %v2810, %v2808
    %v3877 = vpack.c.b16 %v2811, %v2809
    %v3878 = vpack.c.b16 %v2814, %v2812
    %v3879 = vpack.c.b16 %v2815, %v2813
    %v3880 = vpack.c.b16 %v2818, %v2816
    %v3881 = vpack.c.b16 %v2819, %v2817
    %v3882 = vpack.c.b16 %v2822, %v2820
    %v3883 = vpack.c.b16 %v2823, %v2821
    %v3884 = vpack.c.b16 %v2826, %v2824
    %v3885 = vpack.c.b16 %v2827, %v2825
    %v3886 = vpack.c.b16 %v2830, %v2828
    %v3887 = vpack.c.b16 %v2831, %v2829
    %v3888 = vpack.c.b16 %v2834, %v2832
    %v3889 = vpack.c.b16 %v2835, %v2833
    %v3890 = vpack.c.b16 %v2838, %v2836
    %v3891 = vpack.c.b16 %v2839, %v2837
    %v3892 = vpack.c.b16 %v2842, %v2840
    %v3893 = vpack.c.b16 %v2843, %v2841
    %v3894 = vpack.c.b16 %v2846, %v2844
    %v3895 = vpack.c.b16 %v2847, %v2845
    %v3896 = vpack.c.b16 %v2850, %v2848
    %v3897 = vpack.c.b16 %v2851, %v2849
    %v3898 = vpack.c.b16 %v2854, %v2852
    %v3899 = vpack.c.b16 %v2855, %v2853
    %v3900 = vpack.c.b16 %v2858, %v2856
    %v3901 = vpack.c.b16 %v2859, %v2857
    %v3902 = vpack.c.b16 %v2862, %v2860
    %v3903 = vpack.c.b16 %v2863, %v2861
    %v3904 = vpack.c.b16 %v2866, %v2864
    %v3905 = vpack.c.b16 %v2867, %v2865
    %v3906 = vpack.c.b16 %v2870, %v2868
    %v3907 = vpack.c.b16 %v2871, %v2869
    %v3908 = vpack.c.b16 %v2874, %v2872
    %v3909 = vpack.c.b16 %v2875, %v2873
    %v3910 = vpack.c.b16 %v2878, %v2876
    %v3911 = vpack.c.b16 %v2879, %v2877
    %v3912 = vpack.c.b16 %v2882, %v2880
    %v3913 = vpack.c.b16 %v2883, %v2881
    %v3914 = vpack.c.b16 %v2886, %v2884
    %v3915 = vpack.c.b16 %v2887, %v2885
    %v3916 = vpack.c.b16 %v2890, %v2888
    %v3917 = vpack.c.b16 %v2891, %v2889
    %v3918 = vpack.c.b16 %v2894, %v2892
    %v3919 = vpack.c.b16 %v2895, %v2893
    %v3920 = vpack.c.b16 %v2898, %v2896
    %v3921 = vpack.c.b16 %v2899, %v2897
    %v3922 = vpack.c.b16 %v2902, %v2900
    %v3923 = vpack.c.b16 %v2903, %v2901
    %v3924 = vpack.c.b16 %v2906, %v2904
    %v3925 = vpack.c.b16 %v2907, %v2905
    %v3926 = vpack.c.b16 %v2910, %v2908
    %v3927 = vpack.c.b16 %v2911, %v2909
    %v3928 = vpack.c.b16 %v2914, %v2912
    %v3929 = vpack.c.b16 %v2915, %v2913
    %v3930 = vpack.c.b16 %v2918, %v2916
    %v3931 = vpack.c.b16 %v2919, %v2917
    %v3932 = vpack.c.b16 %v2922, %v2920
    %v3933 = vpack.c.b16 %v2923, %v2921
    %v3934 = vpack.c.b16 %v2926, %v2924
    %v3935 = vpack.c.b16 %v2927, %v2925
    %v3936 = vpack.c.b16 %v2930, %v2928
    %v3937 = vpack.c.b16 %v2931, %v2929
    %v3938 = vpack.c.b16 %v2934, %v2932
    %v3939 = vpack.c.b16 %v2935, %v2933
    %v3940 = vpack.c.b16 %v2938, %v2936
    %v3941 = vpack.c.b16 %v2939, %v2937
    %v3942 = vpack.c.b16 %v2942, %v2940
    %v3943 = vpack.c.b16 %v2943, %v2941
    %v3944 = vpack.c.b16 %v2946, %v2944
    %v3945 = vpack.c.b16 %v2947, %v2945
    %v3946 = vpack.c.b16 %v2950, %v2948
    %v3947 = vpack.c.b16 %v2951, %v2949
    %v3948 = vpack.c.b16 %v2954, %v2952
    %v3949 = vpack.c.b16 %v2955, %v2953
    %v3950 = vpack.c.b16 %v2958, %v2956
    %v3951 = vpack.c.b16 %v2959, %v2957
    %v3952 = vpack.c.b16 %v2962, %v2960
    %v3953 = vpack.c.b16 %v2963, %v2961
    %v3954 = vpack.c.b16 %v2966, %v2964
    %v3955 = vpack.c.b16 %v2967, %v2965
    %v3956 = vpack.c.b16 %v2970, %v2968
    %v3957 = vpack.c.b16 %v2971, %v2969
    %v3958 = vpack.c.b16 %v2974, %v2972
    %v3959 = vpack.c.b16 %v2975, %v2973
    %v3960 = vpack.c.b16 %v2978, %v2976
    %v3961 = vpack.c.b16 %v2979, %v2977
    %v3962 = vpack.c.b16 %v2982, %v2980
    %v3963 = vpack.c.b16 %v2983, %v2981
    %v3964 = vpack.c.b16 %v2986, %v2984
    %v3965 = vpack.c.b16 %v2987, %v2985
    %v3966 = vpack.c.b16 %v2990, %v2988
    %v3967 = vpack.c.b16 %v2991, %v2989
    %v3968 = vpack.c.b16 %v2994, %v2992
    %v3969 = vpack.c.b16 %v2995, %v2993
    %v3970 = vpack.c.b16 %v2998, %v2996
    %v3971 = vpack.c.b16 %v2999, %v2997
    %v3972 = vpack.c.b16 %v3002, %v3000
    %v3973 = vpack.c.b16 %v3003, %v3001
    %v3974 = vpack.c.b16 %v3006, %v3004
    %v3975 = vpack.c.b16 %v3007, %v3005
    %v3976 = vpack.c.b16 %v3010, %v3008
    %v3977 = vpack.c.b16 %v3011, %v3009
    %v3978 = vpack.c.b16 %v3014, %v3012
    %v3979 = vpack.c.b16 %v3015, %v3013
    %v3980 = vpack.c.b16 %v3018, %v3016
    %v3981 = vpack.c.b16 %v3019, %v3017
    %v3982 = vpack.c.b16 %v3022, %v3020
    %v3983 = vpack.c.b16 %v3023, %v3021
    %v3984 = vpack.c.b16 %v3026, %v3024
    %v3985 = vpack.c.b16 %v3027, %v3025
    %v3986 = vpack.c.b16 %v3030, %v3028
    %v3987 = vpack.c.b16 %v3031, %v3029
    %v3988 = vpack.c.b16 %v3034, %v3032
    %v3989 = vpack.c.b16 %v3035, %v3033
    %v3990 = vpack.c.b16 %v3038, %v3036
    %v3991 = vpack.c.b16 %v3039, %v3037
    %v3992 = vpack.c.b16 %v3042, %v3040
    %v3993 = vpack.c.b16 %v3043, %v3041
    %v3994 = vpack.c.b16 %v3046, %v3044
    %v3995 = vpack.c.b16 %v3047, %v3045
    %v3996 = vpack.c.b16 %v3050, %v3048
    %v3997 = vpack.c.b16 %v3051, %v3049
    %v3998 = vpack.c.b16 %v3054, %v3052
    %v3999 = vpack.c.b16 %v3055, %v3053
    %v4000 = vpack.c.b16 %v3058, %v3056
    %v4001 = vpack.c.b16 %v3059, %v3057
    %v4002 = vpack.c.b16 %v3062, %v3060
    %v4003 = vpack.c.b16 %v3063, %v3061
    %v4004 = vpack.c.b16 %v3066, %v3064
    %v4005 = vpack.c.b16 %v3067, %v3065
    %v4006 = vpack.c.b16 %v3070, %v3068
    %v4007 = vpack.c.b16 %v3071, %v3069
    %v4008 = vpack.c.b16 %v3074, %v3072
    %v4009 = vpack.c.b16 %v3075, %v3073
    %v4010 = vpack.c.b16 %v3078, %v3076
    %v4011 = vpack.c.b16 %v3079, %v3077
    %v4012 = vpack.c.b16 %v3082, %v3080
    %v4013 = vpack.c.b16 %v3083, %v3081
    %v4014 = vpack.c.b16 %v3086, %v3084
    %v4015 = vpack.c.b16 %v3087, %v3085
    %v4016 = vpack.c.b16 %v3090, %v3088
    %v4017 = vpack.c.b16 %v3091, %v3089
    %v4018 = vpack.c.b16 %v3094, %v3092
    %v4019 = vpack.c.b16 %v3095, %v3093
    %v4020 = vpack.c.b16 %v3098, %v3096
    %v4021 = vpack.c.b16 %v3099, %v3097
    %v4022 = vpack.c.b16 %v3102, %v3100
    %v4023 = vpack.c.b16 %v3103, %v3101
    %v4024 = vpack.c.b16 %v3106, %v3104
    %v4025 = vpack.c.b16 %v3107, %v3105
    %v4026 = vpack.c.b16 %v3110, %v3108
    %v4027 = vpack.c.b16 %v3111, %v3109
    %v4028 = vpack.c.b16 %v3114, %v3112
    %v4029 = vpack.c.b16 %v3115, %v3113
    %v4030 = vpack.c.b16 %v3118, %v3116
    %v4031 = vpack.c.b16 %v3119, %v3117
    %v4032 = vpack.c.b16 %v3122, %v3120
    %v4033 = vpack.c.b16 %v3123, %v3121
    %v4034 = vpack.c.b16 %v3126, %v3124
    %v4035 = vpack.c.b16 %v3127, %v3125
    %v4036 = vpack.c.b16 %v3130, %v3128
    %v4037 = vpack.c.b16 %v3131, %v3129
    %v4038 = vpack.c.b16 %v3134, %v3132
    %v4039 = vpack.c.b16 %v3135, %v3133
    %v4040 = vpack.c.b16 %v3138, %v3136
    %v4041 = vpack.c.b16 %v3139, %v3137
    %v4042 = vpack.c.b16 %v3142, %v3140
    %v4043 = vpack.c.b16 %v3143, %v3141
    %v4044 = vpack.c.b16 %v3146, %v3144
    %v4045 = vpack.c.b16 %v3147, %v3145
    %v4046 = vpack.c.b16 %v3150, %v3148
    %v4047 = vpack.c.b16 %v3151, %v3149
    %v4048 = vpack.c.b16 %v3154, %v3152
    %v4049 = vpack.c.b16 %v3155, %v3153
    %v4050 = vpack.c.b16 %v3158, %v3156
    %v4051 = vpack.c.b16 %v3159, %v3157
    %v4052 = vpack.c.b16 %v3162, %v3160
    %v4053 = vpack.c.b16 %v3163, %v3161
    %v4054 = vpack.c.b16 %v3166, %v3164
    %v4055 = vpack.c.b16 %v3167, %v3165
    %v4056 = vpack.c.b16 %v3170, %v3168
    %v4057 = vpack.c.b16 %v3171, %v3169
    %v4058 = vpack.c.b16 %v3174, %v3172
    %v4059 = vpack.c.b16 %v3175, %v3173
    %v4060 = vpack.c.b16 %v3178, %v3176
    %v4061 = vpack.c.b16 %v3179, %v3177
    %v4062 = vpack.c.b16 %v3182, %v3180
    %v4063 = vpack.c.b16 %v3183, %v3181
    %v4064 = vpack.c.b16 %v3186, %v3184
    %v4065 = vpack.c.b16 %v3187, %v3185
    %v4066 = vpack.c.b16 %v3190, %v3188
    %v4067 = vpack.c.b16 %v3191, %v3189
    %v4068 = vpack.c.b16 %v3194, %v3192
    %v4069 = vpack.c.b16 %v3195, %v3193
    %v4070 = vpack.c.b16 %v3198, %v3196
    %v4071 = vpack.c.b16 %v3199, %v3197
    %v4072 = vpack.c.b16 %v3202, %v3200
    %v4073 = vpack.c.b16 %v3203, %v3201
    %v4074 = vpack.c.b16 %v3206, %v3204
    %v4075 = vpack.c.b16 %v3207, %v3205
    %v4076 = vpack.c.b16 %v3210, %v3208
    %v4077 = vpack.c.b16 %v3211, %v3209
    %v4078 = vpack.c.b16 %v3214, %v3212
    %v4079 = vpack.c.b16 %v3215, %v3213
    %v4080 = vpack.c.b16 %v3218, %v3216
    %v4081 = vpack.c.b16 %v3219, %v3217
    %v4082 = vpack.c.b16 %v3222, %v3220
    %v4083 = vpack.c.b16 %v3223, %v3221
    %v4084 = vpack.c.b16 %v3226, %v3224
    %v4085 = vpack.c.b16 %v3227, %v3225
    %v4086 = vpack.c.b16 %v3230, %v3228
    %v4087 = vpack.c.b16 %v3231, %v3229
    %v4088 = vpack.c.b16 %v3234, %v3232
    %v4089 = vpack.c.b16 %v3235, %v3233
    %v4090 = vpack.c.b16 %v3238, %v3236
    %v4091 = vpack.c.b16 %v3239, %v3237
    %v4092 = vpack.c.b16 %v3242, %v3240
    %v4093 = vpack.c.b16 %v3243, %v3241
    %v4094 = vpack.c.b16 %v3246, %v3244
    %v4095 = vpack.c.b16 %v3247, %v3245
    %v4096 = vpack.c.b16 %v3250, %v3248
    %v4097 = vpack.c.b16 %v3251, %v3249
    %v4098 = vpack.c.b16 %v3254, %v3252
    %v4099 = vpack.c.b16 %v3255, %v3253
    %v4100 = vpack.c.b16 %v3258, %v3256
    %v4101 = vpack.c.b16 %v3259, %v3257
    %v4102 = vpack.c.b16 %v3262, %v3260
    %v4103 = vpack.c.b16 %v3263, %v3261
    %v4104 = vpack.c.b16 %v3266, %v3264
    %v4105 = vpack.c.b16 %v3267, %v3265
    %v4106 = vpack.c.b16 %v3270, %v3268
    %v4107 = vpack.c.b16 %v3271, %v3269
    %v4108 = vpack.c.b16 %v3274, %v3272
    %v4109 = vpack.c.b16 %v3275, %v3273
    %v4110 = vpack.c.b16 %v3278, %v3276
    %v4111 = vpack.c.b16 %v3279, %v3277
    %v4112 = vpack.c.b16 %v3282, %v3280
    %v4113 = vpack.c.b16 %v3283, %v3281
    %v4114 = vpack.c.b16 %v3286, %v3284
    %v4115 = vpack.c.b16 %v3287, %v3285
    %v4116 = vpack.c.b16 %v3290, %v3288
    %v4117 = vpack.c.b16 %v3291, %v3289
    %v4118 = vpack.c.b16 %v3294, %v3292
    %v4119 = vpack.c.b16 %v3295, %v3293
    %v4120 = vpack.c.b16 %v3298, %v3296
    %v4121 = vpack.c.b16 %v3299, %v3297
    %v4122 = vpack.c.b16 %v3302, %v3300
    %v4123 = vpack.c.b16 %v3303, %v3301
    %v4124 = vpack.c.b16 %v3306, %v3304
    %v4125 = vpack.c.b16 %v3307, %v3305
    %v4126 = vpack.c.b16 %v3310, %v3308
    %v4127 = vpack.c.b16 %v3311, %v3309
    %v4128 = vpack.c.b16 %v3314, %v3312
    %v4129 = vpack.c.b16 %v3315, %v3313
    %v4130 = vpack.c.b16 %v3318, %v3316
    %v4131 = vpack.c.b16 %v3319, %v3317
    %v4132 = vpack.c.b16 %v3322, %v3320
    %v4133 = vpack.c.b16 %v3323, %v3321
    %v4134 = vpack.c.b16 %v3326, %v3324
    %v4135 = vpack.c.b16 %v3327, %v3325
    %v4136 = vpack.c.b16 %v3330, %v3328
    %v4137 = vpack.c.b16 %v3331, %v3329
    %v4138 = vpack.c.b16 %v3334, %v3332
    %v4139 = vpack.c.b16 %v3335, %v3333
    %v4140 = vpack.c.b16 %v3338, %v3336
    %v4141 = vpack.c.b16 %v3339, %v3337
    %v4142 = vpack.c.b16 %v3342, %v3340
    %v4143 = vpack.c.b16 %v3343, %v3341
    %v4144 = vpack.c.b16 %v3346, %v3344
    %v4145 = vpack.c.b16 %v3347, %v3345
    %v4146 = vpack.c.b16 %v3350, %v3348
    %v4147 = vpack.c.b16 %v3351, %v3349
    %v4148 = vpack.c.b16 %v3354, %v3352
    %v4149 = vpack.c.b16 %v3355, %v3353
    %v4150 = vpack.c.b16 %v3358, %v3356
    %v4151 = vpack.c.b16 %v3359, %v3357
    %v4152 = vpack.c.b16 %v3362, %v3360
    %v4153 = vpack.c.b16 %v3363, %v3361
    %v4154 = vpack.c.b16 %v3366, %v3364
    %v4155 = vpack.c.b16 %v3367, %v3365
    %v4156 = vpack.c.b16 %v3370, %v3368
    %v4157 = vpack.c.b16 %v3371, %v3369
    %v4158 = vpack.c.b16 %v3374, %v3372
    %v4159 = vpack.c.b16 %v3375, %v3373
    %4944 = vmatpush.bf16.msra.mxu0 %v3390
    %4945 = vmatpush.bf16.msra.mxu0 %v3388
    %4946 = vmatpush.bf16.msra.mxu0 %v3386
    %4947 = vmatpush.bf16.msra.mxu0 %v3384
    %4948 = vmatpush.bf16.msra.mxu0 %v3382
    %4949 = vmatpush.bf16.msra.mxu0 %v3380
    %4950 = vmatpush.bf16.msra.mxu0 %v3378
    %4951 = vmatpush.bf16.msra.mxu0 %v3376
    %4952 = vmatmul.bf16.gmra.mxu0 %v191
    %v4953 = vpop.f32.mrf.mxu0
    %v4954 = vadd.f32 0.0, %v4953
    %v4955 = vpop.f32.mrf.mxu0
    %4956 = vdwg.mxu0
    %4957 = vmatpush.bf16.msra.mxu0 %v3406
    %4958 = vmatpush.bf16.msra.mxu0 %v3404
    %4959 = vmatpush.bf16.msra.mxu0 %v3402
    %4960 = vmatpush.bf16.msra.mxu0 %v3400
    %4961 = vmatpush.bf16.msra.mxu0 %v3398
    %4962 = vmatpush.bf16.msra.mxu0 %v3396
    %4963 = vmatpush.bf16.msra.mxu0 %v3394
    %4964 = vmatpush.bf16.msra.mxu0 %v3392
    %4965 = vmatmul.bf16.gmra.mxu0 %v192
    %v4966 = vpop.f32.mrf.mxu0
    %v4967 = vadd.f32 %v4954, %v4966
    %v4968 = vpop.f32.mrf.mxu0
    %4969 = vdwg.mxu0
    %4970 = vmatpush.bf16.msra.mxu0 %v3422
    %4971 = vmatpush.bf16.msra.mxu0 %v3420
    %4972 = vmatpush.bf16.msra.mxu0 %v3418
    %4973 = vmatpush.bf16.msra.mxu0 %v3416
    %4974 = vmatpush.bf16.msra.mxu0 %v3414
    %4975 = vmatpush.bf16.msra.mxu0 %v3412
    %4976 = vmatpush.bf16.msra.mxu0 %v3410
    %4977 = vmatpush.bf16.msra.mxu0 %v3408
    %4978 = vmatmul.bf16.gmra.mxu0 %v193
    %v4979 = vpop.f32.mrf.mxu0
    %v4980 = vadd.f32 %v4967, %v4979
    %v4981 = vpop.f32.mrf.mxu0
    %4982 = vdwg.mxu0
    %4983 = vmatpush.bf16.msra.mxu0 %v3438
    %4984 = vmatpush.bf16.msra.mxu0 %v3436
    %4985 = vmatpush.bf16.msra.mxu0 %v3434
    %4986 = vmatpush.bf16.msra.mxu0 %v3432
    %4987 = vmatpush.bf16.msra.mxu0 %v3430
    %4988 = vmatpush.bf16.msra.mxu0 %v3428
    %4989 = vmatpush.bf16.msra.mxu0 %v3426
    %4990 = vmatpush.bf16.msra.mxu0 %v3424
    %4991 = vmatmul.bf16.gmra.mxu0 %v194
    %v4992 = vpop.f32.mrf.mxu0
    %v4993 = vadd.f32 %v4980, %v4992
    %v4994 = vpop.f32.mrf.mxu0
    %4995 = vdwg.mxu0
    %4996 = vmatpush.bf16.msra.mxu0 %v3454
    %4997 = vmatpush.bf16.msra.mxu0 %v3452
    %4998 = vmatpush.bf16.msra.mxu0 %v3450
    %4999 = vmatpush.bf16.msra.mxu0 %v3448
    %5000 = vmatpush.bf16.msra.mxu0 %v3446
    %5001 = vmatpush.bf16.msra.mxu0 %v3444
    %5002 = vmatpush.bf16.msra.mxu0 %v3442
    %5003 = vmatpush.bf16.msra.mxu0 %v3440
    %5004 = vmatmul.bf16.gmra.mxu0 %v195
    %v5005 = vpop.f32.mrf.mxu0
    %v5006 = vadd.f32 %v4993, %v5005
    %v5007 = vpop.f32.mrf.mxu0
    %5008 = vdwg.mxu0
    %5009 = vmatpush.bf16.msra.mxu0 %v3470
    %5010 = vmatpush.bf16.msra.mxu0 %v3468
    %5011 = vmatpush.bf16.msra.mxu0 %v3466
    %5012 = vmatpush.bf16.msra.mxu0 %v3464
    %5013 = vmatpush.bf16.msra.mxu0 %v3462
    %5014 = vmatpush.bf16.msra.mxu0 %v3460
    %5015 = vmatpush.bf16.msra.mxu0 %v3458
    %5016 = vmatpush.bf16.msra.mxu0 %v3456
    %5017 = vmatmul.bf16.gmra.mxu0 %v196
    %v5018 = vpop.f32.mrf.mxu0
    %v5019 = vadd.f32 %v5006, %v5018
    %v5020 = vpop.f32.mrf.mxu0
    %5021 = vdwg.mxu0
    %5022 = vmatpush.bf16.msra.mxu0 %v3486
    %5023 = vmatpush.bf16.msra.mxu0 %v3484
    %5024 = vmatpush.bf16.msra.mxu0 %v3482
    %5025 = vmatpush.bf16.msra.mxu0 %v3480
    %5026 = vmatpush.bf16.msra.mxu0 %v3478
    %5027 = vmatpush.bf16.msra.mxu0 %v3476
    %5028 = vmatpush.bf16.msra.mxu0 %v3474
    %5029 = vmatpush.bf16.msra.mxu0 %v3472
    %5030 = vmatmul.bf16.gmra.mxu0 %v197
    %v5031 = vpop.f32.mrf.mxu0
    %v5032 = vadd.f32 %v5019, %v5031
    %v5033 = vpop.f32.mrf.mxu0
    %5034 = vdwg.mxu0
    %5035 = vmatpush.bf16.msra.mxu0 %v3502
    %5036 = vmatpush.bf16.msra.mxu0 %v3500
    %5037 = vmatpush.bf16.msra.mxu0 %v3498
    %5038 = vmatpush.bf16.msra.mxu0 %v3496
    %5039 = vmatpush.bf16.msra.mxu0 %v3494
    %5040 = vmatpush.bf16.msra.mxu0 %v3492
    %5041 = vmatpush.bf16.msra.mxu0 %v3490
    %5042 = vmatpush.bf16.msra.mxu0 %v3488
    %5043 = vmatmul.bf16.gmra.mxu0 %v198
    %v5044 = vpop.f32.mrf.mxu0
    %v5045 = vadd.f32 %v5032, %v5044
    %v5046 = vpop.f32.mrf.mxu0
    %5047 = vdwg.mxu0
    %5048 = vmatpush.bf16.msra.mxu0 %v3518
    %5049 = vmatpush.bf16.msra.mxu0 %v3516
    %5050 = vmatpush.bf16.msra.mxu0 %v3514
    %5051 = vmatpush.bf16.msra.mxu0 %v3512
    %5052 = vmatpush.bf16.msra.mxu0 %v3510
    %5053 = vmatpush.bf16.msra.mxu0 %v3508
    %5054 = vmatpush.bf16.msra.mxu0 %v3506
    %5055 = vmatpush.bf16.msra.mxu0 %v3504
    %5056 = vmatmul.bf16.gmra.mxu0 %v199
    %v5057 = vpop.f32.mrf.mxu0
    %v5058 = vadd.f32 %v5045, %v5057
    %v5059 = vpop.f32.mrf.mxu0
    %5060 = vdwg.mxu0
    %5061 = vmatpush.bf16.msra.mxu0 %v3534
    %5062 = vmatpush.bf16.msra.mxu0 %v3532
    %5063 = vmatpush.bf16.msra.mxu0 %v3530
    %5064 = vmatpush.bf16.msra.mxu0 %v3528
    %5065 = vmatpush.bf16.msra.mxu0 %v3526
    %5066 = vmatpush.bf16.msra.mxu0 %v3524
    %5067 = vmatpush.bf16.msra.mxu0 %v3522
    %5068 = vmatpush.bf16.msra.mxu0 %v3520
    %5069 = vmatmul.bf16.gmra.mxu0 %v200
    %v5070 = vpop.f32.mrf.mxu0
    %v5071 = vadd.f32 %v5058, %v5070
    %v5072 = vpop.f32.mrf.mxu0
    %5073 = vdwg.mxu0
    %5074 = vmatpush.bf16.msra.mxu0 %v3550
    %5075 = vmatpush.bf16.msra.mxu0 %v3548
    %5076 = vmatpush.bf16.msra.mxu0 %v3546
    %5077 = vmatpush.bf16.msra.mxu0 %v3544
    %5078 = vmatpush.bf16.msra.mxu0 %v3542
    %5079 = vmatpush.bf16.msra.mxu0 %v3540
    %5080 = vmatpush.bf16.msra.mxu0 %v3538
    %5081 = vmatpush.bf16.msra.mxu0 %v3536
    %5082 = vmatmul.bf16.gmra.mxu0 %v201
    %v5083 = vpop.f32.mrf.mxu0
    %v5084 = vadd.f32 %v5071, %v5083
    %v5085 = vpop.f32.mrf.mxu0
    %5086 = vdwg.mxu0
    %5087 = vmatpush.bf16.msra.mxu0 %v3566
    %5088 = vmatpush.bf16.msra.mxu0 %v3564
    %5089 = vmatpush.bf16.msra.mxu0 %v3562
    %5090 = vmatpush.bf16.msra.mxu0 %v3560
    %5091 = vmatpush.bf16.msra.mxu0 %v3558
    %5092 = vmatpush.bf16.msra.mxu0 %v3556
    %5093 = vmatpush.bf16.msra.mxu0 %v3554
    %5094 = vmatpush.bf16.msra.mxu0 %v3552
    %5095 = vmatmul.bf16.gmra.mxu0 %v202
    %v5096 = vpop.f32.mrf.mxu0
    %v5097 = vadd.f32 %v5084, %v5096
    %v5098 = vpop.f32.mrf.mxu0
    %5099 = vdwg.mxu0
    %5100 = vmatpush.bf16.msra.mxu0 %v3582
    %5101 = vmatpush.bf16.msra.mxu0 %v3580
    %5102 = vmatpush.bf16.msra.mxu0 %v3578
    %5103 = vmatpush.bf16.msra.mxu0 %v3576
    %5104 = vmatpush.bf16.msra.mxu0 %v3574
    %5105 = vmatpush.bf16.msra.mxu0 %v3572
    %5106 = vmatpush.bf16.msra.mxu0 %v3570
    %5107 = vmatpush.bf16.msra.mxu0 %v3568
    %5108 = vmatmul.bf16.gmra.mxu0 %v203
    %v5109 = vpop.f32.mrf.mxu0
    %v5110 = vadd.f32 %v5097, %v5109
    %v5111 = vpop.f32.mrf.mxu0
    %5112 = vdwg.mxu0
    %5113 = vmatpush.bf16.msra.mxu0 %v3598
    %5114 = vmatpush.bf16.msra.mxu0 %v3596
    %5115 = vmatpush.bf16.msra.mxu0 %v3594
    %5116 = vmatpush.bf16.msra.mxu0 %v3592
    %5117 = vmatpush.bf16.msra.mxu0 %v3590
    %5118 = vmatpush.bf16.msra.mxu0 %v3588
    %5119 = vmatpush.bf16.msra.mxu0 %v3586
    %5120 = vmatpush.bf16.msra.mxu0 %v3584
    %5121 = vmatmul.bf16.gmra.mxu0 %v204
    %v5122 = vpop.f32.mrf.mxu0
    %v5123 = vadd.f32 %v5110, %v5122
    %v5124 = vpop.f32.mrf.mxu0
    %5125 = vdwg.mxu0
    %5126 = vmatpush.bf16.msra.mxu0 %v3614
    %5127 = vmatpush.bf16.msra.mxu0 %v3612
    %5128 = vmatpush.bf16.msra.mxu0 %v3610
    %5129 = vmatpush.bf16.msra.mxu0 %v3608
    %5130 = vmatpush.bf16.msra.mxu0 %v3606
    %5131 = vmatpush.bf16.msra.mxu0 %v3604
    %5132 = vmatpush.bf16.msra.mxu0 %v3602
    %5133 = vmatpush.bf16.msra.mxu0 %v3600
    %5134 = vmatmul.bf16.gmra.mxu0 %v205
    %v5135 = vpop.f32.mrf.mxu0
    %v5136 = vadd.f32 %v5123, %v5135
    %v5137 = vpop.f32.mrf.mxu0
    %5138 = vdwg.mxu0
    %5139 = vmatpush.bf16.msra.mxu0 %v3630
    %5140 = vmatpush.bf16.msra.mxu0 %v3628
    %5141 = vmatpush.bf16.msra.mxu0 %v3626
    %5142 = vmatpush.bf16.msra.mxu0 %v3624
    %5143 = vmatpush.bf16.msra.mxu0 %v3622
    %5144 = vmatpush.bf16.msra.mxu0 %v3620
    %5145 = vmatpush.bf16.msra.mxu0 %v3618
    %5146 = vmatpush.bf16.msra.mxu0 %v3616
    %5147 = vmatmul.bf16.gmra.mxu0 %v206
    %v5148 = vpop.f32.mrf.mxu0
    %v5149 = vadd.f32 %v5136, %v5148
    %v5150 = vpop.f32.mrf.mxu0
    %5151 = vdwg.mxu0
    %5152 = vmatpush.bf16.msra.mxu0 %v3646
    %5153 = vmatpush.bf16.msra.mxu0 %v3644
    %5154 = vmatpush.bf16.msra.mxu0 %v3642
    %5155 = vmatpush.bf16.msra.mxu0 %v3640
    %5156 = vmatpush.bf16.msra.mxu0 %v3638
    %5157 = vmatpush.bf16.msra.mxu0 %v3636
    %5158 = vmatpush.bf16.msra.mxu0 %v3634
    %5159 = vmatpush.bf16.msra.mxu0 %v3632
    %5160 = vmatmul.bf16.gmra.mxu0 %v207
    %v5161 = vpop.f32.mrf.mxu0
    %v5162 = vadd.f32 %v5149, %v5161
    %v5163 = vpop.f32.mrf.mxu0
    %5164 = vdwg.mxu0
    %5165 = vmatpush.bf16.msra.mxu0 %v3662
    %5166 = vmatpush.bf16.msra.mxu0 %v3660
    %5167 = vmatpush.bf16.msra.mxu0 %v3658
    %5168 = vmatpush.bf16.msra.mxu0 %v3656
    %5169 = vmatpush.bf16.msra.mxu0 %v3654
    %5170 = vmatpush.bf16.msra.mxu0 %v3652
    %5171 = vmatpush.bf16.msra.mxu0 %v3650
    %5172 = vmatpush.bf16.msra.mxu0 %v3648
    %5173 = vmatmul.bf16.gmra.mxu0 %v208
    %v5174 = vpop.f32.mrf.mxu0
    %v5175 = vadd.f32 %v5162, %v5174
    %v5176 = vpop.f32.mrf.mxu0
    %5177 = vdwg.mxu0
    %5178 = vmatpush.bf16.msra.mxu0 %v3678
    %5179 = vmatpush.bf16.msra.mxu0 %v3676
    %5180 = vmatpush.bf16.msra.mxu0 %v3674
    %5181 = vmatpush.bf16.msra.mxu0 %v3672
    %5182 = vmatpush.bf16.msra.mxu0 %v3670
    %5183 = vmatpush.bf16.msra.mxu0 %v3668
    %5184 = vmatpush.bf16.msra.mxu0 %v3666
    %5185 = vmatpush.bf16.msra.mxu0 %v3664
    %5186 = vmatmul.bf16.gmra.mxu0 %v209
    %v5187 = vpop.f32.mrf.mxu0
    %v5188 = vadd.f32 %v5175, %v5187
    %v5189 = vpop.f32.mrf.mxu0
    %5190 = vdwg.mxu0
    %5191 = vmatpush.bf16.msra.mxu0 %v3694
    %5192 = vmatpush.bf16.msra.mxu0 %v3692
    %5193 = vmatpush.bf16.msra.mxu0 %v3690
    %5194 = vmatpush.bf16.msra.mxu0 %v3688
    %5195 = vmatpush.bf16.msra.mxu0 %v3686
    %5196 = vmatpush.bf16.msra.mxu0 %v3684
    %5197 = vmatpush.bf16.msra.mxu0 %v3682
    %5198 = vmatpush.bf16.msra.mxu0 %v3680
    %5199 = vmatmul.bf16.gmra.mxu0 %v210
    %v5200 = vpop.f32.mrf.mxu0
    %v5201 = vadd.f32 %v5188, %v5200
    %v5202 = vpop.f32.mrf.mxu0
    %5203 = vdwg.mxu0
    %5204 = vmatpush.bf16.msra.mxu0 %v3710
    %5205 = vmatpush.bf16.msra.mxu0 %v3708
    %5206 = vmatpush.bf16.msra.mxu0 %v3706
    %5207 = vmatpush.bf16.msra.mxu0 %v3704
    %5208 = vmatpush.bf16.msra.mxu0 %v3702
    %5209 = vmatpush.bf16.msra.mxu0 %v3700
    %5210 = vmatpush.bf16.msra.mxu0 %v3698
    %5211 = vmatpush.bf16.msra.mxu0 %v3696
    %5212 = vmatmul.bf16.gmra.mxu0 %v211
    %v5213 = vpop.f32.mrf.mxu0
    %v5214 = vadd.f32 %v5201, %v5213
    %v5215 = vpop.f32.mrf.mxu0
    %5216 = vdwg.mxu0
    %5217 = vmatpush.bf16.msra.mxu0 %v3726
    %5218 = vmatpush.bf16.msra.mxu0 %v3724
    %5219 = vmatpush.bf16.msra.mxu0 %v3722
    %5220 = vmatpush.bf16.msra.mxu0 %v3720
    %5221 = vmatpush.bf16.msra.mxu0 %v3718
    %5222 = vmatpush.bf16.msra.mxu0 %v3716
    %5223 = vmatpush.bf16.msra.mxu0 %v3714
    %5224 = vmatpush.bf16.msra.mxu0 %v3712
    %5225 = vmatmul.bf16.gmra.mxu0 %v212
    %v5226 = vpop.f32.mrf.mxu0
    %v5227 = vadd.f32 %v5214, %v5226
    %v5228 = vpop.f32.mrf.mxu0
    %5229 = vdwg.mxu0
    %5230 = vmatpush.bf16.msra.mxu0 %v3742
    %5231 = vmatpush.bf16.msra.mxu0 %v3740
    %5232 = vmatpush.bf16.msra.mxu0 %v3738
    %5233 = vmatpush.bf16.msra.mxu0 %v3736
    %5234 = vmatpush.bf16.msra.mxu0 %v3734
    %5235 = vmatpush.bf16.msra.mxu0 %v3732
    %5236 = vmatpush.bf16.msra.mxu0 %v3730
    %5237 = vmatpush.bf16.msra.mxu0 %v3728
    %5238 = vmatmul.bf16.gmra.mxu0 %v213
    %v5239 = vpop.f32.mrf.mxu0
    %v5240 = vadd.f32 %v5227, %v5239
    %v5241 = vpop.f32.mrf.mxu0
    %5242 = vdwg.mxu0
    %5243 = vmatpush.bf16.msra.mxu0 %v3758
    %5244 = vmatpush.bf16.msra.mxu0 %v3756
    %5245 = vmatpush.bf16.msra.mxu0 %v3754
    %5246 = vmatpush.bf16.msra.mxu0 %v3752
    %5247 = vmatpush.bf16.msra.mxu0 %v3750
    %5248 = vmatpush.bf16.msra.mxu0 %v3748
    %5249 = vmatpush.bf16.msra.mxu0 %v3746
    %5250 = vmatpush.bf16.msra.mxu0 %v3744
    %5251 = vmatmul.bf16.gmra.mxu0 %v214
    %v5252 = vpop.f32.mrf.mxu0
    %v5253 = vadd.f32 %v5240, %v5252
    %v5254 = vpop.f32.mrf.mxu0
    %5255 = vdwg.mxu0
    %5256 = vmatpush.bf16.msra.mxu0 %v3774
    %5257 = vmatpush.bf16.msra.mxu0 %v3772
    %5258 = vmatpush.bf16.msra.mxu0 %v3770
    %5259 = vmatpush.bf16.msra.mxu0 %v3768
    %5260 = vmatpush.bf16.msra.mxu0 %v3766
    %5261 = vmatpush.bf16.msra.mxu0 %v3764
    %5262 = vmatpush.bf16.msra.mxu0 %v3762
    %5263 = vmatpush.bf16.msra.mxu0 %v3760
    %5264 = vmatmul.bf16.gmra.mxu0 %v215
    %v5265 = vpop.f32.mrf.mxu0
    %v5266 = vadd.f32 %v5253, %v5265
    %v5267 = vpop.f32.mrf.mxu0
    %5268 = vdwg.mxu0
    %5269 = vmatpush.bf16.msra.mxu0 %v3790
    %5270 = vmatpush.bf16.msra.mxu0 %v3788
    %5271 = vmatpush.bf16.msra.mxu0 %v3786
    %5272 = vmatpush.bf16.msra.mxu0 %v3784
    %5273 = vmatpush.bf16.msra.mxu0 %v3782
    %5274 = vmatpush.bf16.msra.mxu0 %v3780
    %5275 = vmatpush.bf16.msra.mxu0 %v3778
    %5276 = vmatpush.bf16.msra.mxu0 %v3776
    %5277 = vmatmul.bf16.gmra.mxu0 %v216
    %v5278 = vpop.f32.mrf.mxu0
    %v5279 = vadd.f32 %v5266, %v5278
    %v5280 = vpop.f32.mrf.mxu0
    %5281 = vdwg.mxu0
    %5282 = vmatpush.bf16.msra.mxu0 %v3806
    %5283 = vmatpush.bf16.msra.mxu0 %v3804
    %5284 = vmatpush.bf16.msra.mxu0 %v3802
    %5285 = vmatpush.bf16.msra.mxu0 %v3800
    %5286 = vmatpush.bf16.msra.mxu0 %v3798
    %5287 = vmatpush.bf16.msra.mxu0 %v3796
    %5288 = vmatpush.bf16.msra.mxu0 %v3794
    %5289 = vmatpush.bf16.msra.mxu0 %v3792
    %5290 = vmatmul.bf16.gmra.mxu0 %v217
    %v5291 = vpop.f32.mrf.mxu0
    %v5292 = vadd.f32 %v5279, %v5291
    %v5293 = vpop.f32.mrf.mxu0
    %5294 = vdwg.mxu0
    %5295 = vmatpush.bf16.msra.mxu0 %v3822
    %5296 = vmatpush.bf16.msra.mxu0 %v3820
    %5297 = vmatpush.bf16.msra.mxu0 %v3818
    %5298 = vmatpush.bf16.msra.mxu0 %v3816
    %5299 = vmatpush.bf16.msra.mxu0 %v3814
    %5300 = vmatpush.bf16.msra.mxu0 %v3812
    %5301 = vmatpush.bf16.msra.mxu0 %v3810
    %5302 = vmatpush.bf16.msra.mxu0 %v3808
    %5303 = vmatmul.bf16.gmra.mxu0 %v218
    %v5304 = vpop.f32.mrf.mxu0
    %v5305 = vadd.f32 %v5292, %v5304
    %v5306 = vpop.f32.mrf.mxu0
    %5307 = vdwg.mxu0
    %5308 = vmatpush.bf16.msra.mxu0 %v3838
    %5309 = vmatpush.bf16.msra.mxu0 %v3836
    %5310 = vmatpush.bf16.msra.mxu0 %v3834
    %5311 = vmatpush.bf16.msra.mxu0 %v3832
    %5312 = vmatpush.bf16.msra.mxu0 %v3830
    %5313 = vmatpush.bf16.msra.mxu0 %v3828
    %5314 = vmatpush.bf16.msra.mxu0 %v3826
    %5315 = vmatpush.bf16.msra.mxu0 %v3824
    %5316 = vmatmul.bf16.gmra.mxu0 %v219
    %v5317 = vpop.f32.mrf.mxu0
    %v5318 = vadd.f32 %v5305, %v5317
    %v5319 = vpop.f32.mrf.mxu0
    %5320 = vdwg.mxu0
    %5321 = vmatpush.bf16.msra.mxu0 %v3854
    %5322 = vmatpush.bf16.msra.mxu0 %v3852
    %5323 = vmatpush.bf16.msra.mxu0 %v3850
    %5324 = vmatpush.bf16.msra.mxu0 %v3848
    %5325 = vmatpush.bf16.msra.mxu0 %v3846
    %5326 = vmatpush.bf16.msra.mxu0 %v3844
    %5327 = vmatpush.bf16.msra.mxu0 %v3842
    %5328 = vmatpush.bf16.msra.mxu0 %v3840
    %5329 = vmatmul.bf16.gmra.mxu0 %v220
    %v5330 = vpop.f32.mrf.mxu0
    %v5331 = vadd.f32 %v5318, %v5330
    %v5332 = vpop.f32.mrf.mxu0
    %5333 = vdwg.mxu0
    %5334 = vmatpush.bf16.msra.mxu0 %v3870
    %5335 = vmatpush.bf16.msra.mxu0 %v3868
    %5336 = vmatpush.bf16.msra.mxu0 %v3866
    %5337 = vmatpush.bf16.msra.mxu0 %v3864
    %5338 = vmatpush.bf16.msra.mxu0 %v3862
    %5339 = vmatpush.bf16.msra.mxu0 %v3860
    %5340 = vmatpush.bf16.msra.mxu0 %v3858
    %5341 = vmatpush.bf16.msra.mxu0 %v3856
    %5342 = vmatmul.bf16.gmra.mxu0 %v221
    %v5343 = vpop.f32.mrf.mxu0
    %v5344 = vadd.f32 %v5331, %v5343
    %v5345 = vpop.f32.mrf.mxu0
    %5346 = vdwg.mxu0
    %5347 = vmatpush.bf16.msra.mxu0 %v3886
    %5348 = vmatpush.bf16.msra.mxu0 %v3884
    %5349 = vmatpush.bf16.msra.mxu0 %v3882
    %5350 = vmatpush.bf16.msra.mxu0 %v3880
    %5351 = vmatpush.bf16.msra.mxu0 %v3878
    %5352 = vmatpush.bf16.msra.mxu0 %v3876
    %5353 = vmatpush.bf16.msra.mxu0 %v3874
    %5354 = vmatpush.bf16.msra.mxu0 %v3872
    %5355 = vmatmul.bf16.gmra.mxu0 %v222
    %v5356 = vpop.f32.mrf.mxu0
    %v5357 = vadd.f32 %v5344, %v5356
    %v5358 = vpop.f32.mrf.mxu0
    %5359 = vdwg.mxu0
    %5360 = vmatpush.bf16.msra.mxu0 %v3902
    %5361 = vmatpush.bf16.msra.mxu0 %v3900
    %5362 = vmatpush.bf16.msra.mxu0 %v3898
    %5363 = vmatpush.bf16.msra.mxu0 %v3896
    %5364 = vmatpush.bf16.msra.mxu0 %v3894
    %5365 = vmatpush.bf16.msra.mxu0 %v3892
    %5366 = vmatpush.bf16.msra.mxu0 %v3890
    %5367 = vmatpush.bf16.msra.mxu0 %v3888
    %5368 = vmatmul.bf16.gmra.mxu0 %v223
    %v5369 = vpop.f32.mrf.mxu0
    %v5370 = vadd.f32 %v5357, %v5369
    %v5371 = vpop.f32.mrf.mxu0
    %5372 = vdwg.mxu0
    %5373 = vmatpush.bf16.msra.mxu0 %v3918
    %5374 = vmatpush.bf16.msra.mxu0 %v3916
    %5375 = vmatpush.bf16.msra.mxu0 %v3914
    %5376 = vmatpush.bf16.msra.mxu0 %v3912
    %5377 = vmatpush.bf16.msra.mxu0 %v3910
    %5378 = vmatpush.bf16.msra.mxu0 %v3908
    %5379 = vmatpush.bf16.msra.mxu0 %v3906
    %5380 = vmatpush.bf16.msra.mxu0 %v3904
    %5381 = vmatmul.bf16.gmra.mxu0 %v224
    %v5382 = vpop.f32.mrf.mxu0
    %v5383 = vadd.f32 %v5370, %v5382
    %v5384 = vpop.f32.mrf.mxu0
    %5385 = vdwg.mxu0
    %5386 = vmatpush.bf16.msra.mxu0 %v3934
    %5387 = vmatpush.bf16.msra.mxu0 %v3932
    %5388 = vmatpush.bf16.msra.mxu0 %v3930
    %5389 = vmatpush.bf16.msra.mxu0 %v3928
    %5390 = vmatpush.bf16.msra.mxu0 %v3926
    %5391 = vmatpush.bf16.msra.mxu0 %v3924
    %5392 = vmatpush.bf16.msra.mxu0 %v3922
    %5393 = vmatpush.bf16.msra.mxu0 %v3920
    %5394 = vmatmul.bf16.gmra.mxu0 %v225
    %v5395 = vpop.f32.mrf.mxu0
    %v5396 = vadd.f32 %v5383, %v5395
    %v5397 = vpop.f32.mrf.mxu0
    %5398 = vdwg.mxu0
    %5399 = vmatpush.bf16.msra.mxu0 %v3950
    %5400 = vmatpush.bf16.msra.mxu0 %v3948
    %5401 = vmatpush.bf16.msra.mxu0 %v3946
    %5402 = vmatpush.bf16.msra.mxu0 %v3944
    %5403 = vmatpush.bf16.msra.mxu0 %v3942
    %5404 = vmatpush.bf16.msra.mxu0 %v3940
    %5405 = vmatpush.bf16.msra.mxu0 %v3938
    %5406 = vmatpush.bf16.msra.mxu0 %v3936
    %5407 = vmatmul.bf16.gmra.mxu0 %v226
    %v5408 = vpop.f32.mrf.mxu0
    %v5409 = vadd.f32 %v5396, %v5408
    %v5410 = vpop.f32.mrf.mxu0
    %5411 = vdwg.mxu0
    %5412 = vmatpush.bf16.msra.mxu0 %v3966
    %5413 = vmatpush.bf16.msra.mxu0 %v3964
    %5414 = vmatpush.bf16.msra.mxu0 %v3962
    %5415 = vmatpush.bf16.msra.mxu0 %v3960
    %5416 = vmatpush.bf16.msra.mxu0 %v3958
    %5417 = vmatpush.bf16.msra.mxu0 %v3956
    %5418 = vmatpush.bf16.msra.mxu0 %v3954
    %5419 = vmatpush.bf16.msra.mxu0 %v3952
    %5420 = vmatmul.bf16.gmra.mxu0 %v227
    %v5421 = vpop.f32.mrf.mxu0
    %v5422 = vadd.f32 %v5409, %v5421
    %v5423 = vpop.f32.mrf.mxu0
    %5424 = vdwg.mxu0
    %5425 = vmatpush.bf16.msra.mxu0 %v3982
    %5426 = vmatpush.bf16.msra.mxu0 %v3980
    %5427 = vmatpush.bf16.msra.mxu0 %v3978
    %5428 = vmatpush.bf16.msra.mxu0 %v3976
    %5429 = vmatpush.bf16.msra.mxu0 %v3974
    %5430 = vmatpush.bf16.msra.mxu0 %v3972
    %5431 = vmatpush.bf16.msra.mxu0 %v3970
    %5432 = vmatpush.bf16.msra.mxu0 %v3968
    %5433 = vmatmul.bf16.gmra.mxu0 %v228
    %v5434 = vpop.f32.mrf.mxu0
    %v5435 = vadd.f32 %v5422, %v5434
    %v5436 = vpop.f32.mrf.mxu0
    %5437 = vdwg.mxu0
    %5438 = vmatpush.bf16.msra.mxu0 %v3998
    %5439 = vmatpush.bf16.msra.mxu0 %v3996
    %5440 = vmatpush.bf16.msra.mxu0 %v3994
    %5441 = vmatpush.bf16.msra.mxu0 %v3992
    %5442 = vmatpush.bf16.msra.mxu0 %v3990
    %5443 = vmatpush.bf16.msra.mxu0 %v3988
    %5444 = vmatpush.bf16.msra.mxu0 %v3986
    %5445 = vmatpush.bf16.msra.mxu0 %v3984
    %5446 = vmatmul.bf16.gmra.mxu0 %v229
    %v5447 = vpop.f32.mrf.mxu0
    %v5448 = vadd.f32 %v5435, %v5447
    %v5449 = vpop.f32.mrf.mxu0
    %5450 = vdwg.mxu0
    %5451 = vmatpush.bf16.msra.mxu0 %v4014
    %5452 = vmatpush.bf16.msra.mxu0 %v4012
    %5453 = vmatpush.bf16.msra.mxu0 %v4010
    %5454 = vmatpush.bf16.msra.mxu0 %v4008
    %5455 = vmatpush.bf16.msra.mxu0 %v4006
    %5456 = vmatpush.bf16.msra.mxu0 %v4004
    %5457 = vmatpush.bf16.msra.mxu0 %v4002
    %5458 = vmatpush.bf16.msra.mxu0 %v4000
    %5459 = vmatmul.bf16.gmra.mxu0 %v230
    %v5460 = vpop.f32.mrf.mxu0
    %v5461 = vadd.f32 %v5448, %v5460
    %v5462 = vpop.f32.mrf.mxu0
    %5463 = vdwg.mxu0
    %5464 = vmatpush.bf16.msra.mxu0 %v4030
    %5465 = vmatpush.bf16.msra.mxu0 %v4028
    %5466 = vmatpush.bf16.msra.mxu0 %v4026
    %5467 = vmatpush.bf16.msra.mxu0 %v4024
    %5468 = vmatpush.bf16.msra.mxu0 %v4022
    %5469 = vmatpush.bf16.msra.mxu0 %v4020
    %5470 = vmatpush.bf16.msra.mxu0 %v4018
    %5471 = vmatpush.bf16.msra.mxu0 %v4016
    %5472 = vmatmul.bf16.gmra.mxu0 %v231
    %v5473 = vpop.f32.mrf.mxu0
    %v5474 = vadd.f32 %v5461, %v5473
    %v5475 = vpop.f32.mrf.mxu0
    %5476 = vdwg.mxu0
    %5477 = vmatpush.bf16.msra.mxu0 %v4046
    %5478 = vmatpush.bf16.msra.mxu0 %v4044
    %5479 = vmatpush.bf16.msra.mxu0 %v4042
    %5480 = vmatpush.bf16.msra.mxu0 %v4040
    %5481 = vmatpush.bf16.msra.mxu0 %v4038
    %5482 = vmatpush.bf16.msra.mxu0 %v4036
    %5483 = vmatpush.bf16.msra.mxu0 %v4034
    %5484 = vmatpush.bf16.msra.mxu0 %v4032
    %5485 = vmatmul.bf16.gmra.mxu0 %v232
    %v5486 = vpop.f32.mrf.mxu0
    %v5487 = vadd.f32 %v5474, %v5486
    %v5488 = vpop.f32.mrf.mxu0
    %5489 = vdwg.mxu0
    %5490 = vmatpush.bf16.msra.mxu0 %v4062
    %5491 = vmatpush.bf16.msra.mxu0 %v4060
    %5492 = vmatpush.bf16.msra.mxu0 %v4058
    %5493 = vmatpush.bf16.msra.mxu0 %v4056
    %5494 = vmatpush.bf16.msra.mxu0 %v4054
    %5495 = vmatpush.bf16.msra.mxu0 %v4052
    %5496 = vmatpush.bf16.msra.mxu0 %v4050
    %5497 = vmatpush.bf16.msra.mxu0 %v4048
    %5498 = vmatmul.bf16.gmra.mxu0 %v233
    %v5499 = vpop.f32.mrf.mxu0
    %v5500 = vadd.f32 %v5487, %v5499
    %v5501 = vpop.f32.mrf.mxu0
    %5502 = vdwg.mxu0
    %5503 = vmatpush.bf16.msra.mxu0 %v4078
    %5504 = vmatpush.bf16.msra.mxu0 %v4076
    %5505 = vmatpush.bf16.msra.mxu0 %v4074
    %5506 = vmatpush.bf16.msra.mxu0 %v4072
    %5507 = vmatpush.bf16.msra.mxu0 %v4070
    %5508 = vmatpush.bf16.msra.mxu0 %v4068
    %5509 = vmatpush.bf16.msra.mxu0 %v4066
    %5510 = vmatpush.bf16.msra.mxu0 %v4064
    %5511 = vmatmul.bf16.gmra.mxu0 %v234
    %v5512 = vpop.f32.mrf.mxu0
    %v5513 = vadd.f32 %v5500, %v5512
    %v5514 = vpop.f32.mrf.mxu0
    %5515 = vdwg.mxu0
    %5516 = vmatpush.bf16.msra.mxu0 %v4094
    %5517 = vmatpush.bf16.msra.mxu0 %v4092
    %5518 = vmatpush.bf16.msra.mxu0 %v4090
    %5519 = vmatpush.bf16.msra.mxu0 %v4088
    %5520 = vmatpush.bf16.msra.mxu0 %v4086
    %5521 = vmatpush.bf16.msra.mxu0 %v4084
    %5522 = vmatpush.bf16.msra.mxu0 %v4082
    %5523 = vmatpush.bf16.msra.mxu0 %v4080
    %5524 = vmatmul.bf16.gmra.mxu0 %v235
    %v5525 = vpop.f32.mrf.mxu0
    %v5526 = vadd.f32 %v5513, %v5525
    %v5527 = vpop.f32.mrf.mxu0
    %5528 = vdwg.mxu0
    %5529 = vmatpush.bf16.msra.mxu0 %v4110
    %5530 = vmatpush.bf16.msra.mxu0 %v4108
    %5531 = vmatpush.bf16.msra.mxu0 %v4106
    %5532 = vmatpush.bf16.msra.mxu0 %v4104
    %5533 = vmatpush.bf16.msra.mxu0 %v4102
    %5534 = vmatpush.bf16.msra.mxu0 %v4100
    %5535 = vmatpush.bf16.msra.mxu0 %v4098
    %5536 = vmatpush.bf16.msra.mxu0 %v4096
    %5537 = vmatmul.bf16.gmra.mxu0 %v236
    %v5538 = vpop.f32.mrf.mxu0
    %v5539 = vadd.f32 %v5526, %v5538
    %v5540 = vpop.f32.mrf.mxu0
    %5541 = vdwg.mxu0
    %5542 = vmatpush.bf16.msra.mxu0 %v4126
    %5543 = vmatpush.bf16.msra.mxu0 %v4124
    %5544 = vmatpush.bf16.msra.mxu0 %v4122
    %5545 = vmatpush.bf16.msra.mxu0 %v4120
    %5546 = vmatpush.bf16.msra.mxu0 %v4118
    %5547 = vmatpush.bf16.msra.mxu0 %v4116
    %5548 = vmatpush.bf16.msra.mxu0 %v4114
    %5549 = vmatpush.bf16.msra.mxu0 %v4112
    %5550 = vmatmul.bf16.gmra.mxu0 %v237
    %v5551 = vpop.f32.mrf.mxu0
    %v5552 = vadd.f32 %v5539, %v5551
    %v5553 = vpop.f32.mrf.mxu0
    %5554 = vdwg.mxu0
    %5555 = vmatpush.bf16.msra.mxu0 %v4142
    %5556 = vmatpush.bf16.msra.mxu0 %v4140
    %5557 = vmatpush.bf16.msra.mxu0 %v4138
    %5558 = vmatpush.bf16.msra.mxu0 %v4136
    %5559 = vmatpush.bf16.msra.mxu0 %v4134
    %5560 = vmatpush.bf16.msra.mxu0 %v4132
    %5561 = vmatpush.bf16.msra.mxu0 %v4130
    %5562 = vmatpush.bf16.msra.mxu0 %v4128
    %5563 = vmatmul.bf16.gmra.mxu0 %v238
    %v5564 = vpop.f32.mrf.mxu0
    %v5565 = vadd.f32 %v5552, %v5564
    %v5566 = vpop.f32.mrf.mxu0
    %5567 = vdwg.mxu0
    %5568 = vmatpush.bf16.msra.mxu0 %v4158
    %5569 = vmatpush.bf16.msra.mxu0 %v4156
    %5570 = vmatpush.bf16.msra.mxu0 %v4154
    %5571 = vmatpush.bf16.msra.mxu0 %v4152
    %5572 = vmatpush.bf16.msra.mxu0 %v4150
    %5573 = vmatpush.bf16.msra.mxu0 %v4148
    %5574 = vmatpush.bf16.msra.mxu0 %v4146
    %5575 = vmatpush.bf16.msra.mxu0 %v4144
    %5576 = vmatmul.bf16.gmra.mxu0 %v239
    %v5577 = vpop.f32.mrf.mxu0
    %v5578 = vadd.f32 %v5565, %v5577
    %v5579 = vpop.f32.mrf.mxu0
    %5580 = vdwg.mxu0
    %5581 = vmatpush.bf16.msra.mxu0 %v3391
    %5582 = vmatpush.bf16.msra.mxu0 %v3389
    %5583 = vmatpush.bf16.msra.mxu0 %v3387
    %5584 = vmatpush.bf16.msra.mxu0 %v3385
    %5585 = vmatpush.bf16.msra.mxu0 %v3383
    %5586 = vmatpush.bf16.msra.mxu0 %v3381
    %5587 = vmatpush.bf16.msra.mxu0 %v3379
    %5588 = vmatpush.bf16.msra.mxu0 %v3377
    %5589 = vmatmul.bf16.gmra.mxu0 %v191
    %v5590 = vpop.f32.mrf.mxu0
    %v5591 = vadd.f32 0.0, %v5590
    %v5592 = vpop.f32.mrf.mxu0
    %5593 = vdwg.mxu0
    %5594 = vmatpush.bf16.msra.mxu0 %v3407
    %5595 = vmatpush.bf16.msra.mxu0 %v3405
    %5596 = vmatpush.bf16.msra.mxu0 %v3403
    %5597 = vmatpush.bf16.msra.mxu0 %v3401
    %5598 = vmatpush.bf16.msra.mxu0 %v3399
    %5599 = vmatpush.bf16.msra.mxu0 %v3397
    %5600 = vmatpush.bf16.msra.mxu0 %v3395
    %5601 = vmatpush.bf16.msra.mxu0 %v3393
    %5602 = vmatmul.bf16.gmra.mxu0 %v192
    %v5603 = vpop.f32.mrf.mxu0
    %v5604 = vadd.f32 %v5591, %v5603
    %v5605 = vpop.f32.mrf.mxu0
    %5606 = vdwg.mxu0
    %5607 = vmatpush.bf16.msra.mxu0 %v3423
    %5608 = vmatpush.bf16.msra.mxu0 %v3421
    %5609 = vmatpush.bf16.msra.mxu0 %v3419
    %5610 = vmatpush.bf16.msra.mxu0 %v3417
    %5611 = vmatpush.bf16.msra.mxu0 %v3415
    %5612 = vmatpush.bf16.msra.mxu0 %v3413
    %5613 = vmatpush.bf16.msra.mxu0 %v3411
    %5614 = vmatpush.bf16.msra.mxu0 %v3409
    %5615 = vmatmul.bf16.gmra.mxu0 %v193
    %v5616 = vpop.f32.mrf.mxu0
    %v5617 = vadd.f32 %v5604, %v5616
    %v5618 = vpop.f32.mrf.mxu0
    %5619 = vdwg.mxu0
    %5620 = vmatpush.bf16.msra.mxu0 %v3439
    %5621 = vmatpush.bf16.msra.mxu0 %v3437
    %5622 = vmatpush.bf16.msra.mxu0 %v3435
    %5623 = vmatpush.bf16.msra.mxu0 %v3433
    %5624 = vmatpush.bf16.msra.mxu0 %v3431
    %5625 = vmatpush.bf16.msra.mxu0 %v3429
    %5626 = vmatpush.bf16.msra.mxu0 %v3427
    %5627 = vmatpush.bf16.msra.mxu0 %v3425
    %5628 = vmatmul.bf16.gmra.mxu0 %v194
    %v5629 = vpop.f32.mrf.mxu0
    %v5630 = vadd.f32 %v5617, %v5629
    %v5631 = vpop.f32.mrf.mxu0
    %5632 = vdwg.mxu0
    %5633 = vmatpush.bf16.msra.mxu0 %v3455
    %5634 = vmatpush.bf16.msra.mxu0 %v3453
    %5635 = vmatpush.bf16.msra.mxu0 %v3451
    %5636 = vmatpush.bf16.msra.mxu0 %v3449
    %5637 = vmatpush.bf16.msra.mxu0 %v3447
    %5638 = vmatpush.bf16.msra.mxu0 %v3445
    %5639 = vmatpush.bf16.msra.mxu0 %v3443
    %5640 = vmatpush.bf16.msra.mxu0 %v3441
    %5641 = vmatmul.bf16.gmra.mxu0 %v195
    %v5642 = vpop.f32.mrf.mxu0
    %v5643 = vadd.f32 %v5630, %v5642
    %v5644 = vpop.f32.mrf.mxu0
    %5645 = vdwg.mxu0
    %5646 = vmatpush.bf16.msra.mxu0 %v3471
    %5647 = vmatpush.bf16.msra.mxu0 %v3469
    %5648 = vmatpush.bf16.msra.mxu0 %v3467
    %5649 = vmatpush.bf16.msra.mxu0 %v3465
    %5650 = vmatpush.bf16.msra.mxu0 %v3463
    %5651 = vmatpush.bf16.msra.mxu0 %v3461
    %5652 = vmatpush.bf16.msra.mxu0 %v3459
    %5653 = vmatpush.bf16.msra.mxu0 %v3457
    %5654 = vmatmul.bf16.gmra.mxu0 %v196
    %v5655 = vpop.f32.mrf.mxu0
    %v5656 = vadd.f32 %v5643, %v5655
    %v5657 = vpop.f32.mrf.mxu0
    %5658 = vdwg.mxu0
    %5659 = vmatpush.bf16.msra.mxu0 %v3487
    %5660 = vmatpush.bf16.msra.mxu0 %v3485
    %5661 = vmatpush.bf16.msra.mxu0 %v3483
    %5662 = vmatpush.bf16.msra.mxu0 %v3481
    %5663 = vmatpush.bf16.msra.mxu0 %v3479
    %5664 = vmatpush.bf16.msra.mxu0 %v3477
    %5665 = vmatpush.bf16.msra.mxu0 %v3475
    %5666 = vmatpush.bf16.msra.mxu0 %v3473
    %5667 = vmatmul.bf16.gmra.mxu0 %v197
    %v5668 = vpop.f32.mrf.mxu0
    %v5669 = vadd.f32 %v5656, %v5668
    %v5670 = vpop.f32.mrf.mxu0
    %5671 = vdwg.mxu0
    %5672 = vmatpush.bf16.msra.mxu0 %v3503
    %5673 = vmatpush.bf16.msra.mxu0 %v3501
    %5674 = vmatpush.bf16.msra.mxu0 %v3499
    %5675 = vmatpush.bf16.msra.mxu0 %v3497
    %5676 = vmatpush.bf16.msra.mxu0 %v3495
    %5677 = vmatpush.bf16.msra.mxu0 %v3493
    %5678 = vmatpush.bf16.msra.mxu0 %v3491
    %5679 = vmatpush.bf16.msra.mxu0 %v3489
    %5680 = vmatmul.bf16.gmra.mxu0 %v198
    %v5681 = vpop.f32.mrf.mxu0
    %v5682 = vadd.f32 %v5669, %v5681
    %v5683 = vpop.f32.mrf.mxu0
    %5684 = vdwg.mxu0
    %5685 = vmatpush.bf16.msra.mxu0 %v3519
    %5686 = vmatpush.bf16.msra.mxu0 %v3517
    %5687 = vmatpush.bf16.msra.mxu0 %v3515
    %5688 = vmatpush.bf16.msra.mxu0 %v3513
    %5689 = vmatpush.bf16.msra.mxu0 %v3511
    %5690 = vmatpush.bf16.msra.mxu0 %v3509
    %5691 = vmatpush.bf16.msra.mxu0 %v3507
    %5692 = vmatpush.bf16.msra.mxu0 %v3505
    %5693 = vmatmul.bf16.gmra.mxu0 %v199
    %v5694 = vpop.f32.mrf.mxu0
    %v5695 = vadd.f32 %v5682, %v5694
    %v5696 = vpop.f32.mrf.mxu0
    %5697 = vdwg.mxu0
    %5698 = vmatpush.bf16.msra.mxu0 %v3535
    %5699 = vmatpush.bf16.msra.mxu0 %v3533
    %5700 = vmatpush.bf16.msra.mxu0 %v3531
    %5701 = vmatpush.bf16.msra.mxu0 %v3529
    %5702 = vmatpush.bf16.msra.mxu0 %v3527
    %5703 = vmatpush.bf16.msra.mxu0 %v3525
    %5704 = vmatpush.bf16.msra.mxu0 %v3523
    %5705 = vmatpush.bf16.msra.mxu0 %v3521
    %5706 = vmatmul.bf16.gmra.mxu0 %v200
    %v5707 = vpop.f32.mrf.mxu0
    %v5708 = vadd.f32 %v5695, %v5707
    %v5709 = vpop.f32.mrf.mxu0
    %5710 = vdwg.mxu0
    %5711 = vmatpush.bf16.msra.mxu0 %v3551
    %5712 = vmatpush.bf16.msra.mxu0 %v3549
    %5713 = vmatpush.bf16.msra.mxu0 %v3547
    %5714 = vmatpush.bf16.msra.mxu0 %v3545
    %5715 = vmatpush.bf16.msra.mxu0 %v3543
    %5716 = vmatpush.bf16.msra.mxu0 %v3541
    %5717 = vmatpush.bf16.msra.mxu0 %v3539
    %5718 = vmatpush.bf16.msra.mxu0 %v3537
    %5719 = vmatmul.bf16.gmra.mxu0 %v201
    %v5720 = vpop.f32.mrf.mxu0
    %v5721 = vadd.f32 %v5708, %v5720
    %v5722 = vpop.f32.mrf.mxu0
    %5723 = vdwg.mxu0
    %5724 = vmatpush.bf16.msra.mxu0 %v3567
    %5725 = vmatpush.bf16.msra.mxu0 %v3565
    %5726 = vmatpush.bf16.msra.mxu0 %v3563
    %5727 = vmatpush.bf16.msra.mxu0 %v3561
    %5728 = vmatpush.bf16.msra.mxu0 %v3559
    %5729 = vmatpush.bf16.msra.mxu0 %v3557
    %5730 = vmatpush.bf16.msra.mxu0 %v3555
    %5731 = vmatpush.bf16.msra.mxu0 %v3553
    %5732 = vmatmul.bf16.gmra.mxu0 %v202
    %v5733 = vpop.f32.mrf.mxu0
    %v5734 = vadd.f32 %v5721, %v5733
    %v5735 = vpop.f32.mrf.mxu0
    %5736 = vdwg.mxu0
    %5737 = vmatpush.bf16.msra.mxu0 %v3583
    %5738 = vmatpush.bf16.msra.mxu0 %v3581
    %5739 = vmatpush.bf16.msra.mxu0 %v3579
    %5740 = vmatpush.bf16.msra.mxu0 %v3577
    %5741 = vmatpush.bf16.msra.mxu0 %v3575
    %5742 = vmatpush.bf16.msra.mxu0 %v3573
    %5743 = vmatpush.bf16.msra.mxu0 %v3571
    %5744 = vmatpush.bf16.msra.mxu0 %v3569
    %5745 = vmatmul.bf16.gmra.mxu0 %v203
    %v5746 = vpop.f32.mrf.mxu0
    %v5747 = vadd.f32 %v5734, %v5746
    %v5748 = vpop.f32.mrf.mxu0
    %5749 = vdwg.mxu0
    %5750 = vmatpush.bf16.msra.mxu0 %v3599
    %5751 = vmatpush.bf16.msra.mxu0 %v3597
    %5752 = vmatpush.bf16.msra.mxu0 %v3595
    %5753 = vmatpush.bf16.msra.mxu0 %v3593
    %5754 = vmatpush.bf16.msra.mxu0 %v3591
    %5755 = vmatpush.bf16.msra.mxu0 %v3589
    %5756 = vmatpush.bf16.msra.mxu0 %v3587
    %5757 = vmatpush.bf16.msra.mxu0 %v3585
    %5758 = vmatmul.bf16.gmra.mxu0 %v204
    %v5759 = vpop.f32.mrf.mxu0
    %v5760 = vadd.f32 %v5747, %v5759
    %v5761 = vpop.f32.mrf.mxu0
    %5762 = vdwg.mxu0
    %5763 = vmatpush.bf16.msra.mxu0 %v3615
    %5764 = vmatpush.bf16.msra.mxu0 %v3613
    %5765 = vmatpush.bf16.msra.mxu0 %v3611
    %5766 = vmatpush.bf16.msra.mxu0 %v3609
    %5767 = vmatpush.bf16.msra.mxu0 %v3607
    %5768 = vmatpush.bf16.msra.mxu0 %v3605
    %5769 = vmatpush.bf16.msra.mxu0 %v3603
    %5770 = vmatpush.bf16.msra.mxu0 %v3601
    %5771 = vmatmul.bf16.gmra.mxu0 %v205
    %v5772 = vpop.f32.mrf.mxu0
    %v5773 = vadd.f32 %v5760, %v5772
    %v5774 = vpop.f32.mrf.mxu0
    %5775 = vdwg.mxu0
    %5776 = vmatpush.bf16.msra.mxu0 %v3631
    %5777 = vmatpush.bf16.msra.mxu0 %v3629
    %5778 = vmatpush.bf16.msra.mxu0 %v3627
    %5779 = vmatpush.bf16.msra.mxu0 %v3625
    %5780 = vmatpush.bf16.msra.mxu0 %v3623
    %5781 = vmatpush.bf16.msra.mxu0 %v3621
    %5782 = vmatpush.bf16.msra.mxu0 %v3619
    %5783 = vmatpush.bf16.msra.mxu0 %v3617
    %5784 = vmatmul.bf16.gmra.mxu0 %v206
    %v5785 = vpop.f32.mrf.mxu0
    %v5786 = vadd.f32 %v5773, %v5785
    %v5787 = vpop.f32.mrf.mxu0
    %5788 = vdwg.mxu0
    %5789 = vmatpush.bf16.msra.mxu0 %v3647
    %5790 = vmatpush.bf16.msra.mxu0 %v3645
    %5791 = vmatpush.bf16.msra.mxu0 %v3643
    %5792 = vmatpush.bf16.msra.mxu0 %v3641
    %5793 = vmatpush.bf16.msra.mxu0 %v3639
    %5794 = vmatpush.bf16.msra.mxu0 %v3637
    %5795 = vmatpush.bf16.msra.mxu0 %v3635
    %5796 = vmatpush.bf16.msra.mxu0 %v3633
    %5797 = vmatmul.bf16.gmra.mxu0 %v207
    %v5798 = vpop.f32.mrf.mxu0
    %v5799 = vadd.f32 %v5786, %v5798
    %v5800 = vpop.f32.mrf.mxu0
    %5801 = vdwg.mxu0
    %5802 = vmatpush.bf16.msra.mxu0 %v3663
    %5803 = vmatpush.bf16.msra.mxu0 %v3661
    %5804 = vmatpush.bf16.msra.mxu0 %v3659
    %5805 = vmatpush.bf16.msra.mxu0 %v3657
    %5806 = vmatpush.bf16.msra.mxu0 %v3655
    %5807 = vmatpush.bf16.msra.mxu0 %v3653
    %5808 = vmatpush.bf16.msra.mxu0 %v3651
    %5809 = vmatpush.bf16.msra.mxu0 %v3649
    %5810 = vmatmul.bf16.gmra.mxu0 %v208
    %v5811 = vpop.f32.mrf.mxu0
    %v5812 = vadd.f32 %v5799, %v5811
    %v5813 = vpop.f32.mrf.mxu0
    %5814 = vdwg.mxu0
    %5815 = vmatpush.bf16.msra.mxu0 %v3679
    %5816 = vmatpush.bf16.msra.mxu0 %v3677
    %5817 = vmatpush.bf16.msra.mxu0 %v3675
    %5818 = vmatpush.bf16.msra.mxu0 %v3673
    %5819 = vmatpush.bf16.msra.mxu0 %v3671
    %5820 = vmatpush.bf16.msra.mxu0 %v3669
    %5821 = vmatpush.bf16.msra.mxu0 %v3667
    %5822 = vmatpush.bf16.msra.mxu0 %v3665
    %5823 = vmatmul.bf16.gmra.mxu0 %v209
    %v5824 = vpop.f32.mrf.mxu0
    %v5825 = vadd.f32 %v5812, %v5824
    %v5826 = vpop.f32.mrf.mxu0
    %5827 = vdwg.mxu0
    %5828 = vmatpush.bf16.msra.mxu0 %v3695
    %5829 = vmatpush.bf16.msra.mxu0 %v3693
    %5830 = vmatpush.bf16.msra.mxu0 %v3691
    %5831 = vmatpush.bf16.msra.mxu0 %v3689
    %5832 = vmatpush.bf16.msra.mxu0 %v3687
    %5833 = vmatpush.bf16.msra.mxu0 %v3685
    %5834 = vmatpush.bf16.msra.mxu0 %v3683
    %5835 = vmatpush.bf16.msra.mxu0 %v3681
    %5836 = vmatmul.bf16.gmra.mxu0 %v210
    %v5837 = vpop.f32.mrf.mxu0
    %v5838 = vadd.f32 %v5825, %v5837
    %v5839 = vpop.f32.mrf.mxu0
    %5840 = vdwg.mxu0
    %5841 = vmatpush.bf16.msra.mxu0 %v3711
    %5842 = vmatpush.bf16.msra.mxu0 %v3709
    %5843 = vmatpush.bf16.msra.mxu0 %v3707
    %5844 = vmatpush.bf16.msra.mxu0 %v3705
    %5845 = vmatpush.bf16.msra.mxu0 %v3703
    %5846 = vmatpush.bf16.msra.mxu0 %v3701
    %5847 = vmatpush.bf16.msra.mxu0 %v3699
    %5848 = vmatpush.bf16.msra.mxu0 %v3697
    %5849 = vmatmul.bf16.gmra.mxu0 %v211
    %v5850 = vpop.f32.mrf.mxu0
    %v5851 = vadd.f32 %v5838, %v5850
    %v5852 = vpop.f32.mrf.mxu0
    %5853 = vdwg.mxu0
    %5854 = vmatpush.bf16.msra.mxu0 %v3727
    %5855 = vmatpush.bf16.msra.mxu0 %v3725
    %5856 = vmatpush.bf16.msra.mxu0 %v3723
    %5857 = vmatpush.bf16.msra.mxu0 %v3721
    %5858 = vmatpush.bf16.msra.mxu0 %v3719
    %5859 = vmatpush.bf16.msra.mxu0 %v3717
    %5860 = vmatpush.bf16.msra.mxu0 %v3715
    %5861 = vmatpush.bf16.msra.mxu0 %v3713
    %5862 = vmatmul.bf16.gmra.mxu0 %v212
    %v5863 = vpop.f32.mrf.mxu0
    %v5864 = vadd.f32 %v5851, %v5863
    %v5865 = vpop.f32.mrf.mxu0
    %5866 = vdwg.mxu0
    %5867 = vmatpush.bf16.msra.mxu0 %v3743
    %5868 = vmatpush.bf16.msra.mxu0 %v3741
    %5869 = vmatpush.bf16.msra.mxu0 %v3739
    %5870 = vmatpush.bf16.msra.mxu0 %v3737
    %5871 = vmatpush.bf16.msra.mxu0 %v3735
    %5872 = vmatpush.bf16.msra.mxu0 %v3733
    %5873 = vmatpush.bf16.msra.mxu0 %v3731
    %5874 = vmatpush.bf16.msra.mxu0 %v3729
    %5875 = vmatmul.bf16.gmra.mxu0 %v213
    %v5876 = vpop.f32.mrf.mxu0
    %v5877 = vadd.f32 %v5864, %v5876
    %v5878 = vpop.f32.mrf.mxu0
    %5879 = vdwg.mxu0
    %5880 = vmatpush.bf16.msra.mxu0 %v3759
    %5881 = vmatpush.bf16.msra.mxu0 %v3757
    %5882 = vmatpush.bf16.msra.mxu0 %v3755
    %5883 = vmatpush.bf16.msra.mxu0 %v3753
    %5884 = vmatpush.bf16.msra.mxu0 %v3751
    %5885 = vmatpush.bf16.msra.mxu0 %v3749
    %5886 = vmatpush.bf16.msra.mxu0 %v3747
    %5887 = vmatpush.bf16.msra.mxu0 %v3745
    %5888 = vmatmul.bf16.gmra.mxu0 %v214
    %v5889 = vpop.f32.mrf.mxu0
    %v5890 = vadd.f32 %v5877, %v5889
    %v5891 = vpop.f32.mrf.mxu0
    %5892 = vdwg.mxu0
    %5893 = vmatpush.bf16.msra.mxu0 %v3775
    %5894 = vmatpush.bf16.msra.mxu0 %v3773
    %5895 = vmatpush.bf16.msra.mxu0 %v3771
    %5896 = vmatpush.bf16.msra.mxu0 %v3769
    %5897 = vmatpush.bf16.msra.mxu0 %v3767
    %5898 = vmatpush.bf16.msra.mxu0 %v3765
    %5899 = vmatpush.bf16.msra.mxu0 %v3763
    %5900 = vmatpush.bf16.msra.mxu0 %v3761
    %5901 = vmatmul.bf16.gmra.mxu0 %v215
    %v5902 = vpop.f32.mrf.mxu0
    %v5903 = vadd.f32 %v5890, %v5902
    %v5904 = vpop.f32.mrf.mxu0
    %5905 = vdwg.mxu0
    %5906 = vmatpush.bf16.msra.mxu0 %v3791
    %5907 = vmatpush.bf16.msra.mxu0 %v3789
    %5908 = vmatpush.bf16.msra.mxu0 %v3787
    %5909 = vmatpush.bf16.msra.mxu0 %v3785
    %5910 = vmatpush.bf16.msra.mxu0 %v3783
    %5911 = vmatpush.bf16.msra.mxu0 %v3781
    %5912 = vmatpush.bf16.msra.mxu0 %v3779
    %5913 = vmatpush.bf16.msra.mxu0 %v3777
    %5914 = vmatmul.bf16.gmra.mxu0 %v216
    %v5915 = vpop.f32.mrf.mxu0
    %v5916 = vadd.f32 %v5903, %v5915
    %v5917 = vpop.f32.mrf.mxu0
    %5918 = vdwg.mxu0
    %5919 = vmatpush.bf16.msra.mxu0 %v3807
    %5920 = vmatpush.bf16.msra.mxu0 %v3805
    %5921 = vmatpush.bf16.msra.mxu0 %v3803
    %5922 = vmatpush.bf16.msra.mxu0 %v3801
    %5923 = vmatpush.bf16.msra.mxu0 %v3799
    %5924 = vmatpush.bf16.msra.mxu0 %v3797
    %5925 = vmatpush.bf16.msra.mxu0 %v3795
    %5926 = vmatpush.bf16.msra.mxu0 %v3793
    %5927 = vmatmul.bf16.gmra.mxu0 %v217
    %v5928 = vpop.f32.mrf.mxu0
    %v5929 = vadd.f32 %v5916, %v5928
    %v5930 = vpop.f32.mrf.mxu0
    %5931 = vdwg.mxu0
    %5932 = vmatpush.bf16.msra.mxu0 %v3823
    %5933 = vmatpush.bf16.msra.mxu0 %v3821
    %5934 = vmatpush.bf16.msra.mxu0 %v3819
    %5935 = vmatpush.bf16.msra.mxu0 %v3817
    %5936 = vmatpush.bf16.msra.mxu0 %v3815
    %5937 = vmatpush.bf16.msra.mxu0 %v3813
    %5938 = vmatpush.bf16.msra.mxu0 %v3811
    %5939 = vmatpush.bf16.msra.mxu0 %v3809
    %5940 = vmatmul.bf16.gmra.mxu0 %v218
    %v5941 = vpop.f32.mrf.mxu0
    %v5942 = vadd.f32 %v5929, %v5941
    %v5943 = vpop.f32.mrf.mxu0
    %5944 = vdwg.mxu0
    %5945 = vmatpush.bf16.msra.mxu0 %v3839
    %5946 = vmatpush.bf16.msra.mxu0 %v3837
    %5947 = vmatpush.bf16.msra.mxu0 %v3835
    %5948 = vmatpush.bf16.msra.mxu0 %v3833
    %5949 = vmatpush.bf16.msra.mxu0 %v3831
    %5950 = vmatpush.bf16.msra.mxu0 %v3829
    %5951 = vmatpush.bf16.msra.mxu0 %v3827
    %5952 = vmatpush.bf16.msra.mxu0 %v3825
    %5953 = vmatmul.bf16.gmra.mxu0 %v219
    %v5954 = vpop.f32.mrf.mxu0
    %v5955 = vadd.f32 %v5942, %v5954
    %v5956 = vpop.f32.mrf.mxu0
    %5957 = vdwg.mxu0
    %5958 = vmatpush.bf16.msra.mxu0 %v3855
    %5959 = vmatpush.bf16.msra.mxu0 %v3853
    %5960 = vmatpush.bf16.msra.mxu0 %v3851
    %5961 = vmatpush.bf16.msra.mxu0 %v3849
    %5962 = vmatpush.bf16.msra.mxu0 %v3847
    %5963 = vmatpush.bf16.msra.mxu0 %v3845
    %5964 = vmatpush.bf16.msra.mxu0 %v3843
    %5965 = vmatpush.bf16.msra.mxu0 %v3841
    %5966 = vmatmul.bf16.gmra.mxu0 %v220
    %v5967 = vpop.f32.mrf.mxu0
    %v5968 = vadd.f32 %v5955, %v5967
    %v5969 = vpop.f32.mrf.mxu0
    %5970 = vdwg.mxu0
    %5971 = vmatpush.bf16.msra.mxu0 %v3871
    %5972 = vmatpush.bf16.msra.mxu0 %v3869
    %5973 = vmatpush.bf16.msra.mxu0 %v3867
    %5974 = vmatpush.bf16.msra.mxu0 %v3865
    %5975 = vmatpush.bf16.msra.mxu0 %v3863
    %5976 = vmatpush.bf16.msra.mxu0 %v3861
    %5977 = vmatpush.bf16.msra.mxu0 %v3859
    %5978 = vmatpush.bf16.msra.mxu0 %v3857
    %5979 = vmatmul.bf16.gmra.mxu0 %v221
    %v5980 = vpop.f32.mrf.mxu0
    %v5981 = vadd.f32 %v5968, %v5980
    %v5982 = vpop.f32.mrf.mxu0
    %5983 = vdwg.mxu0
    %5984 = vmatpush.bf16.msra.mxu0 %v3887
    %5985 = vmatpush.bf16.msra.mxu0 %v3885
    %5986 = vmatpush.bf16.msra.mxu0 %v3883
    %5987 = vmatpush.bf16.msra.mxu0 %v3881
    %5988 = vmatpush.bf16.msra.mxu0 %v3879
    %5989 = vmatpush.bf16.msra.mxu0 %v3877
    %5990 = vmatpush.bf16.msra.mxu0 %v3875
    %5991 = vmatpush.bf16.msra.mxu0 %v3873
    %5992 = vmatmul.bf16.gmra.mxu0 %v222
    %v5993 = vpop.f32.mrf.mxu0
    %v5994 = vadd.f32 %v5981, %v5993
    %v5995 = vpop.f32.mrf.mxu0
    %5996 = vdwg.mxu0
    %5997 = vmatpush.bf16.msra.mxu0 %v3903
    %5998 = vmatpush.bf16.msra.mxu0 %v3901
    %5999 = vmatpush.bf16.msra.mxu0 %v3899
    %6000 = vmatpush.bf16.msra.mxu0 %v3897
    %6001 = vmatpush.bf16.msra.mxu0 %v3895
    %6002 = vmatpush.bf16.msra.mxu0 %v3893
    %6003 = vmatpush.bf16.msra.mxu0 %v3891
    %6004 = vmatpush.bf16.msra.mxu0 %v3889
    %6005 = vmatmul.bf16.gmra.mxu0 %v223
    %v6006 = vpop.f32.mrf.mxu0
    %v6007 = vadd.f32 %v5994, %v6006
    %v6008 = vpop.f32.mrf.mxu0
    %6009 = vdwg.mxu0
    %6010 = vmatpush.bf16.msra.mxu0 %v3919
    %6011 = vmatpush.bf16.msra.mxu0 %v3917
    %6012 = vmatpush.bf16.msra.mxu0 %v3915
    %6013 = vmatpush.bf16.msra.mxu0 %v3913
    %6014 = vmatpush.bf16.msra.mxu0 %v3911
    %6015 = vmatpush.bf16.msra.mxu0 %v3909
    %6016 = vmatpush.bf16.msra.mxu0 %v3907
    %6017 = vmatpush.bf16.msra.mxu0 %v3905
    %6018 = vmatmul.bf16.gmra.mxu0 %v224
    %v6019 = vpop.f32.mrf.mxu0
    %v6020 = vadd.f32 %v6007, %v6019
    %v6021 = vpop.f32.mrf.mxu0
    %6022 = vdwg.mxu0
    %6023 = vmatpush.bf16.msra.mxu0 %v3935
    %6024 = vmatpush.bf16.msra.mxu0 %v3933
    %6025 = vmatpush.bf16.msra.mxu0 %v3931
    %6026 = vmatpush.bf16.msra.mxu0 %v3929
    %6027 = vmatpush.bf16.msra.mxu0 %v3927
    %6028 = vmatpush.bf16.msra.mxu0 %v3925
    %6029 = vmatpush.bf16.msra.mxu0 %v3923
    %6030 = vmatpush.bf16.msra.mxu0 %v3921
    %6031 = vmatmul.bf16.gmra.mxu0 %v225
    %v6032 = vpop.f32.mrf.mxu0
    %v6033 = vadd.f32 %v6020, %v6032
    %v6034 = vpop.f32.mrf.mxu0
    %6035 = vdwg.mxu0
    %6036 = vmatpush.bf16.msra.mxu0 %v3951
    %6037 = vmatpush.bf16.msra.mxu0 %v3949
    %6038 = vmatpush.bf16.msra.mxu0 %v3947
    %6039 = vmatpush.bf16.msra.mxu0 %v3945
    %6040 = vmatpush.bf16.msra.mxu0 %v3943
    %6041 = vmatpush.bf16.msra.mxu0 %v3941
    %6042 = vmatpush.bf16.msra.mxu0 %v3939
    %6043 = vmatpush.bf16.msra.mxu0 %v3937
    %6044 = vmatmul.bf16.gmra.mxu0 %v226
    %v6045 = vpop.f32.mrf.mxu0
    %v6046 = vadd.f32 %v6033, %v6045
    %v6047 = vpop.f32.mrf.mxu0
    %6048 = vdwg.mxu0
    %6049 = vmatpush.bf16.msra.mxu0 %v3967
    %6050 = vmatpush.bf16.msra.mxu0 %v3965
    %6051 = vmatpush.bf16.msra.mxu0 %v3963
    %6052 = vmatpush.bf16.msra.mxu0 %v3961
    %6053 = vmatpush.bf16.msra.mxu0 %v3959
    %6054 = vmatpush.bf16.msra.mxu0 %v3957
    %6055 = vmatpush.bf16.msra.mxu0 %v3955
    %6056 = vmatpush.bf16.msra.mxu0 %v3953
    %6057 = vmatmul.bf16.gmra.mxu0 %v227
    %v6058 = vpop.f32.mrf.mxu0
    %v6059 = vadd.f32 %v6046, %v6058
    %v6060 = vpop.f32.mrf.mxu0
    %6061 = vdwg.mxu0
    %6062 = vmatpush.bf16.msra.mxu0 %v3983
    %6063 = vmatpush.bf16.msra.mxu0 %v3981
    %6064 = vmatpush.bf16.msra.mxu0 %v3979
    %6065 = vmatpush.bf16.msra.mxu0 %v3977
    %6066 = vmatpush.bf16.msra.mxu0 %v3975
    %6067 = vmatpush.bf16.msra.mxu0 %v3973
    %6068 = vmatpush.bf16.msra.mxu0 %v3971
    %6069 = vmatpush.bf16.msra.mxu0 %v3969
    %6070 = vmatmul.bf16.gmra.mxu0 %v228
    %v6071 = vpop.f32.mrf.mxu0
    %v6072 = vadd.f32 %v6059, %v6071
    %v6073 = vpop.f32.mrf.mxu0
    %6074 = vdwg.mxu0
    %6075 = vmatpush.bf16.msra.mxu0 %v3999
    %6076 = vmatpush.bf16.msra.mxu0 %v3997
    %6077 = vmatpush.bf16.msra.mxu0 %v3995
    %6078 = vmatpush.bf16.msra.mxu0 %v3993
    %6079 = vmatpush.bf16.msra.mxu0 %v3991
    %6080 = vmatpush.bf16.msra.mxu0 %v3989
    %6081 = vmatpush.bf16.msra.mxu0 %v3987
    %6082 = vmatpush.bf16.msra.mxu0 %v3985
    %6083 = vmatmul.bf16.gmra.mxu0 %v229
    %v6084 = vpop.f32.mrf.mxu0
    %v6085 = vadd.f32 %v6072, %v6084
    %v6086 = vpop.f32.mrf.mxu0
    %6087 = vdwg.mxu0
    %6088 = vmatpush.bf16.msra.mxu0 %v4015
    %6089 = vmatpush.bf16.msra.mxu0 %v4013
    %6090 = vmatpush.bf16.msra.mxu0 %v4011
    %6091 = vmatpush.bf16.msra.mxu0 %v4009
    %6092 = vmatpush.bf16.msra.mxu0 %v4007
    %6093 = vmatpush.bf16.msra.mxu0 %v4005
    %6094 = vmatpush.bf16.msra.mxu0 %v4003
    %6095 = vmatpush.bf16.msra.mxu0 %v4001
    %6096 = vmatmul.bf16.gmra.mxu0 %v230
    %v6097 = vpop.f32.mrf.mxu0
    %v6098 = vadd.f32 %v6085, %v6097
    %v6099 = vpop.f32.mrf.mxu0
    %6100 = vdwg.mxu0
    %6101 = vmatpush.bf16.msra.mxu0 %v4031
    %6102 = vmatpush.bf16.msra.mxu0 %v4029
    %6103 = vmatpush.bf16.msra.mxu0 %v4027
    %6104 = vmatpush.bf16.msra.mxu0 %v4025
    %6105 = vmatpush.bf16.msra.mxu0 %v4023
    %6106 = vmatpush.bf16.msra.mxu0 %v4021
    %6107 = vmatpush.bf16.msra.mxu0 %v4019
    %6108 = vmatpush.bf16.msra.mxu0 %v4017
    %6109 = vmatmul.bf16.gmra.mxu0 %v231
    %v6110 = vpop.f32.mrf.mxu0
    %v6111 = vadd.f32 %v6098, %v6110
    %v6112 = vpop.f32.mrf.mxu0
    %6113 = vdwg.mxu0
    %6114 = vmatpush.bf16.msra.mxu0 %v4047
    %6115 = vmatpush.bf16.msra.mxu0 %v4045
    %6116 = vmatpush.bf16.msra.mxu0 %v4043
    %6117 = vmatpush.bf16.msra.mxu0 %v4041
    %6118 = vmatpush.bf16.msra.mxu0 %v4039
    %6119 = vmatpush.bf16.msra.mxu0 %v4037
    %6120 = vmatpush.bf16.msra.mxu0 %v4035
    %6121 = vmatpush.bf16.msra.mxu0 %v4033
    %6122 = vmatmul.bf16.gmra.mxu0 %v232
    %v6123 = vpop.f32.mrf.mxu0
    %v6124 = vadd.f32 %v6111, %v6123
    %v6125 = vpop.f32.mrf.mxu0
    %6126 = vdwg.mxu0
    %6127 = vmatpush.bf16.msra.mxu0 %v4063
    %6128 = vmatpush.bf16.msra.mxu0 %v4061
    %6129 = vmatpush.bf16.msra.mxu0 %v4059
    %6130 = vmatpush.bf16.msra.mxu0 %v4057
    %6131 = vmatpush.bf16.msra.mxu0 %v4055
    %6132 = vmatpush.bf16.msra.mxu0 %v4053
    %6133 = vmatpush.bf16.msra.mxu0 %v4051
    %6134 = vmatpush.bf16.msra.mxu0 %v4049
    %6135 = vmatmul.bf16.gmra.mxu0 %v233
    %v6136 = vpop.f32.mrf.mxu0
    %v6137 = vadd.f32 %v6124, %v6136
    %v6138 = vpop.f32.mrf.mxu0
    %6139 = vdwg.mxu0
    %6140 = vmatpush.bf16.msra.mxu0 %v4079
    %6141 = vmatpush.bf16.msra.mxu0 %v4077
    %6142 = vmatpush.bf16.msra.mxu0 %v4075
    %6143 = vmatpush.bf16.msra.mxu0 %v4073
    %6144 = vmatpush.bf16.msra.mxu0 %v4071
    %6145 = vmatpush.bf16.msra.mxu0 %v4069
    %6146 = vmatpush.bf16.msra.mxu0 %v4067
    %6147 = vmatpush.bf16.msra.mxu0 %v4065
    %6148 = vmatmul.bf16.gmra.mxu0 %v234
    %v6149 = vpop.f32.mrf.mxu0
    %v6150 = vadd.f32 %v6137, %v6149
    %v6151 = vpop.f32.mrf.mxu0
    %6152 = vdwg.mxu0
    %6153 = vmatpush.bf16.msra.mxu0 %v4095
    %6154 = vmatpush.bf16.msra.mxu0 %v4093
    %6155 = vmatpush.bf16.msra.mxu0 %v4091
    %6156 = vmatpush.bf16.msra.mxu0 %v4089
    %6157 = vmatpush.bf16.msra.mxu0 %v4087
    %6158 = vmatpush.bf16.msra.mxu0 %v4085
    %6159 = vmatpush.bf16.msra.mxu0 %v4083
    %6160 = vmatpush.bf16.msra.mxu0 %v4081
    %6161 = vmatmul.bf16.gmra.mxu0 %v235
    %v6162 = vpop.f32.mrf.mxu0
    %v6163 = vadd.f32 %v6150, %v6162
    %v6164 = vpop.f32.mrf.mxu0
    %6165 = vdwg.mxu0
    %6166 = vmatpush.bf16.msra.mxu0 %v4111
    %6167 = vmatpush.bf16.msra.mxu0 %v4109
    %6168 = vmatpush.bf16.msra.mxu0 %v4107
    %6169 = vmatpush.bf16.msra.mxu0 %v4105
    %6170 = vmatpush.bf16.msra.mxu0 %v4103
    %6171 = vmatpush.bf16.msra.mxu0 %v4101
    %6172 = vmatpush.bf16.msra.mxu0 %v4099
    %6173 = vmatpush.bf16.msra.mxu0 %v4097
    %6174 = vmatmul.bf16.gmra.mxu0 %v236
    %v6175 = vpop.f32.mrf.mxu0
    %v6176 = vadd.f32 %v6163, %v6175
    %v6177 = vpop.f32.mrf.mxu0
    %6178 = vdwg.mxu0
    %6179 = vmatpush.bf16.msra.mxu0 %v4127
    %6180 = vmatpush.bf16.msra.mxu0 %v4125
    %6181 = vmatpush.bf16.msra.mxu0 %v4123
    %6182 = vmatpush.bf16.msra.mxu0 %v4121
    %6183 = vmatpush.bf16.msra.mxu0 %v4119
    %6184 = vmatpush.bf16.msra.mxu0 %v4117
    %6185 = vmatpush.bf16.msra.mxu0 %v4115
    %6186 = vmatpush.bf16.msra.mxu0 %v4113
    %6187 = vmatmul.bf16.gmra.mxu0 %v237
    %v6188 = vpop.f32.mrf.mxu0
    %v6189 = vadd.f32 %v6176, %v6188
    %v6190 = vpop.f32.mrf.mxu0
    %6191 = vdwg.mxu0
    %6192 = vmatpush.bf16.msra.mxu0 %v4143
    %6193 = vmatpush.bf16.msra.mxu0 %v4141
    %6194 = vmatpush.bf16.msra.mxu0 %v4139
    %6195 = vmatpush.bf16.msra.mxu0 %v4137
    %6196 = vmatpush.bf16.msra.mxu0 %v4135
    %6197 = vmatpush.bf16.msra.mxu0 %v4133
    %6198 = vmatpush.bf16.msra.mxu0 %v4131
    %6199 = vmatpush.bf16.msra.mxu0 %v4129
    %6200 = vmatmul.bf16.gmra.mxu0 %v238
    %v6201 = vpop.f32.mrf.mxu0
    %v6202 = vadd.f32 %v6189, %v6201
    %v6203 = vpop.f32.mrf.mxu0
    %6204 = vdwg.mxu0
    %6205 = vmatpush.bf16.msra.mxu0 %v4159
    %6206 = vmatpush.bf16.msra.mxu0 %v4157
    %6207 = vmatpush.bf16.msra.mxu0 %v4155
    %6208 = vmatpush.bf16.msra.mxu0 %v4153
    %6209 = vmatpush.bf16.msra.mxu0 %v4151
    %6210 = vmatpush.bf16.msra.mxu0 %v4149
    %6211 = vmatpush.bf16.msra.mxu0 %v4147
    %6212 = vmatpush.bf16.msra.mxu0 %v4145
    %6213 = vmatmul.bf16.gmra.mxu0 %v239
    %v6214 = vpop.f32.mrf.mxu0
    %v6215 = vadd.f32 %v6202, %v6214
    %v6216 = vpop.f32.mrf.mxu0
    %6217 = vdwg.mxu0
    %v6218 = vadd.f32 %v140, %v5578
    %v6219 = vadd.f32 %v141, %v6215
    %6220 = vst [vmem:[#allocation2] sm:$0xff] %v6218
    %6221 = vst [vmem:[#allocation2 + $0x8] sm:$0xff] %v6219
    // Predicated region
    $region62: #{tpu_custom_call.1} parent=1 // pred_check
      %p6222 = pneg %p128
    $region63: #{tpu_custom_call.1} parent=1 // pred_check_branch
      %6224 = sbr.rel (%p6222) target = $region65
    $region64: #{tpu_custom_call.1} parent=1 // pred_region
      %v6225 = vld [vmem:[#allocation2] sm:$0xff]
      %v6226 = vld [vmem:[#allocation2 + $0x8] sm:$0xff]
      %v6227 = vpack.c.bf16 %v6225, %v6225
      %v6228 = vpack.c.bf16 %v6226, %v6226
      %v6229 = vld [vmem:[#allocation9] sm:$0xf]
      %v6230 = vld [vmem:[#allocation9 + $0x4] sm:$0xf]
      %v6231 = vld [vmem:[#allocation9 + $0x8] sm:$0xf]
      %v6232 = vld [vmem:[#allocation9 + $0xc] sm:$0xf]
      %v6233 = vld [vmem:[#allocation9 + $0x10] sm:$0xf]
      %v6234 = vld [vmem:[#allocation9 + $0x14] sm:$0xf]
      %v6235 = vld [vmem:[#allocation9 + $0x18] sm:$0xf]
      %v6236 = vld [vmem:[#allocation9 + $0x1c] sm:$0xf]
      %v6237 = vld [vmem:[#allocation9 + $0x20] sm:$0xf]
      %v6238 = vld [vmem:[#allocation9 + $0x24] sm:$0xf]
      %v6239 = vld [vmem:[#allocation9 + $0x28] sm:$0xf]
      %v6240 = vld [vmem:[#allocation9 + $0x2c] sm:$0xf]
      %v6241 = vld [vmem:[#allocation9 + $0x30] sm:$0xf]
      %v6242 = vld [vmem:[#allocation9 + $0x34] sm:$0xf]
      %v6243 = vld [vmem:[#allocation9 + $0x38] sm:$0xf]
      %v6244 = vld [vmem:[#allocation9 + $0x3c] sm:$0xf]
      %v6245 = vld [vmem:[#allocation9 + $0x40] sm:$0xf]
      %v6246 = vld [vmem:[#allocation9 + $0x44] sm:$0xf]
      %v6247 = vld [vmem:[#allocation9 + $0x48] sm:$0xf]
      %v6248 = vld [vmem:[#allocation9 + $0x4c] sm:$0xf]
      %v6249 = vld [vmem:[#allocation9 + $0x50] sm:$0xf]
      %v6250 = vld [vmem:[#allocation9 + $0x54] sm:$0xf]
      %v6251 = vld [vmem:[#allocation9 + $0x58] sm:$0xf]
      %v6252 = vld [vmem:[#allocation9 + $0x5c] sm:$0xf]
      %v6253 = vld [vmem:[#allocation9 + $0x60] sm:$0xf]
      %v6254 = vld [vmem:[#allocation9 + $0x64] sm:$0xf]
      %v6255 = vld [vmem:[#allocation9 + $0x68] sm:$0xf]
      %v6256 = vld [vmem:[#allocation9 + $0x6c] sm:$0xf]
      %v6257 = vld [vmem:[#allocation9 + $0x70] sm:$0xf]
      %v6258 = vld [vmem:[#allocation9 + $0x74] sm:$0xf]
      %v6259 = vld [vmem:[#allocation9 + $0x78] sm:$0xf]
      %v6260 = vld [vmem:[#allocation9 + $0x7c] sm:$0xf]
      %v6261 = vld [vmem:[#allocation11] sm:$0x1]
      %v6263 = vperm.slane %v6261, 0
      %v6297 = vunpack.c.l.b16 %v6229
      %v6298 = vunpack.c.l.b16 %v6230
      %v6299 = vunpack.c.l.b16 %v6231
      %v6300 = vunpack.c.l.b16 %v6232
      %v6301 = vunpack.c.l.b16 %v6233
      %v6302 = vunpack.c.l.b16 %v6234
      %v6303 = vunpack.c.l.b16 %v6235
      %v6304 = vunpack.c.l.b16 %v6236
      %v6305 = vunpack.c.l.b16 %v6237
      %v6306 = vunpack.c.l.b16 %v6238
      %v6307 = vunpack.c.l.b16 %v6239
      %v6308 = vunpack.c.l.b16 %v6240
      %v6309 = vunpack.c.l.b16 %v6241
      %v6310 = vunpack.c.l.b16 %v6242
      %v6311 = vunpack.c.l.b16 %v6243
      %v6312 = vunpack.c.l.b16 %v6244
      %v6313 = vunpack.c.l.b16 %v6245
      %v6314 = vunpack.c.l.b16 %v6246
      %v6315 = vunpack.c.l.b16 %v6247
      %v6316 = vunpack.c.l.b16 %v6248
      %v6317 = vunpack.c.l.b16 %v6249
      %v6318 = vunpack.c.l.b16 %v6250
      %v6319 = vunpack.c.l.b16 %v6251
      %v6320 = vunpack.c.l.b16 %v6252
      %v6321 = vunpack.c.l.b16 %v6253
      %v6322 = vunpack.c.l.b16 %v6254
      %v6323 = vunpack.c.l.b16 %v6255
      %v6324 = vunpack.c.l.b16 %v6256
      %v6325 = vunpack.c.l.b16 %v6257
      %v6326 = vunpack.c.l.b16 %v6258
      %v6327 = vunpack.c.l.b16 %v6259
      %v6328 = vunpack.c.l.b16 %v6260
      %v6329 = vpack.c.b16 %v6298, %v6297
      %v6330 = vpack.c.b16 %v6300, %v6299
      %v6331 = vpack.c.b16 %v6302, %v6301
      %v6332 = vpack.c.b16 %v6304, %v6303
      %v6333 = vpack.c.b16 %v6306, %v6305
      %v6334 = vpack.c.b16 %v6308, %v6307
      %v6335 = vpack.c.b16 %v6310, %v6309
      %v6336 = vpack.c.b16 %v6312, %v6311
      %v6337 = vpack.c.b16 %v6314, %v6313
      %v6338 = vpack.c.b16 %v6316, %v6315
      %v6339 = vpack.c.b16 %v6318, %v6317
      %v6340 = vpack.c.b16 %v6320, %v6319
      %v6341 = vpack.c.b16 %v6322, %v6321
      %v6342 = vpack.c.b16 %v6324, %v6323
      %v6343 = vpack.c.b16 %v6326, %v6325
      %v6344 = vpack.c.b16 %v6328, %v6327
      %6361 = vmatpush.bf16.msra.mxu0 %v6336
      %6362 = vmatpush.bf16.msra.mxu0 %v6335
      %6363 = vmatpush.bf16.msra.mxu0 %v6334
      %6364 = vmatpush.bf16.msra.mxu0 %v6333
      %6365 = vmatpush.bf16.msra.mxu0 %v6332
      %6366 = vmatpush.bf16.msra.mxu0 %v6331
      %6367 = vmatpush.bf16.msra.mxu0 %v6330
      %6368 = vmatpush.bf16.msra.mxu0 %v6329
      %6369 = vmatmul.bf16.gmra.mxu0 %v6227
      %v6370 = vpop.f32.mrf.mxu0
      %v6371 = vadd.f32 %v6263, %v6370
      %v6372 = vpop.f32.mrf.mxu0
      %6373 = vdwg.mxu0
      %6374 = vmatpush.bf16.msra.mxu0 %v6344
      %6375 = vmatpush.bf16.msra.mxu0 %v6343
      %6376 = vmatpush.bf16.msra.mxu0 %v6342
      %6377 = vmatpush.bf16.msra.mxu0 %v6341
      %6378 = vmatpush.bf16.msra.mxu0 %v6340
      %6379 = vmatpush.bf16.msra.mxu0 %v6339
      %6380 = vmatpush.bf16.msra.mxu0 %v6338
      %6381 = vmatpush.bf16.msra.mxu0 %v6337
      %6382 = vmatmul.bf16.gmra.mxu0 %v6228
      %v6383 = vpop.f32.mrf.mxu0
      %v6384 = vadd.f32 %v6371, %v6383
      %v6385 = vpop.f32.mrf.mxu0
      %6386 = vdwg.mxu0
      %v6387 = vpack.c.bf16 %v6384, %v6384
      %v6388 = vld [vmem:[#allocation12] sm:$0xf]
      %v6389 = vld [vmem:[#allocation12 + $0x4] sm:$0xf]
      %v6390 = vld [vmem:[#allocation12 + $0x8] sm:$0xf]
      %v6391 = vld [vmem:[#allocation12 + $0xc] sm:$0xf]
      %v6392 = vld [vmem:[#allocation12 + $0x10] sm:$0xf]
      %v6393 = vld [vmem:[#allocation12 + $0x14] sm:$0xf]
      %v6394 = vld [vmem:[#allocation12 + $0x18] sm:$0xf]
      %v6395 = vld [vmem:[#allocation12 + $0x1c] sm:$0xf]
      %v6396 = vld [vmem:[#allocation12 + $0x20] sm:$0xf]
      %v6397 = vld [vmem:[#allocation12 + $0x24] sm:$0xf]
      %v6398 = vld [vmem:[#allocation12 + $0x28] sm:$0xf]
      %v6399 = vld [vmem:[#allocation12 + $0x2c] sm:$0xf]
      %v6400 = vld [vmem:[#allocation12 + $0x30] sm:$0xf]
      %v6401 = vld [vmem:[#allocation12 + $0x34] sm:$0xf]
      %v6402 = vld [vmem:[#allocation12 + $0x38] sm:$0xf]
      %v6403 = vld [vmem:[#allocation12 + $0x3c] sm:$0xf]
      %v6404 = vld [vmem:[#allocation14] sm:$0x1]
      %v6406 = vperm.slane %v6404, 0
      %v6424 = vunpack.c.l.b16 %v6388
      %v6425 = vunpack.c.l.b16 %v6389
      %v6426 = vunpack.c.l.b16 %v6390
      %v6427 = vunpack.c.l.b16 %v6391
      %v6428 = vunpack.c.l.b16 %v6392
      %v6429 = vunpack.c.l.b16 %v6393
      %v6430 = vunpack.c.l.b16 %v6394
      %v6431 = vunpack.c.l.b16 %v6395
      %v6432 = vunpack.c.l.b16 %v6396
      %v6433 = vunpack.c.l.b16 %v6397
      %v6434 = vunpack.c.l.b16 %v6398
      %v6435 = vunpack.c.l.b16 %v6399
      %v6436 = vunpack.c.l.b16 %v6400
      %v6437 = vunpack.c.l.b16 %v6401
      %v6438 = vunpack.c.l.b16 %v6402
      %v6439 = vunpack.c.l.b16 %v6403
      %v6440 = vpack.c.b16 %v6425, %v6424
      %v6441 = vpack.c.b16 %v6427, %v6426
      %v6442 = vpack.c.b16 %v6429, %v6428
      %v6443 = vpack.c.b16 %v6431, %v6430
      %v6444 = vpack.c.b16 %v6433, %v6432
      %v6445 = vpack.c.b16 %v6435, %v6434
      %v6446 = vpack.c.b16 %v6437, %v6436
      %v6447 = vpack.c.b16 %v6439, %v6438
      %6456 = vmatpush.bf16.msra.mxu0 %v6447
      %6457 = vmatpush.bf16.msra.mxu0 %v6446
      %6458 = vmatpush.bf16.msra.mxu0 %v6445
      %6459 = vmatpush.bf16.msra.mxu0 %v6444
      %6460 = vmatpush.bf16.msra.mxu0 %v6443
      %6461 = vmatpush.bf16.msra.mxu0 %v6442
      %6462 = vmatpush.bf16.msra.mxu0 %v6441
      %6463 = vmatpush.bf16.msra.mxu0 %v6440
      %6464 = vmatmul.bf16.gmra.mxu0 %v6387
      %v6465 = vpop.f32.mrf.mxu0
      %v6466 = vadd.f32 %v6406, %v6465
      %v6467 = vpop.f32.mrf.mxu0
      %6468 = vdwg.mxu0
      %6469 = vst [vmem:[#allocation15] sm:$0xff] %v6466
    $region65: #{tpu_custom_call.1} parent=1 // pred_fallthru
      _
    // Predicated region
    $region66: #{tpu_custom_call.1} parent=1 // pred_check
      _
    $region67: #{tpu_custom_call.1} parent=1 // pred_check_branch
      %6471 = sbr.rel (0) target = $region69
    $region68: #{tpu_custom_call.1} parent=1 // pred_region
      %6473 = vsyncadd [#allocation5], 0
      %s6475 = sshll.u32 [#allocation15], 4
      %s6476 = int_to_ptr.vmem [resolvable:$true] %s6475
      %s6477 = sshll.u32 %s7, 4
      %s6478 = int_to_ptr.hbm [resolvable:$true] %s6477
      %6480 = dma.vmem_to_hbm [thread:$0]  %s6476, 128, %s6478, [#allocation5]
    $region69: #{tpu_custom_call.1} parent=1 // pred_fallthru
      _
    // Predicated region
    $region70: #{tpu_custom_call.1} parent=1 // pred_check
      _
    $region71: #{tpu_custom_call.1} parent=1 // pred_check_branch
      %6482 = sbr.rel (0) target = $region73
    $region72: #{tpu_custom_call.1} parent=1 // pred_region
      %6484 = dma.done [#allocation5], 128
    $region73: #{tpu_custom_call.1} parent=1 // pred_fallthru
      _
    %6485 = vsyncpa [#allocation4], 1
    %6486 = vsyncpa [#allocation7], 1
    %6487 = vsyncpa [#allocation10], 1
    %6488 = vsyncpa [#allocation13], 1
    %6489 = vsyncpa [#allocation5], 1

</llo_original>
